<compile_context>
chip_gen: v5e
topology: v5e:2x2
jax: 0.10.0
libtpu: 0.0.40
codegen_flags: <defaults>
</compile_context>

<pallas_src>
import functools

import jax
import jax.numpy as jnp
from jax import lax
from jax.experimental import pallas as pl
from jax.experimental.pallas import tpu as pltpu


def _spatial_gate_kernel(x_ref, w_ref, b_ref, o_ref, pad_ref, gflat_ref, *, H, W, K):
    """One batch element per grid step.

    x_ref:     (C, H*W)           x.dtype VMEM -- lane-dense (already preprocessed) features
    w_ref:     (2*K*K,)           f32 SMEM     -- 2-in/1-out KxK conv weights, BN scale folded in
    b_ref:     (1,)               f32 SMEM     -- folded BN bias
    o_ref:     (C, H*W)           x.dtype VMEM -- x * sigmoid(conv(channel_pool(x)))
    pad_ref:   (2, Hp_pad, Wp_pad) f32 VMEM    -- zero-bordered pooled maps (conv input)
    gflat_ref: (1, H*W)           f32 VMEM     -- gate, flattened back to the lane-dense layout
    """
    P = (K - 1) // 2
    Hp = H + 2 * P

    x = x_ref[...]                                        # (C, H*W), lane-dense
    xf = x.astype(jnp.float32)                            # pool in f32 even for bf16 inputs

    # ChannelPool on the flat layout (pure VPU, lane-dense loads).
    cmax = jnp.max(xf, axis=0, keepdims=True)             # (1, H*W)
    cmean = jnp.mean(xf, axis=0, keepdims=True)           # (1, H*W)

    # Zero the whole padded scratch. It is tiny (a few vregs), and re-zeroing every step keeps
    # the border correct even when the "parallel" batch axis is sharded across TensorCores
    # (a pl.when(pid == 0) one-time memset would never run on the second core's scratch).
    pad_ref[...] = jnp.zeros_like(pad_ref)

    # Scatter the two pooled maps row-by-row into the scratch interior: this is the
    # flat -> (H, W) relayout done with static lane slices + single-row stores only.
    for r in range(H):
        pad_ref[0, P + r:P + r + 1, P:P + W] = cmax[:, r * W:(r + 1) * W]
        pad_ref[1, P + r:P + r + 1, P:P + W] = cmean[:, r * W:(r + 1) * W]

    # 7x7, 2-in/1-out conv as scalar-weighted taps. The lane (dx) shift is hoisted:
    # 2*K lane-shifted slab loads total; the K dy taps per slab use sublane-offset views.
    acc = jnp.zeros((H, W), jnp.float32)
    for c in range(2):
        for dx in range(K):
            col = pad_ref[c, 0:Hp, dx:dx + W]             # (H+2P, W) -- one lane-shifted load
            for dy in range(K):
                wgt = w_ref[c * K * K + dy * K + dx]      # SMEM scalar (BN-scaled weight)
                acc = acc + wgt * col[dy:dy + H, :]

    # Folded BN bias + sigmoid. sigmoid(z) = 0.5*(tanh(z/2)+1): one EUP tanh, no f32 VALU
    # divide (pl.reciprocal(1+exp(-z), approx=True) is an equivalent option if VPU-bound).
    z = acc + b_ref[0]
    gate2d = 0.5 * (jnp.tanh(0.5 * z) + 1.0)              # (H, W) f32

    # (H, W) -> (1, H*W) through the small flat scratch, then one lane-dense broadcast
    # multiply + unmasked store of the big (C, H*W) block.
    for r in range(H):
        gflat_ref[:, r * W:(r + 1) * W] = gate2d[r:r + 1, :]
    gate = gflat_ref[...].astype(x.dtype)                 # cast once, multiply in x's dtype
    o_ref[...] = (x * gate).astype(o_ref.dtype)


def spatial_gate(x, conv_w, bn_gamma, bn_beta, bn_mean, bn_var,
                 *, eps=1e-5, fea_preprocess=None):
    """SpatialGate forward.

    x:       (B, C, H, W) float (f32 or bf16)
    conv_w:  (1, 2, K, K) f32 -- PyTorch-layout Conv2d(2, 1, K, bias=False) weight
    bn_*:    (1,) f32          -- eval-mode BatchNorm2d(1) affine params / running stats
    """
    if fea_preprocess is not None:
        # TODO(synk): fea_preprocess is an arbitrary external nn.Module passed into forward();
        # it is applied here as plain JAX, not inside the Pallas kernel.
        x = fea_preprocess(x)

    B, C, H, W = x.shape
    K = conv_w.shape[-1]
    P = (K - 1) // 2
    HW = H * W

    # Fold eval-mode BatchNorm2d(1) into the conv: scale into the 2*K*K weights, shift into a bias.
    scale = bn_gamma / jnp.sqrt(bn_var + eps)                           # (1,)
    w_folded = (conv_w[0] * scale[0]).reshape(-1).astype(jnp.float32)   # (2*K*K,)
    b_folded = (bn_beta - bn_mean * scale).reshape(1).astype(jnp.float32)

    # Lane-dense view for all of the big traffic (free HBM view, no copy).
    x_flat = x.reshape(B, C, HW)

    # Padded pooled-map scratch, rounded up to the native (8, 128) tile.
    Hp_pad = -(-(H + 2 * P) // 8) * 8
    Wp_pad = -(-(W + 2 * P) // 128) * 128

    itemsize = jnp.dtype(x.dtype).itemsize
    block_bytes = C * HW * itemsize
    scratch_bytes = (2 * Hp_pad * Wp_pad + HW) * 4
    # Double-buffered in + out blocks + scratch + slack; only override the scoped-VMEM limit
    # when it would exceed v5e's 16 MiB default (avoid oversizing otherwise).
    vmem_need = 2 * 2 * block_bytes + scratch_bytes + (2 << 20)
    vmem_limit = int(min(vmem_need, 100 * 1024 * 1024)) if vmem_need > (16 << 20) else None

    cost = pl.CostEstimate(
        flops=int(B * HW * (3 * C + 4 * K * K + 2)),      # pool + 2*K*K MACs + gate multiply
        transcendentals=int(B * HW),                      # one tanh per pixel
        bytes_accessed=int(2 * B * C * HW * itemsize),    # read x once, write out once
    )

    kernel = functools.partial(_spatial_gate_kernel, H=H, W=W, K=K)

    out_flat = pl.pallas_call(
        kernel,
        out_shape=jax.ShapeDtypeStruct((B, C, HW), x.dtype),
        grid=(B,),
        in_specs=[
            pl.BlockSpec((None, C, HW), lambda b: (b, 0, 0)),
            pl.BlockSpec(memory_space=pltpu.MemorySpace.SMEM),
            pl.BlockSpec(memory_space=pltpu.MemorySpace.SMEM),
        ],
        out_specs=pl.BlockSpec((None, C, HW), lambda b: (b, 0, 0)),
        scratch_shapes=[
            pltpu.VMEM((2, Hp_pad, Wp_pad), jnp.float32),   # zero-bordered pooled maps
            pltpu.VMEM((1, HW), jnp.float32),               # flattened gate
        ],
        compiler_params=pltpu.CompilerParams(
            dimension_semantics=("parallel",),
            vmem_limit_bytes=vmem_limit,
        ),
        cost_estimate=cost,
    )(x_flat, w_folded, b_folded)
    return out_flat.reshape(B, C, H, W)


def _reference(x, conv_w, bn_gamma, bn_beta, bn_mean, bn_var, eps=1e-5):
    """Pure-JAX mirror of the PyTorch forward (eval-mode BN)."""
    cmax = jnp.max(x, axis=1, keepdims=True)
    cmean = jnp.mean(x, axis=1, keepdims=True)
    xc = jnp.concatenate([cmax, cmean], axis=1)                   # (B, 2, H, W)
    P = (conv_w.shape[-1] - 1) // 2
    y = lax.conv_general_dilated(
        xc, conv_w, window_strides=(1, 1), padding=((P, P), (P, P)),
        dimension_numbers=("NCHW", "OIHW", "NCHW"))               # (B, 1, H, W)
    y = (y - bn_mean.reshape(1, -1, 1, 1)) / jnp.sqrt(bn_var.reshape(1, -1, 1, 1) + eps)
    y = y * bn_gamma.reshape(1, -1, 1, 1) + bn_beta.reshape(1, -1, 1, 1)
    gate = 1.0 / (1.0 + jnp.exp(-y))                              # == torch.sigmoid
    return x * gate


if __name__ == "__main__":
    B, C, H, W = 2, 4, 16, 16
    K = 7

    key = jax.random.PRNGKey(0)
    kx, kw, kg, kb, km, kv = jax.random.split(key, 6)

    x = jax.random.normal(kx, (B, C, H, W), dtype=jnp.float32)
    conv_w = jax.random.normal(kw, (1, 2, K, K), dtype=jnp.float32) * 0.1
    bn_gamma = 1.0 + 0.1 * jax.random.normal(kg, (1,), dtype=jnp.float32)
    bn_beta = 0.1 * jax.random.normal(kb, (1,), dtype=jnp.float32)
    bn_mean = 0.1 * jax.random.normal(km, (1,), dtype=jnp.float32)
    bn_var = jnp.abs(jax.random.normal(kv, (1,), dtype=jnp.float32)) + 0.5

    out = spatial_gate(x, conv_w, bn_gamma, bn_beta, bn_mean, bn_var)
    jax.block_until_ready(out)

    ref = _reference(x, conv_w, bn_gamma, bn_beta, bn_mean, bn_var)
    assert out.shape == (B, C, H, W)
    err = float(jnp.max(jnp.abs(out - ref)))
    # 2e-5 tolerance: accumulation-order differences in the 98-tap conv plus the
    # (few-ULP) tanh-form vs exp-form sigmoid difference.
    assert jnp.allclose(out, ref, atol=2e-5, rtol=2e-5), f"max abs err = {err}"

    print("KERNEL_OK")
</pallas_src>

<mosaic_0001>
module attributes {stable_mosaic.version = 11 : i64} {
  func.func @_spatial_gate_kernel(%arg0: i32, %arg1: memref<1x4x256xf32, #tpu.memory_space<vmem>>, %arg2: memref<98xf32, #tpu.memory_space<smem>>, %arg3: memref<1xf32, #tpu.memory_space<smem>>, %arg4: memref<1x4x256xf32, #tpu.memory_space<vmem>>, %arg5: memref<2x24x128xf32, #tpu.memory_space<vmem>>, %arg6: memref<1x256xf32, #tpu.memory_space<vmem>>) attributes {dimension_semantics = [#tpu.dimension_semantics<parallel>], iteration_bounds = array<i64: 2>, scalar_prefetch = 0 : i64, scratch_operands = 2 : i64, tpu.core_type = #tpu.core_type<tc>, window_params = [{transform_indices = @transform_0, window_bounds = array<i64: 1, 4, 256>}, {transform_indices = @transform_1, window_bounds = array<i64: 98>}, {transform_indices = @transform_2, window_bounds = array<i64: 1>}, {transform_indices = @transform_3, window_bounds = array<i64: 1, 4, 256>}]} {
    %c0 = arith.constant 0 : index
    %c0_0 = arith.constant 0 : index
    %c0_1 = arith.constant 0 : index
    %0 = vector.load %arg1[%c0, %c0_0, %c0_1] : memref<1x4x256xf32, #tpu.memory_space<vmem>>, vector<1x4x256xf32>
    %1 = vector.shape_cast %0 : vector<1x4x256xf32> to vector<4x256xf32>
    %cst = arith.constant dense<0xFF800000> : vector<256xf32>
    %2 = vector.multi_reduction <maximumf>, %1, %cst [0] : vector<4x256xf32> to vector<256xf32>
    %3 = vector.shape_cast %2 : vector<256xf32> to vector<1x256xf32>
    %cst_2 = arith.constant dense<0.000000e+00> : vector<256xf32>
    %4 = vector.multi_reduction <add>, %1, %cst_2 [0] : vector<4x256xf32> to vector<256xf32>
    %5 = vector.shape_cast %4 : vector<256xf32> to vector<1x256xf32>
    %cst_3 = arith.constant 4.000000e+00 : f32
    %6 = vector.broadcast %cst_3 : f32 to vector<1x256xf32>
    %7 = arith.divf %5, %6 : vector<1x256xf32>
    %cst_4 = arith.constant 0.000000e+00 : f32
    %8 = vector.broadcast %cst_4 : f32 to vector<2x24x128xf32>
    %c0_5 = arith.constant 0 : index
    %c0_6 = arith.constant 0 : index
    %c0_7 = arith.constant 0 : index
    %9 = vector.load %arg5[%c0_5, %c0_6, %c0_7] : memref<2x24x128xf32, #tpu.memory_space<vmem>>, vector<2x24x128xf32>
    tpu.vector_store %arg5[%c0_5, %c0_6, %c0_7], %8 {strides = array<i32>} : memref<2x24x128xf32, #tpu.memory_space<vmem>>, vector<2x24x128xf32>,
    %10 = vector.extract_strided_slice %3 {offsets = [0, 0], sizes = [1, 16], strides = [1, 1]} : vector<1x256xf32> to vector<1x16xf32>
    %c0_8 = arith.constant 0 : index
    %c3 = arith.constant 3 : index
    %c3_9 = arith.constant 3 : index
    %11 = vector.load %arg5[%c0_8, %c3, %c3_9] : memref<2x24x128xf32, #tpu.memory_space<vmem>>, vector<1x1x16xf32>
    %12 = vector.shape_cast %11 : vector<1x1x16xf32> to vector<1x16xf32>
    %13 = vector.shape_cast %10 : vector<1x16xf32> to vector<1x1x16xf32>
    tpu.vector_store %arg5[%c0_8, %c3, %c3_9], %13 {strides = array<i32>} : memref<2x24x128xf32, #tpu.memory_space<vmem>>, vector<1x1x16xf32>,
    %14 = vector.extract_strided_slice %7 {offsets = [0, 0], sizes = [1, 16], strides = [1, 1]} : vector<1x256xf32> to vector<1x16xf32>
    %c1 = arith.constant 1 : index
    %c3_10 = arith.constant 3 : index
    %c3_11 = arith.constant 3 : index
    %15 = vector.load %arg5[%c1, %c3_10, %c3_11] : memref<2x24x128xf32, #tpu.memory_space<vmem>>, vector<1x1x16xf32>
    %16 = vector.shape_cast %15 : vector<1x1x16xf32> to vector<1x16xf32>
    %17 = vector.shape_cast %14 : vector<1x16xf32> to vector<1x1x16xf32>
    tpu.vector_store %arg5[%c1, %c3_10, %c3_11], %17 {strides = array<i32>} : memref<2x24x128xf32, #tpu.memory_space<vmem>>, vector<1x1x16xf32>,
    %18 = vector.extract_strided_slice %3 {offsets = [0, 16], sizes = [1, 16], strides = [1, 1]} : vector<1x256xf32> to vector<1x16xf32>
    %c0_12 = arith.constant 0 : index
    %c4 = arith.constant 4 : index
    %c3_13 = arith.constant 3 : index
    %19 = vector.load %arg5[%c0_12, %c4, %c3_13] : memref<2x24x128xf32, #tpu.memory_space<vmem>>, vector<1x1x16xf32>
    %20 = vector.shape_cast %19 : vector<1x1x16xf32> to vector<1x16xf32>
    %21 = vector.shape_cast %18 : vector<1x16xf32> to vector<1x1x16xf32>
    tpu.vector_store %arg5[%c0_12, %c4, %c3_13], %21 {strides = array<i32>} : memref<2x24x128xf32, #tpu.memory_space<vmem>>, vector<1x1x16xf32>,
    %22 = vector.extract_strided_slice %7 {offsets = [0, 16], sizes = [1, 16], strides = [1, 1]} : vector<1x256xf32> to vector<1x16xf32>
    %c1_14 = arith.constant 1 : index
    %c4_15 = arith.constant 4 : index
    %c3_16 = arith.constant 3 : index
    %23 = vector.load %arg5[%c1_14, %c4_15, %c3_16] : memref<2x24x128xf32, #tpu.memory_space<vmem>>, vector<1x1x16xf32>
    %24 = vector.shape_cast %23 : vector<1x1x16xf32> to vector<1x16xf32>
    %25 = vector.shape_cast %22 : vector<1x16xf32> to vector<1x1x16xf32>
    tpu.vector_store %arg5[%c1_14, %c4_15, %c3_16], %25 {strides = array<i32>} : memref<2x24x128xf32, #tpu.memory_space<vmem>>, vector<1x1x16xf32>,
    %26 = vector.extract_strided_slice %3 {offsets = [0, 32], sizes = [1, 16], strides = [1, 1]} : vector<1x256xf32> to vector<1x16xf32>
    %c0_17 = arith.constant 0 : index
    %c5 = arith.constant 5 : index
    %c3_18 = arith.constant 3 : index
    %27 = vector.load %arg5[%c0_17, %c5, %c3_18] : memref<2x24x128xf32, #tpu.memory_space<vmem>>, vector<1x1x16xf32>
    %28 = vector.shape_cast %27 : vector<1x1x16xf32> to vector<1x16xf32>
    %29 = vector.shape_cast %26 : vector<1x16xf32> to vector<1x1x16xf32>
    tpu.vector_store %arg5[%c0_17, %c5, %c3_18], %29 {strides = array<i32>} : memref<2x24x128xf32, #tpu.memory_space<vmem>>, vector<1x1x16xf32>,
    %30 = vector.extract_strided_slice %7 {offsets = [0, 32], sizes = [1, 16], strides = [1, 1]} : vector<1x256xf32> to vector<1x16xf32>
    %c1_19 = arith.constant 1 : index
    %c5_20 = arith.constant 5 : index
    %c3_21 = arith.constant 3 : index
    %31 = vector.load %arg5[%c1_19, %c5_20, %c3_21] : memref<2x24x128xf32, #tpu.memory_space<vmem>>, vector<1x1x16xf32>
    %32 = vector.shape_cast %31 : vector<1x1x16xf32> to vector<1x16xf32>
    %33 = vector.shape_cast %30 : vector<1x16xf32> to vector<1x1x16xf32>
    tpu.vector_store %arg5[%c1_19, %c5_20, %c3_21], %33 {strides = array<i32>} : memref<2x24x128xf32, #tpu.memory_space<vmem>>, vector<1x1x16xf32>,
    %34 = vector.extract_strided_slice %3 {offsets = [0, 48], sizes = [1, 16], strides = [1, 1]} : vector<1x256xf32> to vector<1x16xf32>
    %c0_22 = arith.constant 0 : index
    %c6 = arith.constant 6 : index
    %c3_23 = arith.constant 3 : index
    %35 = vector.load %arg5[%c0_22, %c6, %c3_23] : memref<2x24x128xf32, #tpu.memory_space<vmem>>, vector<1x1x16xf32>
    %36 = vector.shape_cast %35 : vector<1x1x16xf32> to vector<1x16xf32>
    %37 = vector.shape_cast %34 : vector<1x16xf32> to vector<1x1x16xf32>
    tpu.vector_store %arg5[%c0_22, %c6, %c3_23], %37 {strides = array<i32>} : memref<2x24x128xf32, #tpu.memory_space<vmem>>, vector<1x1x16xf32>,
    %38 = vector.extract_strided_slice %7 {offsets = [0, 48], sizes = [1, 16], strides = [1, 1]} : vector<1x256xf32> to vector<1x16xf32>
    %c1_24 = arith.constant 1 : index
    %c6_25 = arith.constant 6 : index
    %c3_26 = arith.constant 3 : index
    %39 = vector.load %arg5[%c1_24, %c6_25, %c3_26] : memref<2x24x128xf32, #tpu.memory_space<vmem>>, vector<1x1x16xf32>
    %40 = vector.shape_cast %39 : vector<1x1x16xf32> to vector<1x16xf32>
    %41 = vector.shape_cast %38 : vector<1x16xf32> to vector<1x1x16xf32>
    tpu.vector_store %arg5[%c1_24, %c6_25, %c3_26], %41 {strides = array<i32>} : memref<2x24x128xf32, #tpu.memory_space<vmem>>, vector<1x1x16xf32>,
    %42 = vector.extract_strided_slice %3 {offsets = [0, 64], sizes = [1, 16], strides = [1, 1]} : vector<1x256xf32> to vector<1x16xf32>
    %c0_27 = arith.constant 0 : index
    %c7 = arith.constant 7 : index
    %c3_28 = arith.constant 3 : index
    %43 = vector.load %arg5[%c0_27, %c7, %c3_28] : memref<2x24x128xf32, #tpu.memory_space<vmem>>, vector<1x1x16xf32>
    %44 = vector.shape_cast %43 : vector<1x1x16xf32> to vector<1x16xf32>
    %45 = vector.shape_cast %42 : vector<1x16xf32> to vector<1x1x16xf32>
    tpu.vector_store %arg5[%c0_27, %c7, %c3_28], %45 {strides = array<i32>} : memref<2x24x128xf32, #tpu.memory_space<vmem>>, vector<1x1x16xf32>,
    %46 = vector.extract_strided_slice %7 {offsets = [0, 64], sizes = [1, 16], strides = [1, 1]} : vector<1x256xf32> to vector<1x16xf32>
    %c1_29 = arith.constant 1 : index
    %c7_30 = arith.constant 7 : index
    %c3_31 = arith.constant 3 : index
    %47 = vector.load %arg5[%c1_29, %c7_30, %c3_31] : memref<2x24x128xf32, #tpu.memory_space<vmem>>, vector<1x1x16xf32>
    %48 = vector.shape_cast %47 : vector<1x1x16xf32> to vector<1x16xf32>
    %49 = vector.shape_cast %46 : vector<1x16xf32> to vector<1x1x16xf32>
    tpu.vector_store %arg5[%c1_29, %c7_30, %c3_31], %49 {strides = array<i32>} : memref<2x24x128xf32, #tpu.memory_space<vmem>>, vector<1x1x16xf32>,
    %50 = vector.extract_strided_slice %3 {offsets = [0, 80], sizes = [1, 16], strides = [1, 1]} : vector<1x256xf32> to vector<1x16xf32>
    %c0_32 = arith.constant 0 : index
    %c8 = arith.constant 8 : index
    %c3_33 = arith.constant 3 : index
    %51 = vector.load %arg5[%c0_32, %c8, %c3_33] : memref<2x24x128xf32, #tpu.memory_space<vmem>>, vector<1x1x16xf32>
    %52 = vector.shape_cast %51 : vector<1x1x16xf32> to vector<1x16xf32>
    %53 = vector.shape_cast %50 : vector<1x16xf32> to vector<1x1x16xf32>
    tpu.vector_store %arg5[%c0_32, %c8, %c3_33], %53 {strides = array<i32>} : memref<2x24x128xf32, #tpu.memory_space<vmem>>, vector<1x1x16xf32>,
    %54 = vector.extract_strided_slice %7 {offsets = [0, 80], sizes = [1, 16], strides = [1, 1]} : vector<1x256xf32> to vector<1x16xf32>
    %c1_34 = arith.constant 1 : index
    %c8_35 = arith.constant 8 : index
    %c3_36 = arith.constant 3 : index
    %55 = vector.load %arg5[%c1_34, %c8_35, %c3_36] : memref<2x24x128xf32, #tpu.memory_space<vmem>>, vector<1x1x16xf32>
    %56 = vector.shape_cast %55 : vector<1x1x16xf32> to vector<1x16xf32>
    %57 = vector.shape_cast %54 : vector<1x16xf32> to vector<1x1x16xf32>
    tpu.vector_store %arg5[%c1_34, %c8_35, %c3_36], %57 {strides = array<i32>} : memref<2x24x128xf32, #tpu.memory_space<vmem>>, vector<1x1x16xf32>,
    %58 = vector.extract_strided_slice %3 {offsets = [0, 96], sizes = [1, 16], strides = [1, 1]} : vector<1x256xf32> to vector<1x16xf32>
    %c0_37 = arith.constant 0 : index
    %c9 = arith.constant 9 : index
    %c3_38 = arith.constant 3 : index
    %59 = vector.load %arg5[%c0_37, %c9, %c3_38] : memref<2x24x128xf32, #tpu.memory_space<vmem>>, vector<1x1x16xf32>
    %60 = vector.shape_cast %59 : vector<1x1x16xf32> to vector<1x16xf32>
    %61 = vector.shape_cast %58 : vector<1x16xf32> to vector<1x1x16xf32>
    tpu.vector_store %arg5[%c0_37, %c9, %c3_38], %61 {strides = array<i32>} : memref<2x24x128xf32, #tpu.memory_space<vmem>>, vector<1x1x16xf32>,
    %62 = vector.extract_strided_slice %7 {offsets = [0, 96], sizes = [1, 16], strides = [1, 1]} : vector<1x256xf32> to vector<1x16xf32>
    %c1_39 = arith.constant 1 : index
    %c9_40 = arith.constant 9 : index
    %c3_41 = arith.constant 3 : index
    %63 = vector.load %arg5[%c1_39, %c9_40, %c3_41] : memref<2x24x128xf32, #tpu.memory_space<vmem>>, vector<1x1x16xf32>
    %64 = vector.shape_cast %63 : vector<1x1x16xf32> to vector<1x16xf32>
    %65 = vector.shape_cast %62 : vector<1x16xf32> to vector<1x1x16xf32>
    tpu.vector_store %arg5[%c1_39, %c9_40, %c3_41], %65 {strides = array<i32>} : memref<2x24x128xf32, #tpu.memory_space<vmem>>, vector<1x1x16xf32>,
    %66 = vector.extract_strided_slice %3 {offsets = [0, 112], sizes = [1, 16], strides = [1, 1]} : vector<1x256xf32> to vector<1x16xf32>
    %c0_42 = arith.constant 0 : index
    %c10 = arith.constant 10 : index
    %c3_43 = arith.constant 3 : index
    %67 = vector.load %arg5[%c0_42, %c10, %c3_43] : memref<2x24x128xf32, #tpu.memory_space<vmem>>, vector<1x1x16xf32>
    %68 = vector.shape_cast %67 : vector<1x1x16xf32> to vector<1x16xf32>
    %69 = vector.shape_cast %66 : vector<1x16xf32> to vector<1x1x16xf32>
    tpu.vector_store %arg5[%c0_42, %c10, %c3_43], %69 {strides = array<i32>} : memref<2x24x128xf32, #tpu.memory_space<vmem>>, vector<1x1x16xf32>,
    %70 = vector.extract_strided_slice %7 {offsets = [0, 112], sizes = [1, 16], strides = [1, 1]} : vector<1x256xf32> to vector<1x16xf32>
    %c1_44 = arith.constant 1 : index
    %c10_45 = arith.constant 10 : index
    %c3_46 = arith.constant 3 : index
    %71 = vector.load %arg5[%c1_44, %c10_45, %c3_46] : memref<2x24x128xf32, #tpu.memory_space<vmem>>, vector<1x1x16xf32>
    %72 = vector.shape_cast %71 : vector<1x1x16xf32> to vector<1x16xf32>
    %73 = vector.shape_cast %70 : vector<1x16xf32> to vector<1x1x16xf32>
    tpu.vector_store %arg5[%c1_44, %c10_45, %c3_46], %73 {strides = array<i32>} : memref<2x24x128xf32, #tpu.memory_space<vmem>>, vector<1x1x16xf32>,
    %74 = vector.extract_strided_slice %3 {offsets = [0, 128], sizes = [1, 16], strides = [1, 1]} : vector<1x256xf32> to vector<1x16xf32>
    %c0_47 = arith.constant 0 : index
    %c11 = arith.constant 11 : index
    %c3_48 = arith.constant 3 : index
    %75 = vector.load %arg5[%c0_47, %c11, %c3_48] : memref<2x24x128xf32, #tpu.memory_space<vmem>>, vector<1x1x16xf32>
    %76 = vector.shape_cast %75 : vector<1x1x16xf32> to vector<1x16xf32>
    %77 = vector.shape_cast %74 : vector<1x16xf32> to vector<1x1x16xf32>
    tpu.vector_store %arg5[%c0_47, %c11, %c3_48], %77 {strides = array<i32>} : memref<2x24x128xf32, #tpu.memory_space<vmem>>, vector<1x1x16xf32>,
    %78 = vector.extract_strided_slice %7 {offsets = [0, 128], sizes = [1, 16], strides = [1, 1]} : vector<1x256xf32> to vector<1x16xf32>
    %c1_49 = arith.constant 1 : index
    %c11_50 = arith.constant 11 : index
    %c3_51 = arith.constant 3 : index
    %79 = vector.load %arg5[%c1_49, %c11_50, %c3_51] : memref<2x24x128xf32, #tpu.memory_space<vmem>>, vector<1x1x16xf32>
    %80 = vector.shape_cast %79 : vector<1x1x16xf32> to vector<1x16xf32>
    %81 = vector.shape_cast %78 : vector<1x16xf32> to vector<1x1x16xf32>
    tpu.vector_store %arg5[%c1_49, %c11_50, %c3_51], %81 {strides = array<i32>} : memref<2x24x128xf32, #tpu.memory_space<vmem>>, vector<1x1x16xf32>,
    %82 = vector.extract_strided_slice %3 {offsets = [0, 144], sizes = [1, 16], strides = [1, 1]} : vector<1x256xf32> to vector<1x16xf32>
    %c0_52 = arith.constant 0 : index
    %c12 = arith.constant 12 : index
    %c3_53 = arith.constant 3 : index
    %83 = vector.load %arg5[%c0_52, %c12, %c3_53] : memref<2x24x128xf32, #tpu.memory_space<vmem>>, vector<1x1x16xf32>
    %84 = vector.shape_cast %83 : vector<1x1x16xf32> to vector<1x16xf32>
    %85 = vector.shape_cast %82 : vector<1x16xf32> to vector<1x1x16xf32>
    tpu.vector_store %arg5[%c0_52, %c12, %c3_53], %85 {strides = array<i32>} : memref<2x24x128xf32, #tpu.memory_space<vmem>>, vector<1x1x16xf32>,
    %86 = vector.extract_strided_slice %7 {offsets = [0, 144], sizes = [1, 16], strides = [1, 1]} : vector<1x256xf32> to vector<1x16xf32>
    %c1_54 = arith.constant 1 : index
    %c12_55 = arith.constant 12 : index
    %c3_56 = arith.constant 3 : index
    %87 = vector.load %arg5[%c1_54, %c12_55, %c3_56] : memref<2x24x128xf32, #tpu.memory_space<vmem>>, vector<1x1x16xf32>
    %88 = vector.shape_cast %87 : vector<1x1x16xf32> to vector<1x16xf32>
    %89 = vector.shape_cast %86 : vector<1x16xf32> to vector<1x1x16xf32>
    tpu.vector_store %arg5[%c1_54, %c12_55, %c3_56], %89 {strides = array<i32>} : memref<2x24x128xf32, #tpu.memory_space<vmem>>, vector<1x1x16xf32>,
    %90 = vector.extract_strided_slice %3 {offsets = [0, 160], sizes = [1, 16], strides = [1, 1]} : vector<1x256xf32> to vector<1x16xf32>
    %c0_57 = arith.constant 0 : index
    %c13 = arith.constant 13 : index
    %c3_58 = arith.constant 3 : index
    %91 = vector.load %arg5[%c0_57, %c13, %c3_58] : memref<2x24x128xf32, #tpu.memory_space<vmem>>, vector<1x1x16xf32>
    %92 = vector.shape_cast %91 : vector<1x1x16xf32> to vector<1x16xf32>
    %93 = vector.shape_cast %90 : vector<1x16xf32> to vector<1x1x16xf32>
    tpu.vector_store %arg5[%c0_57, %c13, %c3_58], %93 {strides = array<i32>} : memref<2x24x128xf32, #tpu.memory_space<vmem>>, vector<1x1x16xf32>,
    %94 = vector.extract_strided_slice %7 {offsets = [0, 160], sizes = [1, 16], strides = [1, 1]} : vector<1x256xf32> to vector<1x16xf32>
    %c1_59 = arith.constant 1 : index
    %c13_60 = arith.constant 13 : index
    %c3_61 = arith.constant 3 : index
    %95 = vector.load %arg5[%c1_59, %c13_60, %c3_61] : memref<2x24x128xf32, #tpu.memory_space<vmem>>, vector<1x1x16xf32>
    %96 = vector.shape_cast %95 : vector<1x1x16xf32> to vector<1x16xf32>
    %97 = vector.shape_cast %94 : vector<1x16xf32> to vector<1x1x16xf32>
    tpu.vector_store %arg5[%c1_59, %c13_60, %c3_61], %97 {strides = array<i32>} : memref<2x24x128xf32, #tpu.memory_space<vmem>>, vector<1x1x16xf32>,
    %98 = vector.extract_strided_slice %3 {offsets = [0, 176], sizes = [1, 16], strides = [1, 1]} : vector<1x256xf32> to vector<1x16xf32>
    %c0_62 = arith.constant 0 : index
    %c14 = arith.constant 14 : index
    %c3_63 = arith.constant 3 : index
    %99 = vector.load %arg5[%c0_62, %c14, %c3_63] : memref<2x24x128xf32, #tpu.memory_space<vmem>>, vector<1x1x16xf32>
    %100 = vector.shape_cast %99 : vector<1x1x16xf32> to vector<1x16xf32>
    %101 = vector.shape_cast %98 : vector<1x16xf32> to vector<1x1x16xf32>
    tpu.vector_store %arg5[%c0_62, %c14, %c3_63], %101 {strides = array<i32>} : memref<2x24x128xf32, #tpu.memory_space<vmem>>, vector<1x1x16xf32>,
    %102 = vector.extract_strided_slice %7 {offsets = [0, 176], sizes = [1, 16], strides = [1, 1]} : vector<1x256xf32> to vector<1x16xf32>
    %c1_64 = arith.constant 1 : index
    %c14_65 = arith.constant 14 : index
    %c3_66 = arith.constant 3 : index
    %103 = vector.load %arg5[%c1_64, %c14_65, %c3_66] : memref<2x24x128xf32, #tpu.memory_space<vmem>>, vector<1x1x16xf32>
    %104 = vector.shape_cast %103 : vector<1x1x16xf32> to vector<1x16xf32>
    %105 = vector.shape_cast %102 : vector<1x16xf32> to vector<1x1x16xf32>
    tpu.vector_store %arg5[%c1_64, %c14_65, %c3_66], %105 {strides = array<i32>} : memref<2x24x128xf32, #tpu.memory_space<vmem>>, vector<1x1x16xf32>,
    %106 = vector.extract_strided_slice %3 {offsets = [0, 192], sizes = [1, 16], strides = [1, 1]} : vector<1x256xf32> to vector<1x16xf32>
    %c0_67 = arith.constant 0 : index
    %c15 = arith.constant 15 : index
    %c3_68 = arith.constant 3 : index
    %107 = vector.load %arg5[%c0_67, %c15, %c3_68] : memref<2x24x128xf32, #tpu.memory_space<vmem>>, vector<1x1x16xf32>
    %108 = vector.shape_cast %107 : vector<1x1x16xf32> to vector<1x16xf32>
    %109 = vector.shape_cast %106 : vector<1x16xf32> to vector<1x1x16xf32>
    tpu.vector_store %arg5[%c0_67, %c15, %c3_68], %109 {strides = array<i32>} : memref<2x24x128xf32, #tpu.memory_space<vmem>>, vector<1x1x16xf32>,
    %110 = vector.extract_strided_slice %7 {offsets = [0, 192], sizes = [1, 16], strides = [1, 1]} : vector<1x256xf32> to vector<1x16xf32>
    %c1_69 = arith.constant 1 : index
    %c15_70 = arith.constant 15 : index
    %c3_71 = arith.constant 3 : index
    %111 = vector.load %arg5[%c1_69, %c15_70, %c3_71] : memref<2x24x128xf32, #tpu.memory_space<vmem>>, vector<1x1x16xf32>
    %112 = vector.shape_cast %111 : vector<1x1x16xf32> to vector<1x16xf32>
    %113 = vector.shape_cast %110 : vector<1x16xf32> to vector<1x1x16xf32>
    tpu.vector_store %arg5[%c1_69, %c15_70, %c3_71], %113 {strides = array<i32>} : memref<2x24x128xf32, #tpu.memory_space<vmem>>, vector<1x1x16xf32>,
    %114 = vector.extract_strided_slice %3 {offsets = [0, 208], sizes = [1, 16], strides = [1, 1]} : vector<1x256xf32> to vector<1x16xf32>
    %c0_72 = arith.constant 0 : index
    %c16 = arith.constant 16 : index
    %c3_73 = arith.constant 3 : index
    %115 = vector.load %arg5[%c0_72, %c16, %c3_73] : memref<2x24x128xf32, #tpu.memory_space<vmem>>, vector<1x1x16xf32>
    %116 = vector.shape_cast %115 : vector<1x1x16xf32> to vector<1x16xf32>
    %117 = vector.shape_cast %114 : vector<1x16xf32> to vector<1x1x16xf32>
    tpu.vector_store %arg5[%c0_72, %c16, %c3_73], %117 {strides = array<i32>} : memref<2x24x128xf32, #tpu.memory_space<vmem>>, vector<1x1x16xf32>,
    %118 = vector.extract_strided_slice %7 {offsets = [0, 208], sizes = [1, 16], strides = [1, 1]} : vector<1x256xf32> to vector<1x16xf32>
    %c1_74 = arith.constant 1 : index
    %c16_75 = arith.constant 16 : index
    %c3_76 = arith.constant 3 : index
    %119 = vector.load %arg5[%c1_74, %c16_75, %c3_76] : memref<2x24x128xf32, #tpu.memory_space<vmem>>, vector<1x1x16xf32>
    %120 = vector.shape_cast %119 : vector<1x1x16xf32> to vector<1x16xf32>
    %121 = vector.shape_cast %118 : vector<1x16xf32> to vector<1x1x16xf32>
    tpu.vector_store %arg5[%c1_74, %c16_75, %c3_76], %121 {strides = array<i32>} : memref<2x24x128xf32, #tpu.memory_space<vmem>>, vector<1x1x16xf32>,
    %122 = vector.extract_strided_slice %3 {offsets = [0, 224], sizes = [1, 16], strides = [1, 1]} : vector<1x256xf32> to vector<1x16xf32>
    %c0_77 = arith.constant 0 : index
    %c17 = arith.constant 17 : index
    %c3_78 = arith.constant 3 : index
    %123 = vector.load %arg5[%c0_77, %c17, %c3_78] : memref<2x24x128xf32, #tpu.memory_space<vmem>>, vector<1x1x16xf32>
    %124 = vector.shape_cast %123 : vector<1x1x16xf32> to vector<1x16xf32>
    %125 = vector.shape_cast %122 : vector<1x16xf32> to vector<1x1x16xf32>
    tpu.vector_store %arg5[%c0_77, %c17, %c3_78], %125 {strides = array<i32>} : memref<2x24x128xf32, #tpu.memory_space<vmem>>, vector<1x1x16xf32>,
    %126 = vector.extract_strided_slice %7 {offsets = [0, 224], sizes = [1, 16], strides = [1, 1]} : vector<1x256xf32> to vector<1x16xf32>
    %c1_79 = arith.constant 1 : index
    %c17_80 = arith.constant 17 : index
    %c3_81 = arith.constant 3 : index
    %127 = vector.load %arg5[%c1_79, %c17_80, %c3_81] : memref<2x24x128xf32, #tpu.memory_space<vmem>>, vector<1x1x16xf32>
    %128 = vector.shape_cast %127 : vector<1x1x16xf32> to vector<1x16xf32>
    %129 = vector.shape_cast %126 : vector<1x16xf32> to vector<1x1x16xf32>
    tpu.vector_store %arg5[%c1_79, %c17_80, %c3_81], %129 {strides = array<i32>} : memref<2x24x128xf32, #tpu.memory_space<vmem>>, vector<1x1x16xf32>,
    %130 = vector.extract_strided_slice %3 {offsets = [0, 240], sizes = [1, 16], strides = [1, 1]} : vector<1x256xf32> to vector<1x16xf32>
    %c0_82 = arith.constant 0 : index
    %c18 = arith.constant 18 : index
    %c3_83 = arith.constant 3 : index
    %131 = vector.load %arg5[%c0_82, %c18, %c3_83] : memref<2x24x128xf32, #tpu.memory_space<vmem>>, vector<1x1x16xf32>
    %132 = vector.shape_cast %131 : vector<1x1x16xf32> to vector<1x16xf32>
    %133 = vector.shape_cast %130 : vector<1x16xf32> to vector<1x1x16xf32>
    tpu.vector_store %arg5[%c0_82, %c18, %c3_83], %133 {strides = array<i32>} : memref<2x24x128xf32, #tpu.memory_space<vmem>>, vector<1x1x16xf32>,
    %134 = vector.extract_strided_slice %7 {offsets = [0, 240], sizes = [1, 16], strides = [1, 1]} : vector<1x256xf32> to vector<1x16xf32>
    %c1_84 = arith.constant 1 : index
    %c18_85 = arith.constant 18 : index
    %c3_86 = arith.constant 3 : index
    %135 = vector.load %arg5[%c1_84, %c18_85, %c3_86] : memref<2x24x128xf32, #tpu.memory_space<vmem>>, vector<1x1x16xf32>
    %136 = vector.shape_cast %135 : vector<1x1x16xf32> to vector<1x16xf32>
    %137 = vector.shape_cast %134 : vector<1x16xf32> to vector<1x1x16xf32>
    tpu.vector_store %arg5[%c1_84, %c18_85, %c3_86], %137 {strides = array<i32>} : memref<2x24x128xf32, #tpu.memory_space<vmem>>, vector<1x1x16xf32>,
    %cst_87 = arith.constant 0.000000e+00 : f32
    %138 = vector.broadcast %cst_87 : f32 to vector<16x16xf32>
    %c0_88 = arith.constant 0 : index
    %c0_89 = arith.constant 0 : index
    %c0_90 = arith.constant 0 : index
    %139 = vector.load %arg5[%c0_88, %c0_89, %c0_90] : memref<2x24x128xf32, #tpu.memory_space<vmem>>, vector<1x22x16xf32>
    %140 = vector.shape_cast %139 : vector<1x22x16xf32> to vector<22x16xf32>
    %c0_91 = arith.constant 0 : index
    %141 = memref.load %arg2[%c0_91] : memref<98xf32, #tpu.memory_space<smem>>
    %142 = vector.extract_strided_slice %140 {offsets = [0, 0], sizes = [16, 16], strides = [1, 1]} : vector<22x16xf32> to vector<16x16xf32>
    %143 = vector.broadcast %141 : f32 to vector<16x16xf32>
    %144 = arith.mulf %143, %142 : vector<16x16xf32>
    %145 = arith.addf %138, %144 : vector<16x16xf32>
    %c7_92 = arith.constant 7 : index
    %146 = memref.load %arg2[%c7_92] : memref<98xf32, #tpu.memory_space<smem>>
    %147 = vector.extract_strided_slice %140 {offsets = [1, 0], sizes = [16, 16], strides = [1, 1]} : vector<22x16xf32> to vector<16x16xf32>
    %148 = vector.broadcast %146 : f32 to vector<16x16xf32>
    %149 = arith.mulf %148, %147 : vector<16x16xf32>
    %150 = arith.addf %145, %149 : vector<16x16xf32>
    %c14_93 = arith.constant 14 : index
    %151 = memref.load %arg2[%c14_93] : memref<98xf32, #tpu.memory_space<smem>>
    %152 = vector.extract_strided_slice %140 {offsets = [2, 0], sizes = [16, 16], strides = [1, 1]} : vector<22x16xf32> to vector<16x16xf32>
    %153 = vector.broadcast %151 : f32 to vector<16x16xf32>
    %154 = arith.mulf %153, %152 : vector<16x16xf32>
    %155 = arith.addf %150, %154 : vector<16x16xf32>
    %c21 = arith.constant 21 : index
    %156 = memref.load %arg2[%c21] : memref<98xf32, #tpu.memory_space<smem>>
    %157 = vector.extract_strided_slice %140 {offsets = [3, 0], sizes = [16, 16], strides = [1, 1]} : vector<22x16xf32> to vector<16x16xf32>
    %158 = vector.broadcast %156 : f32 to vector<16x16xf32>
    %159 = arith.mulf %158, %157 : vector<16x16xf32>
    %160 = arith.addf %155, %159 : vector<16x16xf32>
    %c28 = arith.constant 28 : index
    %161 = memref.load %arg2[%c28] : memref<98xf32, #tpu.memory_space<smem>>
    %162 = vector.extract_strided_slice %140 {offsets = [4, 0], sizes = [16, 16], strides = [1, 1]} : vector<22x16xf32> to vector<16x16xf32>
    %163 = vector.broadcast %161 : f32 to vector<16x16xf32>
    %164 = arith.mulf %163, %162 : vector<16x16xf32>
    %165 = arith.addf %160, %164 : vector<16x16xf32>
    %c35 = arith.constant 35 : index
    %166 = memref.load %arg2[%c35] : memref<98xf32, #tpu.memory_space<smem>>
    %167 = vector.extract_strided_slice %140 {offsets = [5, 0], sizes = [16, 16], strides = [1, 1]} : vector<22x16xf32> to vector<16x16xf32>
    %168 = vector.broadcast %166 : f32 to vector<16x16xf32>
    %169 = arith.mulf %168, %167 : vector<16x16xf32>
    %170 = arith.addf %165, %169 : vector<16x16xf32>
    %c42 = arith.constant 42 : index
    %171 = memref.load %arg2[%c42] : memref<98xf32, #tpu.memory_space<smem>>
    %172 = vector.extract_strided_slice %140 {offsets = [6, 0], sizes = [16, 16], strides = [1, 1]} : vector<22x16xf32> to vector<16x16xf32>
    %173 = vector.broadcast %171 : f32 to vector<16x16xf32>
    %174 = arith.mulf %173, %172 : vector<16x16xf32>
    %175 = arith.addf %170, %174 : vector<16x16xf32>
    %c0_94 = arith.constant 0 : index
    %c0_95 = arith.constant 0 : index
    %c1_96 = arith.constant 1 : index
    %176 = vector.load %arg5[%c0_94, %c0_95, %c1_96] : memref<2x24x128xf32, #tpu.memory_space<vmem>>, vector<1x22x16xf32>
    %177 = vector.shape_cast %176 : vector<1x22x16xf32> to vector<22x16xf32>
    %c1_97 = arith.constant 1 : index
    %178 = memref.load %arg2[%c1_97] : memref<98xf32, #tpu.memory_space<smem>>
    %179 = vector.extract_strided_slice %177 {offsets = [0, 0], sizes = [16, 16], strides = [1, 1]} : vector<22x16xf32> to vector<16x16xf32>
    %180 = vector.broadcast %178 : f32 to vector<16x16xf32>
    %181 = arith.mulf %180, %179 : vector<16x16xf32>
    %182 = arith.addf %175, %181 : vector<16x16xf32>
    %c8_98 = arith.constant 8 : index
    %183 = memref.load %arg2[%c8_98] : memref<98xf32, #tpu.memory_space<smem>>
    %184 = vector.extract_strided_slice %177 {offsets = [1, 0], sizes = [16, 16], strides = [1, 1]} : vector<22x16xf32> to vector<16x16xf32>
    %185 = vector.broadcast %183 : f32 to vector<16x16xf32>
    %186 = arith.mulf %185, %184 : vector<16x16xf32>
    %187 = arith.addf %182, %186 : vector<16x16xf32>
    %c15_99 = arith.constant 15 : index
    %188 = memref.load %arg2[%c15_99] : memref<98xf32, #tpu.memory_space<smem>>
    %189 = vector.extract_strided_slice %177 {offsets = [2, 0], sizes = [16, 16], strides = [1, 1]} : vector<22x16xf32> to vector<16x16xf32>
    %190 = vector.broadcast %188 : f32 to vector<16x16xf32>
    %191 = arith.mulf %190, %189 : vector<16x16xf32>
    %192 = arith.addf %187, %191 : vector<16x16xf32>
    %c22 = arith.constant 22 : index
    %193 = memref.load %arg2[%c22] : memref<98xf32, #tpu.memory_space<smem>>
    %194 = vector.extract_strided_slice %177 {offsets = [3, 0], sizes = [16, 16], strides = [1, 1]} : vector<22x16xf32> to vector<16x16xf32>
    %195 = vector.broadcast %193 : f32 to vector<16x16xf32>
    %196 = arith.mulf %195, %194 : vector<16x16xf32>
    %197 = arith.addf %192, %196 : vector<16x16xf32>
    %c29 = arith.constant 29 : index
    %198 = memref.load %arg2[%c29] : memref<98xf32, #tpu.memory_space<smem>>
    %199 = vector.extract_strided_slice %177 {offsets = [4, 0], sizes = [16, 16], strides = [1, 1]} : vector<22x16xf32> to vector<16x16xf32>
    %200 = vector.broadcast %198 : f32 to vector<16x16xf32>
    %201 = arith.mulf %200, %199 : vector<16x16xf32>
    %202 = arith.addf %197, %201 : vector<16x16xf32>
    %c36 = arith.constant 36 : index
    %203 = memref.load %arg2[%c36] : memref<98xf32, #tpu.memory_space<smem>>
    %204 = vector.extract_strided_slice %177 {offsets = [5, 0], sizes = [16, 16], strides = [1, 1]} : vector<22x16xf32> to vector<16x16xf32>
    %205 = vector.broadcast %203 : f32 to vector<16x16xf32>
    %206 = arith.mulf %205, %204 : vector<16x16xf32>
    %207 = arith.addf %202, %206 : vector<16x16xf32>
    %c43 = arith.constant 43 : index
    %208 = memref.load %arg2[%c43] : memref<98xf32, #tpu.memory_space<smem>>
    %209 = vector.extract_strided_slice %177 {offsets = [6, 0], sizes = [16, 16], strides = [1, 1]} : vector<22x16xf32> to vector<16x16xf32>
    %210 = vector.broadcast %208 : f32 to vector<16x16xf32>
    %211 = arith.mulf %210, %209 : vector<16x16xf32>
    %212 = arith.addf %207, %211 : vector<16x16xf32>
    %c0_100 = arith.constant 0 : index
    %c0_101 = arith.constant 0 : index
    %c2 = arith.constant 2 : index
    %213 = vector.load %arg5[%c0_100, %c0_101, %c2] : memref<2x24x128xf32, #tpu.memory_space<vmem>>, vector<1x22x16xf32>
    %214 = vector.shape_cast %213 : vector<1x22x16xf32> to vector<22x16xf32>
    %c2_102 = arith.constant 2 : index
    %215 = memref.load %arg2[%c2_102] : memref<98xf32, #tpu.memory_space<smem>>
    %216 = vector.extract_strided_slice %214 {offsets = [0, 0], sizes = [16, 16], strides = [1, 1]} : vector<22x16xf32> to vector<16x16xf32>
    %217 = vector.broadcast %215 : f32 to vector<16x16xf32>
    %218 = arith.mulf %217, %216 : vector<16x16xf32>
    %219 = arith.addf %212, %218 : vector<16x16xf32>
    %c9_103 = arith.constant 9 : index
    %220 = memref.load %arg2[%c9_103] : memref<98xf32, #tpu.memory_space<smem>>
    %221 = vector.extract_strided_slice %214 {offsets = [1, 0], sizes = [16, 16], strides = [1, 1]} : vector<22x16xf32> to vector<16x16xf32>
    %222 = vector.broadcast %220 : f32 to vector<16x16xf32>
    %223 = arith.mulf %222, %221 : vector<16x16xf32>
    %224 = arith.addf %219, %223 : vector<16x16xf32>
    %c16_104 = arith.constant 16 : index
    %225 = memref.load %arg2[%c16_104] : memref<98xf32, #tpu.memory_space<smem>>
    %226 = vector.extract_strided_slice %214 {offsets = [2, 0], sizes = [16, 16], strides = [1, 1]} : vector<22x16xf32> to vector<16x16xf32>
    %227 = vector.broadcast %225 : f32 to vector<16x16xf32>
    %228 = arith.mulf %227, %226 : vector<16x16xf32>
    %229 = arith.addf %224, %228 : vector<16x16xf32>
    %c23 = arith.constant 23 : index
    %230 = memref.load %arg2[%c23] : memref<98xf32, #tpu.memory_space<smem>>
    %231 = vector.extract_strided_slice %214 {offsets = [3, 0], sizes = [16, 16], strides = [1, 1]} : vector<22x16xf32> to vector<16x16xf32>
    %232 = vector.broadcast %230 : f32 to vector<16x16xf32>
    %233 = arith.mulf %232, %231 : vector<16x16xf32>
    %234 = arith.addf %229, %233 : vector<16x16xf32>
    %c30 = arith.constant 30 : index
    %235 = memref.load %arg2[%c30] : memref<98xf32, #tpu.memory_space<smem>>
    %236 = vector.extract_strided_slice %214 {offsets = [4, 0], sizes = [16, 16], strides = [1, 1]} : vector<22x16xf32> to vector<16x16xf32>
    %237 = vector.broadcast %235 : f32 to vector<16x16xf32>
    %238 = arith.mulf %237, %236 : vector<16x16xf32>
    %239 = arith.addf %234, %238 : vector<16x16xf32>
    %c37 = arith.constant 37 : index
    %240 = memref.load %arg2[%c37] : memref<98xf32, #tpu.memory_space<smem>>
    %241 = vector.extract_strided_slice %214 {offsets = [5, 0], sizes = [16, 16], strides = [1, 1]} : vector<22x16xf32> to vector<16x16xf32>
    %242 = vector.broadcast %240 : f32 to vector<16x16xf32>
    %243 = arith.mulf %242, %241 : vector<16x16xf32>
    %244 = arith.addf %239, %243 : vector<16x16xf32>
    %c44 = arith.constant 44 : index
    %245 = memref.load %arg2[%c44] : memref<98xf32, #tpu.memory_space<smem>>
    %246 = vector.extract_strided_slice %214 {offsets = [6, 0], sizes = [16, 16], strides = [1, 1]} : vector<22x16xf32> to vector<16x16xf32>
    %247 = vector.broadcast %245 : f32 to vector<16x16xf32>
    %248 = arith.mulf %247, %246 : vector<16x16xf32>
    %249 = arith.addf %244, %248 : vector<16x16xf32>
    %c0_105 = arith.constant 0 : index
    %c0_106 = arith.constant 0 : index
    %c3_107 = arith.constant 3 : index
    %250 = vector.load %arg5[%c0_105, %c0_106, %c3_107] : memref<2x24x128xf32, #tpu.memory_space<vmem>>, vector<1x22x16xf32>
    %251 = vector.shape_cast %250 : vector<1x22x16xf32> to vector<22x16xf32>
    %c3_108 = arith.constant 3 : index
    %252 = memref.load %arg2[%c3_108] : memref<98xf32, #tpu.memory_space<smem>>
    %253 = vector.extract_strided_slice %251 {offsets = [0, 0], sizes = [16, 16], strides = [1, 1]} : vector<22x16xf32> to vector<16x16xf32>
    %254 = vector.broadcast %252 : f32 to vector<16x16xf32>
    %255 = arith.mulf %254, %253 : vector<16x16xf32>
    %256 = arith.addf %249, %255 : vector<16x16xf32>
    %c10_109 = arith.constant 10 : index
    %257 = memref.load %arg2[%c10_109] : memref<98xf32, #tpu.memory_space<smem>>
    %258 = vector.extract_strided_slice %251 {offsets = [1, 0], sizes = [16, 16], strides = [1, 1]} : vector<22x16xf32> to vector<16x16xf32>
    %259 = vector.broadcast %257 : f32 to vector<16x16xf32>
    %260 = arith.mulf %259, %258 : vector<16x16xf32>
    %261 = arith.addf %256, %260 : vector<16x16xf32>
    %c17_110 = arith.constant 17 : index
    %262 = memref.load %arg2[%c17_110] : memref<98xf32, #tpu.memory_space<smem>>
    %263 = vector.extract_strided_slice %251 {offsets = [2, 0], sizes = [16, 16], strides = [1, 1]} : vector<22x16xf32> to vector<16x16xf32>
    %264 = vector.broadcast %262 : f32 to vector<16x16xf32>
    %265 = arith.mulf %264, %263 : vector<16x16xf32>
    %266 = arith.addf %261, %265 : vector<16x16xf32>
    %c24 = arith.constant 24 : index
    %267 = memref.load %arg2[%c24] : memref<98xf32, #tpu.memory_space<smem>>
    %268 = vector.extract_strided_slice %251 {offsets = [3, 0], sizes = [16, 16], strides = [1, 1]} : vector<22x16xf32> to vector<16x16xf32>
    %269 = vector.broadcast %267 : f32 to vector<16x16xf32>
    %270 = arith.mulf %269, %268 : vector<16x16xf32>
    %271 = arith.addf %266, %270 : vector<16x16xf32>
    %c31 = arith.constant 31 : index
    %272 = memref.load %arg2[%c31] : memref<98xf32, #tpu.memory_space<smem>>
    %273 = vector.extract_strided_slice %251 {offsets = [4, 0], sizes = [16, 16], strides = [1, 1]} : vector<22x16xf32> to vector<16x16xf32>
    %274 = vector.broadcast %272 : f32 to vector<16x16xf32>
    %275 = arith.mulf %274, %273 : vector<16x16xf32>
    %276 = arith.addf %271, %275 : vector<16x16xf32>
    %c38 = arith.constant 38 : index
    %277 = memref.load %arg2[%c38] : memref<98xf32, #tpu.memory_space<smem>>
    %278 = vector.extract_strided_slice %251 {offsets = [5, 0], sizes = [16, 16], strides = [1, 1]} : vector<22x16xf32> to vector<16x16xf32>
    %279 = vector.broadcast %277 : f32 to vector<16x16xf32>
    %280 = arith.mulf %279, %278 : vector<16x16xf32>
    %281 = arith.addf %276, %280 : vector<16x16xf32>
    %c45 = arith.constant 45 : index
    %282 = memref.load %arg2[%c45] : memref<98xf32, #tpu.memory_space<smem>>
    %283 = vector.extract_strided_slice %251 {offsets = [6, 0], sizes = [16, 16], strides = [1, 1]} : vector<22x16xf32> to vector<16x16xf32>
    %284 = vector.broadcast %282 : f32 to vector<16x16xf32>
    %285 = arith.mulf %284, %283 : vector<16x16xf32>
    %286 = arith.addf %281, %285 : vector<16x16xf32>
    %c0_111 = arith.constant 0 : index
    %c0_112 = arith.constant 0 : index
    %c4_113 = arith.constant 4 : index
    %287 = vector.load %arg5[%c0_111, %c0_112, %c4_113] : memref<2x24x128xf32, #tpu.memory_space<vmem>>, vector<1x22x16xf32>
    %288 = vector.shape_cast %287 : vector<1x22x16xf32> to vector<22x16xf32>
    %c4_114 = arith.constant 4 : index
    %289 = memref.load %arg2[%c4_114] : memref<98xf32, #tpu.memory_space<smem>>
    %290 = vector.extract_strided_slice %288 {offsets = [0, 0], sizes = [16, 16], strides = [1, 1]} : vector<22x16xf32> to vector<16x16xf32>
    %291 = vector.broadcast %289 : f32 to vector<16x16xf32>
    %292 = arith.mulf %291, %290 : vector<16x16xf32>
    %293 = arith.addf %286, %292 : vector<16x16xf32>
    %c11_115 = arith.constant 11 : index
    %294 = memref.load %arg2[%c11_115] : memref<98xf32, #tpu.memory_space<smem>>
    %295 = vector.extract_strided_slice %288 {offsets = [1, 0], sizes = [16, 16], strides = [1, 1]} : vector<22x16xf32> to vector<16x16xf32>
    %296 = vector.broadcast %294 : f32 to vector<16x16xf32>
    %297 = arith.mulf %296, %295 : vector<16x16xf32>
    %298 = arith.addf %293, %297 : vector<16x16xf32>
    %c18_116 = arith.constant 18 : index
    %299 = memref.load %arg2[%c18_116] : memref<98xf32, #tpu.memory_space<smem>>
    %300 = vector.extract_strided_slice %288 {offsets = [2, 0], sizes = [16, 16], strides = [1, 1]} : vector<22x16xf32> to vector<16x16xf32>
    %301 = vector.broadcast %299 : f32 to vector<16x16xf32>
    %302 = arith.mulf %301, %300 : vector<16x16xf32>
    %303 = arith.addf %298, %302 : vector<16x16xf32>
    %c25 = arith.constant 25 : index
    %304 = memref.load %arg2[%c25] : memref<98xf32, #tpu.memory_space<smem>>
    %305 = vector.extract_strided_slice %288 {offsets = [3, 0], sizes = [16, 16], strides = [1, 1]} : vector<22x16xf32> to vector<16x16xf32>
    %306 = vector.broadcast %304 : f32 to vector<16x16xf32>
    %307 = arith.mulf %306, %305 : vector<16x16xf32>
    %308 = arith.addf %303, %307 : vector<16x16xf32>
    %c32 = arith.constant 32 : index
    %309 = memref.load %arg2[%c32] : memref<98xf32, #tpu.memory_space<smem>>
    %310 = vector.extract_strided_slice %288 {offsets = [4, 0], sizes = [16, 16], strides = [1, 1]} : vector<22x16xf32> to vector<16x16xf32>
    %311 = vector.broadcast %309 : f32 to vector<16x16xf32>
    %312 = arith.mulf %311, %310 : vector<16x16xf32>
    %313 = arith.addf %308, %312 : vector<16x16xf32>
    %c39 = arith.constant 39 : index
    %314 = memref.load %arg2[%c39] : memref<98xf32, #tpu.memory_space<smem>>
    %315 = vector.extract_strided_slice %288 {offsets = [5, 0], sizes = [16, 16], strides = [1, 1]} : vector<22x16xf32> to vector<16x16xf32>
    %316 = vector.broadcast %314 : f32 to vector<16x16xf32>
    %317 = arith.mulf %316, %315 : vector<16x16xf32>
    %318 = arith.addf %313, %317 : vector<16x16xf32>
    %c46 = arith.constant 46 : index
    %319 = memref.load %arg2[%c46] : memref<98xf32, #tpu.memory_space<smem>>
    %320 = vector.extract_strided_slice %288 {offsets = [6, 0], sizes = [16, 16], strides = [1, 1]} : vector<22x16xf32> to vector<16x16xf32>
    %321 = vector.broadcast %319 : f32 to vector<16x16xf32>
    %322 = arith.mulf %321, %320 : vector<16x16xf32>
    %323 = arith.addf %318, %322 : vector<16x16xf32>
    %c0_117 = arith.constant 0 : index
    %c0_118 = arith.constant 0 : index
    %c5_119 = arith.constant 5 : index
    %324 = vector.load %arg5[%c0_117, %c0_118, %c5_119] : memref<2x24x128xf32, #tpu.memory_space<vmem>>, vector<1x22x16xf32>
    %325 = vector.shape_cast %324 : vector<1x22x16xf32> to vector<22x16xf32>
    %c5_120 = arith.constant 5 : index
    %326 = memref.load %arg2[%c5_120] : memref<98xf32, #tpu.memory_space<smem>>
    %327 = vector.extract_strided_slice %325 {offsets = [0, 0], sizes = [16, 16], strides = [1, 1]} : vector<22x16xf32> to vector<16x16xf32>
    %328 = vector.broadcast %326 : f32 to vector<16x16xf32>
    %329 = arith.mulf %328, %327 : vector<16x16xf32>
    %330 = arith.addf %323, %329 : vector<16x16xf32>
    %c12_121 = arith.constant 12 : index
    %331 = memref.load %arg2[%c12_121] : memref<98xf32, #tpu.memory_space<smem>>
    %332 = vector.extract_strided_slice %325 {offsets = [1, 0], sizes = [16, 16], strides = [1, 1]} : vector<22x16xf32> to vector<16x16xf32>
    %333 = vector.broadcast %331 : f32 to vector<16x16xf32>
    %334 = arith.mulf %333, %332 : vector<16x16xf32>
    %335 = arith.addf %330, %334 : vector<16x16xf32>
    %c19 = arith.constant 19 : index
    %336 = memref.load %arg2[%c19] : memref<98xf32, #tpu.memory_space<smem>>
    %337 = vector.extract_strided_slice %325 {offsets = [2, 0], sizes = [16, 16], strides = [1, 1]} : vector<22x16xf32> to vector<16x16xf32>
    %338 = vector.broadcast %336 : f32 to vector<16x16xf32>
    %339 = arith.mulf %338, %337 : vector<16x16xf32>
    %340 = arith.addf %335, %339 : vector<16x16xf32>
    %c26 = arith.constant 26 : index
    %341 = memref.load %arg2[%c26] : memref<98xf32, #tpu.memory_space<smem>>
    %342 = vector.extract_strided_slice %325 {offsets = [3, 0], sizes = [16, 16], strides = [1, 1]} : vector<22x16xf32> to vector<16x16xf32>
    %343 = vector.broadcast %341 : f32 to vector<16x16xf32>
    %344 = arith.mulf %343, %342 : vector<16x16xf32>
    %345 = arith.addf %340, %344 : vector<16x16xf32>
    %c33 = arith.constant 33 : index
    %346 = memref.load %arg2[%c33] : memref<98xf32, #tpu.memory_space<smem>>
    %347 = vector.extract_strided_slice %325 {offsets = [4, 0], sizes = [16, 16], strides = [1, 1]} : vector<22x16xf32> to vector<16x16xf32>
    %348 = vector.broadcast %346 : f32 to vector<16x16xf32>
    %349 = arith.mulf %348, %347 : vector<16x16xf32>
    %350 = arith.addf %345, %349 : vector<16x16xf32>
    %c40 = arith.constant 40 : index
    %351 = memref.load %arg2[%c40] : memref<98xf32, #tpu.memory_space<smem>>
    %352 = vector.extract_strided_slice %325 {offsets = [5, 0], sizes = [16, 16], strides = [1, 1]} : vector<22x16xf32> to vector<16x16xf32>
    %353 = vector.broadcast %351 : f32 to vector<16x16xf32>
    %354 = arith.mulf %353, %352 : vector<16x16xf32>
    %355 = arith.addf %350, %354 : vector<16x16xf32>
    %c47 = arith.constant 47 : index
    %356 = memref.load %arg2[%c47] : memref<98xf32, #tpu.memory_space<smem>>
    %357 = vector.extract_strided_slice %325 {offsets = [6, 0], sizes = [16, 16], strides = [1, 1]} : vector<22x16xf32> to vector<16x16xf32>
    %358 = vector.broadcast %356 : f32 to vector<16x16xf32>
    %359 = arith.mulf %358, %357 : vector<16x16xf32>
    %360 = arith.addf %355, %359 : vector<16x16xf32>
    %c0_122 = arith.constant 0 : index
    %c0_123 = arith.constant 0 : index
    %c6_124 = arith.constant 6 : index
    %361 = vector.load %arg5[%c0_122, %c0_123, %c6_124] : memref<2x24x128xf32, #tpu.memory_space<vmem>>, vector<1x22x16xf32>
    %362 = vector.shape_cast %361 : vector<1x22x16xf32> to vector<22x16xf32>
    %c6_125 = arith.constant 6 : index
    %363 = memref.load %arg2[%c6_125] : memref<98xf32, #tpu.memory_space<smem>>
    %364 = vector.extract_strided_slice %362 {offsets = [0, 0], sizes = [16, 16], strides = [1, 1]} : vector<22x16xf32> to vector<16x16xf32>
    %365 = vector.broadcast %363 : f32 to vector<16x16xf32>
    %366 = arith.mulf %365, %364 : vector<16x16xf32>
    %367 = arith.addf %360, %366 : vector<16x16xf32>
    %c13_126 = arith.constant 13 : index
    %368 = memref.load %arg2[%c13_126] : memref<98xf32, #tpu.memory_space<smem>>
    %369 = vector.extract_strided_slice %362 {offsets = [1, 0], sizes = [16, 16], strides = [1, 1]} : vector<22x16xf32> to vector<16x16xf32>
    %370 = vector.broadcast %368 : f32 to vector<16x16xf32>
    %371 = arith.mulf %370, %369 : vector<16x16xf32>
    %372 = arith.addf %367, %371 : vector<16x16xf32>
    %c20 = arith.constant 20 : index
    %373 = memref.load %arg2[%c20] : memref<98xf32, #tpu.memory_space<smem>>
    %374 = vector.extract_strided_slice %362 {offsets = [2, 0], sizes = [16, 16], strides = [1, 1]} : vector<22x16xf32> to vector<16x16xf32>
    %375 = vector.broadcast %373 : f32 to vector<16x16xf32>
    %376 = arith.mulf %375, %374 : vector<16x16xf32>
    %377 = arith.addf %372, %376 : vector<16x16xf32>
    %c27 = arith.constant 27 : index
    %378 = memref.load %arg2[%c27] : memref<98xf32, #tpu.memory_space<smem>>
    %379 = vector.extract_strided_slice %362 {offsets = [3, 0], sizes = [16, 16], strides = [1, 1]} : vector<22x16xf32> to vector<16x16xf32>
    %380 = vector.broadcast %378 : f32 to vector<16x16xf32>
    %381 = arith.mulf %380, %379 : vector<16x16xf32>
    %382 = arith.addf %377, %381 : vector<16x16xf32>
    %c34 = arith.constant 34 : index
    %383 = memref.load %arg2[%c34] : memref<98xf32, #tpu.memory_space<smem>>
    %384 = vector.extract_strided_slice %362 {offsets = [4, 0], sizes = [16, 16], strides = [1, 1]} : vector<22x16xf32> to vector<16x16xf32>
    %385 = vector.broadcast %383 : f32 to vector<16x16xf32>
    %386 = arith.mulf %385, %384 : vector<16x16xf32>
    %387 = arith.addf %382, %386 : vector<16x16xf32>
    %c41 = arith.constant 41 : index
    %388 = memref.load %arg2[%c41] : memref<98xf32, #tpu.memory_space<smem>>
    %389 = vector.extract_strided_slice %362 {offsets = [5, 0], sizes = [16, 16], strides = [1, 1]} : vector<22x16xf32> to vector<16x16xf32>
    %390 = vector.broadcast %388 : f32 to vector<16x16xf32>
    %391 = arith.mulf %390, %389 : vector<16x16xf32>
    %392 = arith.addf %387, %391 : vector<16x16xf32>
    %c48 = arith.constant 48 : index
    %393 = memref.load %arg2[%c48] : memref<98xf32, #tpu.memory_space<smem>>
    %394 = vector.extract_strided_slice %362 {offsets = [6, 0], sizes = [16, 16], strides = [1, 1]} : vector<22x16xf32> to vector<16x16xf32>
    %395 = vector.broadcast %393 : f32 to vector<16x16xf32>
    %396 = arith.mulf %395, %394 : vector<16x16xf32>
    %397 = arith.addf %392, %396 : vector<16x16xf32>
    %c1_127 = arith.constant 1 : index
    %c0_128 = arith.constant 0 : index
    %c0_129 = arith.constant 0 : index
    %398 = vector.load %arg5[%c1_127, %c0_128, %c0_129] : memref<2x24x128xf32, #tpu.memory_space<vmem>>, vector<1x22x16xf32>
    %399 = vector.shape_cast %398 : vector<1x22x16xf32> to vector<22x16xf32>
    %c49 = arith.constant 49 : index
    %400 = memref.load %arg2[%c49] : memref<98xf32, #tpu.memory_space<smem>>
    %401 = vector.extract_strided_slice %399 {offsets = [0, 0], sizes = [16, 16], strides = [1, 1]} : vector<22x16xf32> to vector<16x16xf32>
    %402 = vector.broadcast %400 : f32 to vector<16x16xf32>
    %403 = arith.mulf %402, %401 : vector<16x16xf32>
    %404 = arith.addf %397, %403 : vector<16x16xf32>
    %c56 = arith.constant 56 : index
    %405 = memref.load %arg2[%c56] : memref<98xf32, #tpu.memory_space<smem>>
    %406 = vector.extract_strided_slice %399 {offsets = [1, 0], sizes = [16, 16], strides = [1, 1]} : vector<22x16xf32> to vector<16x16xf32>
    %407 = vector.broadcast %405 : f32 to vector<16x16xf32>
    %408 = arith.mulf %407, %406 : vector<16x16xf32>
    %409 = arith.addf %404, %408 : vector<16x16xf32>
    %c63 = arith.constant 63 : index
    %410 = memref.load %arg2[%c63] : memref<98xf32, #tpu.memory_space<smem>>
    %411 = vector.extract_strided_slice %399 {offsets = [2, 0], sizes = [16, 16], strides = [1, 1]} : vector<22x16xf32> to vector<16x16xf32>
    %412 = vector.broadcast %410 : f32 to vector<16x16xf32>
    %413 = arith.mulf %412, %411 : vector<16x16xf32>
    %414 = arith.addf %409, %413 : vector<16x16xf32>
    %c70 = arith.constant 70 : index
    %415 = memref.load %arg2[%c70] : memref<98xf32, #tpu.memory_space<smem>>
    %416 = vector.extract_strided_slice %399 {offsets = [3, 0], sizes = [16, 16], strides = [1, 1]} : vector<22x16xf32> to vector<16x16xf32>
    %417 = vector.broadcast %415 : f32 to vector<16x16xf32>
    %418 = arith.mulf %417, %416 : vector<16x16xf32>
    %419 = arith.addf %414, %418 : vector<16x16xf32>
    %c77 = arith.constant 77 : index
    %420 = memref.load %arg2[%c77] : memref<98xf32, #tpu.memory_space<smem>>
    %421 = vector.extract_strided_slice %399 {offsets = [4, 0], sizes = [16, 16], strides = [1, 1]} : vector<22x16xf32> to vector<16x16xf32>
    %422 = vector.broadcast %420 : f32 to vector<16x16xf32>
    %423 = arith.mulf %422, %421 : vector<16x16xf32>
    %424 = arith.addf %419, %423 : vector<16x16xf32>
    %c84 = arith.constant 84 : index
    %425 = memref.load %arg2[%c84] : memref<98xf32, #tpu.memory_space<smem>>
    %426 = vector.extract_strided_slice %399 {offsets = [5, 0], sizes = [16, 16], strides = [1, 1]} : vector<22x16xf32> to vector<16x16xf32>
    %427 = vector.broadcast %425 : f32 to vector<16x16xf32>
    %428 = arith.mulf %427, %426 : vector<16x16xf32>
    %429 = arith.addf %424, %428 : vector<16x16xf32>
    %c91 = arith.constant 91 : index
    %430 = memref.load %arg2[%c91] : memref<98xf32, #tpu.memory_space<smem>>
    %431 = vector.extract_strided_slice %399 {offsets = [6, 0], sizes = [16, 16], strides = [1, 1]} : vector<22x16xf32> to vector<16x16xf32>
    %432 = vector.broadcast %430 : f32 to vector<16x16xf32>
    %433 = arith.mulf %432, %431 : vector<16x16xf32>
    %434 = arith.addf %429, %433 : vector<16x16xf32>
    %c1_130 = arith.constant 1 : index
    %c0_131 = arith.constant 0 : index
    %c1_132 = arith.constant 1 : index
    %435 = vector.load %arg5[%c1_130, %c0_131, %c1_132] : memref<2x24x128xf32, #tpu.memory_space<vmem>>, vector<1x22x16xf32>
    %436 = vector.shape_cast %435 : vector<1x22x16xf32> to vector<22x16xf32>
    %c50 = arith.constant 50 : index
    %437 = memref.load %arg2[%c50] : memref<98xf32, #tpu.memory_space<smem>>
    %438 = vector.extract_strided_slice %436 {offsets = [0, 0], sizes = [16, 16], strides = [1, 1]} : vector<22x16xf32> to vector<16x16xf32>
    %439 = vector.broadcast %437 : f32 to vector<16x16xf32>
    %440 = arith.mulf %439, %438 : vector<16x16xf32>
    %441 = arith.addf %434, %440 : vector<16x16xf32>
    %c57 = arith.constant 57 : index
    %442 = memref.load %arg2[%c57] : memref<98xf32, #tpu.memory_space<smem>>
    %443 = vector.extract_strided_slice %436 {offsets = [1, 0], sizes = [16, 16], strides = [1, 1]} : vector<22x16xf32> to vector<16x16xf32>
    %444 = vector.broadcast %442 : f32 to vector<16x16xf32>
    %445 = arith.mulf %444, %443 : vector<16x16xf32>
    %446 = arith.addf %441, %445 : vector<16x16xf32>
    %c64 = arith.constant 64 : index
    %447 = memref.load %arg2[%c64] : memref<98xf32, #tpu.memory_space<smem>>
    %448 = vector.extract_strided_slice %436 {offsets = [2, 0], sizes = [16, 16], strides = [1, 1]} : vector<22x16xf32> to vector<16x16xf32>
    %449 = vector.broadcast %447 : f32 to vector<16x16xf32>
    %450 = arith.mulf %449, %448 : vector<16x16xf32>
    %451 = arith.addf %446, %450 : vector<16x16xf32>
    %c71 = arith.constant 71 : index
    %452 = memref.load %arg2[%c71] : memref<98xf32, #tpu.memory_space<smem>>
    %453 = vector.extract_strided_slice %436 {offsets = [3, 0], sizes = [16, 16], strides = [1, 1]} : vector<22x16xf32> to vector<16x16xf32>
    %454 = vector.broadcast %452 : f32 to vector<16x16xf32>
    %455 = arith.mulf %454, %453 : vector<16x16xf32>
    %456 = arith.addf %451, %455 : vector<16x16xf32>
    %c78 = arith.constant 78 : index
    %457 = memref.load %arg2[%c78] : memref<98xf32, #tpu.memory_space<smem>>
    %458 = vector.extract_strided_slice %436 {offsets = [4, 0], sizes = [16, 16], strides = [1, 1]} : vector<22x16xf32> to vector<16x16xf32>
    %459 = vector.broadcast %457 : f32 to vector<16x16xf32>
    %460 = arith.mulf %459, %458 : vector<16x16xf32>
    %461 = arith.addf %456, %460 : vector<16x16xf32>
    %c85 = arith.constant 85 : index
    %462 = memref.load %arg2[%c85] : memref<98xf32, #tpu.memory_space<smem>>
    %463 = vector.extract_strided_slice %436 {offsets = [5, 0], sizes = [16, 16], strides = [1, 1]} : vector<22x16xf32> to vector<16x16xf32>
    %464 = vector.broadcast %462 : f32 to vector<16x16xf32>
    %465 = arith.mulf %464, %463 : vector<16x16xf32>
    %466 = arith.addf %461, %465 : vector<16x16xf32>
    %c92 = arith.constant 92 : index
    %467 = memref.load %arg2[%c92] : memref<98xf32, #tpu.memory_space<smem>>
    %468 = vector.extract_strided_slice %436 {offsets = [6, 0], sizes = [16, 16], strides = [1, 1]} : vector<22x16xf32> to vector<16x16xf32>
    %469 = vector.broadcast %467 : f32 to vector<16x16xf32>
    %470 = arith.mulf %469, %468 : vector<16x16xf32>
    %471 = arith.addf %466, %470 : vector<16x16xf32>
    %c1_133 = arith.constant 1 : index
    %c0_134 = arith.constant 0 : index
    %c2_135 = arith.constant 2 : index
    %472 = vector.load %arg5[%c1_133, %c0_134, %c2_135] : memref<2x24x128xf32, #tpu.memory_space<vmem>>, vector<1x22x16xf32>
    %473 = vector.shape_cast %472 : vector<1x22x16xf32> to vector<22x16xf32>
    %c51 = arith.constant 51 : index
    %474 = memref.load %arg2[%c51] : memref<98xf32, #tpu.memory_space<smem>>
    %475 = vector.extract_strided_slice %473 {offsets = [0, 0], sizes = [16, 16], strides = [1, 1]} : vector<22x16xf32> to vector<16x16xf32>
    %476 = vector.broadcast %474 : f32 to vector<16x16xf32>
    %477 = arith.mulf %476, %475 : vector<16x16xf32>
    %478 = arith.addf %471, %477 : vector<16x16xf32>
    %c58 = arith.constant 58 : index
    %479 = memref.load %arg2[%c58] : memref<98xf32, #tpu.memory_space<smem>>
    %480 = vector.extract_strided_slice %473 {offsets = [1, 0], sizes = [16, 16], strides = [1, 1]} : vector<22x16xf32> to vector<16x16xf32>
    %481 = vector.broadcast %479 : f32 to vector<16x16xf32>
    %482 = arith.mulf %481, %480 : vector<16x16xf32>
    %483 = arith.addf %478, %482 : vector<16x16xf32>
    %c65 = arith.constant 65 : index
    %484 = memref.load %arg2[%c65] : memref<98xf32, #tpu.memory_space<smem>>
    %485 = vector.extract_strided_slice %473 {offsets = [2, 0], sizes = [16, 16], strides = [1, 1]} : vector<22x16xf32> to vector<16x16xf32>
    %486 = vector.broadcast %484 : f32 to vector<16x16xf32>
    %487 = arith.mulf %486, %485 : vector<16x16xf32>
    %488 = arith.addf %483, %487 : vector<16x16xf32>
    %c72 = arith.constant 72 : index
    %489 = memref.load %arg2[%c72] : memref<98xf32, #tpu.memory_space<smem>>
    %490 = vector.extract_strided_slice %473 {offsets = [3, 0], sizes = [16, 16], strides = [1, 1]} : vector<22x16xf32> to vector<16x16xf32>
    %491 = vector.broadcast %489 : f32 to vector<16x16xf32>
    %492 = arith.mulf %491, %490 : vector<16x16xf32>
    %493 = arith.addf %488, %492 : vector<16x16xf32>
    %c79 = arith.constant 79 : index
    %494 = memref.load %arg2[%c79] : memref<98xf32, #tpu.memory_space<smem>>
    %495 = vector.extract_strided_slice %473 {offsets = [4, 0], sizes = [16, 16], strides = [1, 1]} : vector<22x16xf32> to vector<16x16xf32>
    %496 = vector.broadcast %494 : f32 to vector<16x16xf32>
    %497 = arith.mulf %496, %495 : vector<16x16xf32>
    %498 = arith.addf %493, %497 : vector<16x16xf32>
    %c86 = arith.constant 86 : index
    %499 = memref.load %arg2[%c86] : memref<98xf32, #tpu.memory_space<smem>>
    %500 = vector.extract_strided_slice %473 {offsets = [5, 0], sizes = [16, 16], strides = [1, 1]} : vector<22x16xf32> to vector<16x16xf32>
    %501 = vector.broadcast %499 : f32 to vector<16x16xf32>
    %502 = arith.mulf %501, %500 : vector<16x16xf32>
    %503 = arith.addf %498, %502 : vector<16x16xf32>
    %c93 = arith.constant 93 : index
    %504 = memref.load %arg2[%c93] : memref<98xf32, #tpu.memory_space<smem>>
    %505 = vector.extract_strided_slice %473 {offsets = [6, 0], sizes = [16, 16], strides = [1, 1]} : vector<22x16xf32> to vector<16x16xf32>
    %506 = vector.broadcast %504 : f32 to vector<16x16xf32>
    %507 = arith.mulf %506, %505 : vector<16x16xf32>
    %508 = arith.addf %503, %507 : vector<16x16xf32>
    %c1_136 = arith.constant 1 : index
    %c0_137 = arith.constant 0 : index
    %c3_138 = arith.constant 3 : index
    %509 = vector.load %arg5[%c1_136, %c0_137, %c3_138] : memref<2x24x128xf32, #tpu.memory_space<vmem>>, vector<1x22x16xf32>
    %510 = vector.shape_cast %509 : vector<1x22x16xf32> to vector<22x16xf32>
    %c52 = arith.constant 52 : index
    %511 = memref.load %arg2[%c52] : memref<98xf32, #tpu.memory_space<smem>>
    %512 = vector.extract_strided_slice %510 {offsets = [0, 0], sizes = [16, 16], strides = [1, 1]} : vector<22x16xf32> to vector<16x16xf32>
    %513 = vector.broadcast %511 : f32 to vector<16x16xf32>
    %514 = arith.mulf %513, %512 : vector<16x16xf32>
    %515 = arith.addf %508, %514 : vector<16x16xf32>
    %c59 = arith.constant 59 : index
    %516 = memref.load %arg2[%c59] : memref<98xf32, #tpu.memory_space<smem>>
    %517 = vector.extract_strided_slice %510 {offsets = [1, 0], sizes = [16, 16], strides = [1, 1]} : vector<22x16xf32> to vector<16x16xf32>
    %518 = vector.broadcast %516 : f32 to vector<16x16xf32>
    %519 = arith.mulf %518, %517 : vector<16x16xf32>
    %520 = arith.addf %515, %519 : vector<16x16xf32>
    %c66 = arith.constant 66 : index
    %521 = memref.load %arg2[%c66] : memref<98xf32, #tpu.memory_space<smem>>
    %522 = vector.extract_strided_slice %510 {offsets = [2, 0], sizes = [16, 16], strides = [1, 1]} : vector<22x16xf32> to vector<16x16xf32>
    %523 = vector.broadcast %521 : f32 to vector<16x16xf32>
    %524 = arith.mulf %523, %522 : vector<16x16xf32>
    %525 = arith.addf %520, %524 : vector<16x16xf32>
    %c73 = arith.constant 73 : index
    %526 = memref.load %arg2[%c73] : memref<98xf32, #tpu.memory_space<smem>>
    %527 = vector.extract_strided_slice %510 {offsets = [3, 0], sizes = [16, 16], strides = [1, 1]} : vector<22x16xf32> to vector<16x16xf32>
    %528 = vector.broadcast %526 : f32 to vector<16x16xf32>
    %529 = arith.mulf %528, %527 : vector<16x16xf32>
    %530 = arith.addf %525, %529 : vector<16x16xf32>
    %c80 = arith.constant 80 : index
    %531 = memref.load %arg2[%c80] : memref<98xf32, #tpu.memory_space<smem>>
    %532 = vector.extract_strided_slice %510 {offsets = [4, 0], sizes = [16, 16], strides = [1, 1]} : vector<22x16xf32> to vector<16x16xf32>
    %533 = vector.broadcast %531 : f32 to vector<16x16xf32>
    %534 = arith.mulf %533, %532 : vector<16x16xf32>
    %535 = arith.addf %530, %534 : vector<16x16xf32>
    %c87 = arith.constant 87 : index
    %536 = memref.load %arg2[%c87] : memref<98xf32, #tpu.memory_space<smem>>
    %537 = vector.extract_strided_slice %510 {offsets = [5, 0], sizes = [16, 16], strides = [1, 1]} : vector<22x16xf32> to vector<16x16xf32>
    %538 = vector.broadcast %536 : f32 to vector<16x16xf32>
    %539 = arith.mulf %538, %537 : vector<16x16xf32>
    %540 = arith.addf %535, %539 : vector<16x16xf32>
    %c94 = arith.constant 94 : index
    %541 = memref.load %arg2[%c94] : memref<98xf32, #tpu.memory_space<smem>>
    %542 = vector.extract_strided_slice %510 {offsets = [6, 0], sizes = [16, 16], strides = [1, 1]} : vector<22x16xf32> to vector<16x16xf32>
    %543 = vector.broadcast %541 : f32 to vector<16x16xf32>
    %544 = arith.mulf %543, %542 : vector<16x16xf32>
    %545 = arith.addf %540, %544 : vector<16x16xf32>
    %c1_139 = arith.constant 1 : index
    %c0_140 = arith.constant 0 : index
    %c4_141 = arith.constant 4 : index
    %546 = vector.load %arg5[%c1_139, %c0_140, %c4_141] : memref<2x24x128xf32, #tpu.memory_space<vmem>>, vector<1x22x16xf32>
    %547 = vector.shape_cast %546 : vector<1x22x16xf32> to vector<22x16xf32>
    %c53 = arith.constant 53 : index
    %548 = memref.load %arg2[%c53] : memref<98xf32, #tpu.memory_space<smem>>
    %549 = vector.extract_strided_slice %547 {offsets = [0, 0], sizes = [16, 16], strides = [1, 1]} : vector<22x16xf32> to vector<16x16xf32>
    %550 = vector.broadcast %548 : f32 to vector<16x16xf32>
    %551 = arith.mulf %550, %549 : vector<16x16xf32>
    %552 = arith.addf %545, %551 : vector<16x16xf32>
    %c60 = arith.constant 60 : index
    %553 = memref.load %arg2[%c60] : memref<98xf32, #tpu.memory_space<smem>>
    %554 = vector.extract_strided_slice %547 {offsets = [1, 0], sizes = [16, 16], strides = [1, 1]} : vector<22x16xf32> to vector<16x16xf32>
    %555 = vector.broadcast %553 : f32 to vector<16x16xf32>
    %556 = arith.mulf %555, %554 : vector<16x16xf32>
    %557 = arith.addf %552, %556 : vector<16x16xf32>
    %c67 = arith.constant 67 : index
    %558 = memref.load %arg2[%c67] : memref<98xf32, #tpu.memory_space<smem>>
    %559 = vector.extract_strided_slice %547 {offsets = [2, 0], sizes = [16, 16], strides = [1, 1]} : vector<22x16xf32> to vector<16x16xf32>
    %560 = vector.broadcast %558 : f32 to vector<16x16xf32>
    %561 = arith.mulf %560, %559 : vector<16x16xf32>
    %562 = arith.addf %557, %561 : vector<16x16xf32>
    %c74 = arith.constant 74 : index
    %563 = memref.load %arg2[%c74] : memref<98xf32, #tpu.memory_space<smem>>
    %564 = vector.extract_strided_slice %547 {offsets = [3, 0], sizes = [16, 16], strides = [1, 1]} : vector<22x16xf32> to vector<16x16xf32>
    %565 = vector.broadcast %563 : f32 to vector<16x16xf32>
    %566 = arith.mulf %565, %564 : vector<16x16xf32>
    %567 = arith.addf %562, %566 : vector<16x16xf32>
    %c81 = arith.constant 81 : index
    %568 = memref.load %arg2[%c81] : memref<98xf32, #tpu.memory_space<smem>>
    %569 = vector.extract_strided_slice %547 {offsets = [4, 0], sizes = [16, 16], strides = [1, 1]} : vector<22x16xf32> to vector<16x16xf32>
    %570 = vector.broadcast %568 : f32 to vector<16x16xf32>
    %571 = arith.mulf %570, %569 : vector<16x16xf32>
    %572 = arith.addf %567, %571 : vector<16x16xf32>
    %c88 = arith.constant 88 : index
    %573 = memref.load %arg2[%c88] : memref<98xf32, #tpu.memory_space<smem>>
    %574 = vector.extract_strided_slice %547 {offsets = [5, 0], sizes = [16, 16], strides = [1, 1]} : vector<22x16xf32> to vector<16x16xf32>
    %575 = vector.broadcast %573 : f32 to vector<16x16xf32>
    %576 = arith.mulf %575, %574 : vector<16x16xf32>
    %577 = arith.addf %572, %576 : vector<16x16xf32>
    %c95 = arith.constant 95 : index
    %578 = memref.load %arg2[%c95] : memref<98xf32, #tpu.memory_space<smem>>
    %579 = vector.extract_strided_slice %547 {offsets = [6, 0], sizes = [16, 16], strides = [1, 1]} : vector<22x16xf32> to vector<16x16xf32>
    %580 = vector.broadcast %578 : f32 to vector<16x16xf32>
    %581 = arith.mulf %580, %579 : vector<16x16xf32>
    %582 = arith.addf %577, %581 : vector<16x16xf32>
    %c1_142 = arith.constant 1 : index
    %c0_143 = arith.constant 0 : index
    %c5_144 = arith.constant 5 : index
    %583 = vector.load %arg5[%c1_142, %c0_143, %c5_144] : memref<2x24x128xf32, #tpu.memory_space<vmem>>, vector<1x22x16xf32>
    %584 = vector.shape_cast %583 : vector<1x22x16xf32> to vector<22x16xf32>
    %c54 = arith.constant 54 : index
    %585 = memref.load %arg2[%c54] : memref<98xf32, #tpu.memory_space<smem>>
    %586 = vector.extract_strided_slice %584 {offsets = [0, 0], sizes = [16, 16], strides = [1, 1]} : vector<22x16xf32> to vector<16x16xf32>
    %587 = vector.broadcast %585 : f32 to vector<16x16xf32>
    %588 = arith.mulf %587, %586 : vector<16x16xf32>
    %589 = arith.addf %582, %588 : vector<16x16xf32>
    %c61 = arith.constant 61 : index
    %590 = memref.load %arg2[%c61] : memref<98xf32, #tpu.memory_space<smem>>
    %591 = vector.extract_strided_slice %584 {offsets = [1, 0], sizes = [16, 16], strides = [1, 1]} : vector<22x16xf32> to vector<16x16xf32>
    %592 = vector.broadcast %590 : f32 to vector<16x16xf32>
    %593 = arith.mulf %592, %591 : vector<16x16xf32>
    %594 = arith.addf %589, %593 : vector<16x16xf32>
    %c68 = arith.constant 68 : index
    %595 = memref.load %arg2[%c68] : memref<98xf32, #tpu.memory_space<smem>>
    %596 = vector.extract_strided_slice %584 {offsets = [2, 0], sizes = [16, 16], strides = [1, 1]} : vector<22x16xf32> to vector<16x16xf32>
    %597 = vector.broadcast %595 : f32 to vector<16x16xf32>
    %598 = arith.mulf %597, %596 : vector<16x16xf32>
    %599 = arith.addf %594, %598 : vector<16x16xf32>
    %c75 = arith.constant 75 : index
    %600 = memref.load %arg2[%c75] : memref<98xf32, #tpu.memory_space<smem>>
    %601 = vector.extract_strided_slice %584 {offsets = [3, 0], sizes = [16, 16], strides = [1, 1]} : vector<22x16xf32> to vector<16x16xf32>
    %602 = vector.broadcast %600 : f32 to vector<16x16xf32>
    %603 = arith.mulf %602, %601 : vector<16x16xf32>
    %604 = arith.addf %599, %603 : vector<16x16xf32>
    %c82 = arith.constant 82 : index
    %605 = memref.load %arg2[%c82] : memref<98xf32, #tpu.memory_space<smem>>
    %606 = vector.extract_strided_slice %584 {offsets = [4, 0], sizes = [16, 16], strides = [1, 1]} : vector<22x16xf32> to vector<16x16xf32>
    %607 = vector.broadcast %605 : f32 to vector<16x16xf32>
    %608 = arith.mulf %607, %606 : vector<16x16xf32>
    %609 = arith.addf %604, %608 : vector<16x16xf32>
    %c89 = arith.constant 89 : index
    %610 = memref.load %arg2[%c89] : memref<98xf32, #tpu.memory_space<smem>>
    %611 = vector.extract_strided_slice %584 {offsets = [5, 0], sizes = [16, 16], strides = [1, 1]} : vector<22x16xf32> to vector<16x16xf32>
    %612 = vector.broadcast %610 : f32 to vector<16x16xf32>
    %613 = arith.mulf %612, %611 : vector<16x16xf32>
    %614 = arith.addf %609, %613 : vector<16x16xf32>
    %c96 = arith.constant 96 : index
    %615 = memref.load %arg2[%c96] : memref<98xf32, #tpu.memory_space<smem>>
    %616 = vector.extract_strided_slice %584 {offsets = [6, 0], sizes = [16, 16], strides = [1, 1]} : vector<22x16xf32> to vector<16x16xf32>
    %617 = vector.broadcast %615 : f32 to vector<16x16xf32>
    %618 = arith.mulf %617, %616 : vector<16x16xf32>
    %619 = arith.addf %614, %618 : vector<16x16xf32>
    %c1_145 = arith.constant 1 : index
    %c0_146 = arith.constant 0 : index
    %c6_147 = arith.constant 6 : index
    %620 = vector.load %arg5[%c1_145, %c0_146, %c6_147] : memref<2x24x128xf32, #tpu.memory_space<vmem>>, vector<1x22x16xf32>
    %621 = vector.shape_cast %620 : vector<1x22x16xf32> to vector<22x16xf32>
    %c55 = arith.constant 55 : index
    %622 = memref.load %arg2[%c55] : memref<98xf32, #tpu.memory_space<smem>>
    %623 = vector.extract_strided_slice %621 {offsets = [0, 0], sizes = [16, 16], strides = [1, 1]} : vector<22x16xf32> to vector<16x16xf32>
    %624 = vector.broadcast %622 : f32 to vector<16x16xf32>
    %625 = arith.mulf %624, %623 : vector<16x16xf32>
    %626 = arith.addf %619, %625 : vector<16x16xf32>
    %c62 = arith.constant 62 : index
    %627 = memref.load %arg2[%c62] : memref<98xf32, #tpu.memory_space<smem>>
    %628 = vector.extract_strided_slice %621 {offsets = [1, 0], sizes = [16, 16], strides = [1, 1]} : vector<22x16xf32> to vector<16x16xf32>
    %629 = vector.broadcast %627 : f32 to vector<16x16xf32>
    %630 = arith.mulf %629, %628 : vector<16x16xf32>
    %631 = arith.addf %626, %630 : vector<16x16xf32>
    %c69 = arith.constant 69 : index
    %632 = memref.load %arg2[%c69] : memref<98xf32, #tpu.memory_space<smem>>
    %633 = vector.extract_strided_slice %621 {offsets = [2, 0], sizes = [16, 16], strides = [1, 1]} : vector<22x16xf32> to vector<16x16xf32>
    %634 = vector.broadcast %632 : f32 to vector<16x16xf32>
    %635 = arith.mulf %634, %633 : vector<16x16xf32>
    %636 = arith.addf %631, %635 : vector<16x16xf32>
    %c76 = arith.constant 76 : index
    %637 = memref.load %arg2[%c76] : memref<98xf32, #tpu.memory_space<smem>>
    %638 = vector.extract_strided_slice %621 {offsets = [3, 0], sizes = [16, 16], strides = [1, 1]} : vector<22x16xf32> to vector<16x16xf32>
    %639 = vector.broadcast %637 : f32 to vector<16x16xf32>
    %640 = arith.mulf %639, %638 : vector<16x16xf32>
    %641 = arith.addf %636, %640 : vector<16x16xf32>
    %c83 = arith.constant 83 : index
    %642 = memref.load %arg2[%c83] : memref<98xf32, #tpu.memory_space<smem>>
    %643 = vector.extract_strided_slice %621 {offsets = [4, 0], sizes = [16, 16], strides = [1, 1]} : vector<22x16xf32> to vector<16x16xf32>
    %644 = vector.broadcast %642 : f32 to vector<16x16xf32>
    %645 = arith.mulf %644, %643 : vector<16x16xf32>
    %646 = arith.addf %641, %645 : vector<16x16xf32>
    %c90 = arith.constant 90 : index
    %647 = memref.load %arg2[%c90] : memref<98xf32, #tpu.memory_space<smem>>
    %648 = vector.extract_strided_slice %621 {offsets = [5, 0], sizes = [16, 16], strides = [1, 1]} : vector<22x16xf32> to vector<16x16xf32>
    %649 = vector.broadcast %647 : f32 to vector<16x16xf32>
    %650 = arith.mulf %649, %648 : vector<16x16xf32>
    %651 = arith.addf %646, %650 : vector<16x16xf32>
    %c97 = arith.constant 97 : index
    %652 = memref.load %arg2[%c97] : memref<98xf32, #tpu.memory_space<smem>>
    %653 = vector.extract_strided_slice %621 {offsets = [6, 0], sizes = [16, 16], strides = [1, 1]} : vector<22x16xf32> to vector<16x16xf32>
    %654 = vector.broadcast %652 : f32 to vector<16x16xf32>
    %655 = arith.mulf %654, %653 : vector<16x16xf32>
    %656 = arith.addf %651, %655 : vector<16x16xf32>
    %c0_148 = arith.constant 0 : index
    %657 = memref.load %arg3[%c0_148] : memref<1xf32, #tpu.memory_space<smem>>
    %658 = vector.broadcast %657 : f32 to vector<16x16xf32>
    %659 = arith.addf %656, %658 : vector<16x16xf32>
    %cst_149 = arith.constant 5.000000e-01 : f32
    %660 = vector.broadcast %cst_149 : f32 to vector<16x16xf32>
    %661 = arith.mulf %660, %659 : vector<16x16xf32>
    %662 = math.tanh %661 : vector<16x16xf32>
    %cst_150 = arith.constant 1.000000e+00 : f32
    %663 = vector.broadcast %cst_150 : f32 to vector<16x16xf32>
    %664 = arith.addf %662, %663 : vector<16x16xf32>
    %cst_151 = arith.constant 5.000000e-01 : f32
    %665 = vector.broadcast %cst_151 : f32 to vector<16x16xf32>
    %666 = arith.mulf %665, %664 : vector<16x16xf32>
    %667 = vector.extract_strided_slice %666 {offsets = [0, 0], sizes = [1, 16], strides = [1, 1]} : vector<16x16xf32> to vector<1x16xf32>
    %c0_152 = arith.constant 0 : index
    %c0_153 = arith.constant 0 : index
    %668 = vector.load %arg6[%c0_152, %c0_153] : memref<1x256xf32, #tpu.memory_space<vmem>>, vector<1x16xf32>
    tpu.vector_store %arg6[%c0_152, %c0_153], %667 {strides = array<i32>} : memref<1x256xf32, #tpu.memory_space<vmem>>, vector<1x16xf32>,
    %669 = vector.extract_strided_slice %666 {offsets = [1, 0], sizes = [1, 16], strides = [1, 1]} : vector<16x16xf32> to vector<1x16xf32>
    %c0_154 = arith.constant 0 : index
    %c16_155 = arith.constant 16 : index
    %670 = vector.load %arg6[%c0_154, %c16_155] : memref<1x256xf32, #tpu.memory_space<vmem>>, vector<1x16xf32>
    tpu.vector_store %arg6[%c0_154, %c16_155], %669 {strides = array<i32>} : memref<1x256xf32, #tpu.memory_space<vmem>>, vector<1x16xf32>,
    %671 = vector.extract_strided_slice %666 {offsets = [2, 0], sizes = [1, 16], strides = [1, 1]} : vector<16x16xf32> to vector<1x16xf32>
    %c0_156 = arith.constant 0 : index
    %c32_157 = arith.constant 32 : index
    %672 = vector.load %arg6[%c0_156, %c32_157] : memref<1x256xf32, #tpu.memory_space<vmem>>, vector<1x16xf32>
    tpu.vector_store %arg6[%c0_156, %c32_157], %671 {strides = array<i32>} : memref<1x256xf32, #tpu.memory_space<vmem>>, vector<1x16xf32>,
    %673 = vector.extract_strided_slice %666 {offsets = [3, 0], sizes = [1, 16], strides = [1, 1]} : vector<16x16xf32> to vector<1x16xf32>
    %c0_158 = arith.constant 0 : index
    %c48_159 = arith.constant 48 : index
    %674 = vector.load %arg6[%c0_158, %c48_159] : memref<1x256xf32, #tpu.memory_space<vmem>>, vector<1x16xf32>
    tpu.vector_store %arg6[%c0_158, %c48_159], %673 {strides = array<i32>} : memref<1x256xf32, #tpu.memory_space<vmem>>, vector<1x16xf32>,
    %675 = vector.extract_strided_slice %666 {offsets = [4, 0], sizes = [1, 16], strides = [1, 1]} : vector<16x16xf32> to vector<1x16xf32>
    %c0_160 = arith.constant 0 : index
    %c64_161 = arith.constant 64 : index
    %676 = vector.load %arg6[%c0_160, %c64_161] : memref<1x256xf32, #tpu.memory_space<vmem>>, vector<1x16xf32>
    tpu.vector_store %arg6[%c0_160, %c64_161], %675 {strides = array<i32>} : memref<1x256xf32, #tpu.memory_space<vmem>>, vector<1x16xf32>,
    %677 = vector.extract_strided_slice %666 {offsets = [5, 0], sizes = [1, 16], strides = [1, 1]} : vector<16x16xf32> to vector<1x16xf32>
    %c0_162 = arith.constant 0 : index
    %c80_163 = arith.constant 80 : index
    %678 = vector.load %arg6[%c0_162, %c80_163] : memref<1x256xf32, #tpu.memory_space<vmem>>, vector<1x16xf32>
    tpu.vector_store %arg6[%c0_162, %c80_163], %677 {strides = array<i32>} : memref<1x256xf32, #tpu.memory_space<vmem>>, vector<1x16xf32>,
    %679 = vector.extract_strided_slice %666 {offsets = [6, 0], sizes = [1, 16], strides = [1, 1]} : vector<16x16xf32> to vector<1x16xf32>
    %c0_164 = arith.constant 0 : index
    %c96_165 = arith.constant 96 : index
    %680 = vector.load %arg6[%c0_164, %c96_165] : memref<1x256xf32, #tpu.memory_space<vmem>>, vector<1x16xf32>
    tpu.vector_store %arg6[%c0_164, %c96_165], %679 {strides = array<i32>} : memref<1x256xf32, #tpu.memory_space<vmem>>, vector<1x16xf32>,
    %681 = vector.extract_strided_slice %666 {offsets = [7, 0], sizes = [1, 16], strides = [1, 1]} : vector<16x16xf32> to vector<1x16xf32>
    %c0_166 = arith.constant 0 : index
    %c112 = arith.constant 112 : index
    %682 = vector.load %arg6[%c0_166, %c112] : memref<1x256xf32, #tpu.memory_space<vmem>>, vector<1x16xf32>
    tpu.vector_store %arg6[%c0_166, %c112], %681 {strides = array<i32>} : memref<1x256xf32, #tpu.memory_space<vmem>>, vector<1x16xf32>,
    %683 = vector.extract_strided_slice %666 {offsets = [8, 0], sizes = [1, 16], strides = [1, 1]} : vector<16x16xf32> to vector<1x16xf32>
    %c0_167 = arith.constant 0 : index
    %c128 = arith.constant 128 : index
    %684 = vector.load %arg6[%c0_167, %c128] : memref<1x256xf32, #tpu.memory_space<vmem>>, vector<1x16xf32>
    tpu.vector_store %arg6[%c0_167, %c128], %683 {strides = array<i32>} : memref<1x256xf32, #tpu.memory_space<vmem>>, vector<1x16xf32>,
    %685 = vector.extract_strided_slice %666 {offsets = [9, 0], sizes = [1, 16], strides = [1, 1]} : vector<16x16xf32> to vector<1x16xf32>
    %c0_168 = arith.constant 0 : index
    %c144 = arith.constant 144 : index
    %686 = vector.load %arg6[%c0_168, %c144] : memref<1x256xf32, #tpu.memory_space<vmem>>, vector<1x16xf32>
    tpu.vector_store %arg6[%c0_168, %c144], %685 {strides = array<i32>} : memref<1x256xf32, #tpu.memory_space<vmem>>, vector<1x16xf32>,
    %687 = vector.extract_strided_slice %666 {offsets = [10, 0], sizes = [1, 16], strides = [1, 1]} : vector<16x16xf32> to vector<1x16xf32>
    %c0_169 = arith.constant 0 : index
    %c160 = arith.constant 160 : index
    %688 = vector.load %arg6[%c0_169, %c160] : memref<1x256xf32, #tpu.memory_space<vmem>>, vector<1x16xf32>
    tpu.vector_store %arg6[%c0_169, %c160], %687 {strides = array<i32>} : memref<1x256xf32, #tpu.memory_space<vmem>>, vector<1x16xf32>,
    %689 = vector.extract_strided_slice %666 {offsets = [11, 0], sizes = [1, 16], strides = [1, 1]} : vector<16x16xf32> to vector<1x16xf32>
    %c0_170 = arith.constant 0 : index
    %c176 = arith.constant 176 : index
    %690 = vector.load %arg6[%c0_170, %c176] : memref<1x256xf32, #tpu.memory_space<vmem>>, vector<1x16xf32>
    tpu.vector_store %arg6[%c0_170, %c176], %689 {strides = array<i32>} : memref<1x256xf32, #tpu.memory_space<vmem>>, vector<1x16xf32>,
    %691 = vector.extract_strided_slice %666 {offsets = [12, 0], sizes = [1, 16], strides = [1, 1]} : vector<16x16xf32> to vector<1x16xf32>
    %c0_171 = arith.constant 0 : index
    %c192 = arith.constant 192 : index
    %692 = vector.load %arg6[%c0_171, %c192] : memref<1x256xf32, #tpu.memory_space<vmem>>, vector<1x16xf32>
    tpu.vector_store %arg6[%c0_171, %c192], %691 {strides = array<i32>} : memref<1x256xf32, #tpu.memory_space<vmem>>, vector<1x16xf32>,
    %693 = vector.extract_strided_slice %666 {offsets = [13, 0], sizes = [1, 16], strides = [1, 1]} : vector<16x16xf32> to vector<1x16xf32>
    %c0_172 = arith.constant 0 : index
    %c208 = arith.constant 208 : index
    %694 = vector.load %arg6[%c0_172, %c208] : memref<1x256xf32, #tpu.memory_space<vmem>>, vector<1x16xf32>
    tpu.vector_store %arg6[%c0_172, %c208], %693 {strides = array<i32>} : memref<1x256xf32, #tpu.memory_space<vmem>>, vector<1x16xf32>,
    %695 = vector.extract_strided_slice %666 {offsets = [14, 0], sizes = [1, 16], strides = [1, 1]} : vector<16x16xf32> to vector<1x16xf32>
    %c0_173 = arith.constant 0 : index
    %c224 = arith.constant 224 : index
    %696 = vector.load %arg6[%c0_173, %c224] : memref<1x256xf32, #tpu.memory_space<vmem>>, vector<1x16xf32>
    tpu.vector_store %arg6[%c0_173, %c224], %695 {strides = array<i32>} : memref<1x256xf32, #tpu.memory_space<vmem>>, vector<1x16xf32>,
    %697 = vector.extract_strided_slice %666 {offsets = [15, 0], sizes = [1, 16], strides = [1, 1]} : vector<16x16xf32> to vector<1x16xf32>
    %c0_174 = arith.constant 0 : index
    %c240 = arith.constant 240 : index
    %698 = vector.load %arg6[%c0_174, %c240] : memref<1x256xf32, #tpu.memory_space<vmem>>, vector<1x16xf32>
    tpu.vector_store %arg6[%c0_174, %c240], %697 {strides = array<i32>} : memref<1x256xf32, #tpu.memory_space<vmem>>, vector<1x16xf32>,
    %c0_175 = arith.constant 0 : index
    %c0_176 = arith.constant 0 : index
    %699 = vector.load %arg6[%c0_175, %c0_176] : memref<1x256xf32, #tpu.memory_space<vmem>>, vector<1x256xf32>
    %700 = vector.broadcast %699 : vector<1x256xf32> to vector<4x256xf32>
    %701 = arith.mulf %1, %700 : vector<4x256xf32>
    %c0_177 = arith.constant 0 : index
    %c0_178 = arith.constant 0 : index
    %c0_179 = arith.constant 0 : index
    %702 = vector.load %arg4[%c0_177, %c0_178, %c0_179] : memref<1x4x256xf32, #tpu.memory_space<vmem>>, vector<1x4x256xf32>
    %703 = vector.shape_cast %702 : vector<1x4x256xf32> to vector<4x256xf32>
    %704 = vector.shape_cast %701 : vector<4x256xf32> to vector<1x4x256xf32>
    tpu.vector_store %arg4[%c0_177, %c0_178, %c0_179], %704 {strides = array<i32>} : memref<1x4x256xf32, #tpu.memory_space<vmem>>, vector<1x4x256xf32>,
    return
  }
  func.func @transform_0(%arg0: i32) -> (i32, i32, i32) {
    %c0_i32 = arith.constant 0 : i32
    %c0_i32_0 = arith.constant 0 : i32
    %c0_i32_1 = arith.constant 0 : i32
    return %arg0, %c0_i32, %c0_i32_0 : i32, i32, i32
  }
  func.func @transform_1(%arg0: i32) -> i32 {
    %c0_i32 = arith.constant 0 : i32
    %c0_i32_0 = arith.constant 0 : i32
    return %c0_i32 : i32
  }
  func.func @transform_2(%arg0: i32) -> i32 {
    %c0_i32 = arith.constant 0 : i32
    %c0_i32_0 = arith.constant 0 : i32
    return %c0_i32 : i32
  }
  func.func @transform_3(%arg0: i32) -> (i32, i32, i32) {
    %c0_i32 = arith.constant 0 : i32
    %c0_i32_0 = arith.constant 0 : i32
    %c0_i32_1 = arith.constant 0 : i32
    return %arg0, %c0_i32, %c0_i32_0 : i32, i32, i32
  }
}

</mosaic_0001>

<llo_original>
// kernel: tpu_custom_call.1
$region0: #{tpu_custom_call.1}
  #allocation0 [shape = 'u32[]', space=smem, size = 0x4, offset = 0x4, fixed_abs, tag = 'smem constant byte address 0x4 - core index']
  #allocation1 [shape = 'u32[72,128]{1,0:T(1,128)}', space=vmem, size = 0x9000, scoped, tag = 'internal scratch']
  #allocation2 [shape = 'f32[2,24,128]{2,1,0:T(8,128)}', space=vmem, size = 0x6000, scoped, tag = 'scratch operand']
  #allocation3 [shape = 'f32[1,256]{1,0:T(1,128)}', space=vmem, size = 0x400, scoped, tag = 'scratch operand']
  #allocation4 [shape = 'f32[1]{0:T(128)S(6)}', space=smem, size = 0x200, scoped, tag = 'scoped memory for tpu_custom_call.1']
  %s0 = inlined_call_operand.hbm [shape: f32[2,4,256], index: 0, kind: input, shape index: {}]
  %s1 = inlined_call_operand.vmem [shape: f32[98], index: 1, kind: input, shape index: {}]
  %s2 = inlined_call_operand.<no memory space> [shape: f32[1], index: 2, kind: input, shape index: {}]
  %s3 = inlined_call_operand.hbm [shape: f32[2,4,256], index: 3, kind: output, shape index: {}]
  %s4 = sld [smem:[#allocation0]]
  $region53: #{tpu_custom_call.1} parent=0
    _
  %s6 = ssub.s32 1, %s4
  %s7 = scalar_select 0, %s6, %s4
  %8 = sst [smem:[#allocation4]] %s2
  $region1: #{tpu_custom_call.1} parent=0
    #allocation5 [shape = 'u8[8192]{0}', space=vmem, size = 0x2000, scoped, tag = 'input window, operand 0']
    #allocation6 [shape = 's32[2]{0}', space=sflag, size = 0x8, scoped, tag = 'scoped memory for tpu_custom_call.1']
    #allocation7 [shape = 's32[2]{0}', space=sflag, size = 0x8, scoped, tag = 'scoped memory for tpu_custom_call.1']
    #allocation8 [shape = 's32[2]{0}', space=sflag, size = 0x8, scoped, tag = 'scoped memory for tpu_custom_call.1']
    #allocation9 [shape = 'u8[512]{0}', space=smem, size = 0x200, scoped, tag = 'input window, operand 1, single buffered']
    #allocation10 [shape = 'u8[8192]{0}', space=vmem, size = 0x2000, scoped, tag = 'output window, operand 0']
    %9 = vsyncpa [#allocation6], 0
    %s10 = scalar_lea.sflag [#allocation6], 1
    %11 = vsyncpa %s10, 0
    %12 = vsyncpa [#allocation8], 0
    %13 = vsyncpa [#allocation7], 0
    %s14 = scalar_lea.sflag [#allocation7], 1
    %15 = vsyncpa %s14, 0
    loop: start=0, step=1, limit=4
    $region2: #{tpu_custom_call.1} parent=1 // loop_pre_header
      _
    $region3: #{tpu_custom_call.1} parent=1 // loop_header
      %s17 = sphi 0, %s21
      %p18 = scmp.ge.s32.totalorder %s17, 4
      %s27 = sphi 0, %s29
      %s30 = sphi 0, %s27
      %s31 = sphi 0, %s30
      %s47 = sphi 0, %s31
      %s51 = sphi 0, %s51
      %s53 = sphi 0, %s51
      %s54 = sphi 0, %s53
      %s68 = sphi 0, %s54
      %s72 = sphi 0, %s72
      %s74 = sphi 0, %s72
      %s75 = sphi 0, %s74
      %s89 = sphi 0, %s75
      %s95 = sphi 0, %s97
      %s98 = sphi 0, %s95
      %s99 = sphi 0, %s98
      %s115 = sphi 0, %s99
    $region4: #{tpu_custom_call.1} parent=1 // loop_header_branch
      %20 = sbr.rel (%p18) target = $region8
    $region5: #{tpu_custom_call.1} parent=1 // loop_body
      %s22 = ssub.s32 %s17, 1
      %s23 = ssub.s32 %s17, 2
      %s24 = sadd.s32 %s17, 1
      %s25 = ssub.s32 %s17, %s24
      %p26 = scmp.eq.s32.totalorder %s25, 0
      %s28 = sadd.s32 %s27, 1
      %s29 = scalar_select %p26, %s27, %s28
      %p32 = pneg %p26
      %p33 = scmp.eq.s32.totalorder %s17, 1
      %p34 = por %p32, %p33
      %p35 = scmp.ne.s32.totalorder %s27, %s30
      %p36 = scmp.eq.s32.totalorder %s17, 0
      %p37 = por %p35, %p36
      %p38 = scmp.ne.s32.totalorder %s27, %s30
      %p39 = scmp.eq.s32.totalorder %s22, 1
      %p40 = por %p38, %p39
      %p41 = scmp.ne.s32.totalorder %s30, %s31
      %p42 = scmp.eq.s32.totalorder %s22, 0
      %p43 = por %p41, %p42
      %p44 = scmp.ne.s32.totalorder %s30, %s31
      %p45 = scmp.eq.s32.totalorder %s23, 1
      %p46 = por %p44, %p45
      %p48 = scmp.ne.s32.totalorder %s31, %s47
      %p49 = scmp.eq.s32.totalorder %s23, 0
      %p50 = por %p48, %p49
      %s52 = sadd.s32 %s51, 1
      %p55 = scmp.eq.s32.totalorder %s17, 1
      %p56 = scmp.ne.s32.totalorder %s51, %s53
      %p57 = scmp.eq.s32.totalorder %s17, 0
      %p58 = por %p56, %p57
      %p59 = scmp.ne.s32.totalorder %s51, %s53
      %p60 = scmp.eq.s32.totalorder %s22, 1
      %p61 = por %p59, %p60
      %p62 = scmp.ne.s32.totalorder %s53, %s54
      %p63 = scmp.eq.s32.totalorder %s22, 0
      %p64 = por %p62, %p63
      %p65 = scmp.ne.s32.totalorder %s53, %s54
      %p66 = scmp.eq.s32.totalorder %s23, 1
      %p67 = por %p65, %p66
      %p69 = scmp.ne.s32.totalorder %s54, %s68
      %p70 = scmp.eq.s32.totalorder %s23, 0
      %p71 = por %p69, %p70
      %s73 = sadd.s32 %s72, 1
      %p76 = scmp.eq.s32.totalorder %s17, 1
      %p77 = scmp.ne.s32.totalorder %s72, %s74
      %p78 = scmp.eq.s32.totalorder %s17, 0
      %p79 = por %p77, %p78
      %p80 = scmp.ne.s32.totalorder %s72, %s74
      %p81 = scmp.eq.s32.totalorder %s22, 1
      %p82 = por %p80, %p81
      %p83 = scmp.ne.s32.totalorder %s74, %s75
      %p84 = scmp.eq.s32.totalorder %s22, 0
      %p85 = por %p83, %p84
      %p86 = scmp.ne.s32.totalorder %s74, %s75
      %p87 = scmp.eq.s32.totalorder %s23, 1
      %p88 = por %p86, %p87
      %p90 = scmp.ne.s32.totalorder %s75, %s89
      %p91 = scmp.eq.s32.totalorder %s23, 0
      %p92 = por %p90, %p91
      %s93 = ssub.s32 %s17, %s24
      %p94 = scmp.eq.s32.totalorder %s93, 0
      %s96 = sadd.s32 %s95, 1
      %s97 = scalar_select %p94, %s95, %s96
      %p100 = pneg %p94
      %p101 = scmp.eq.s32.totalorder %s17, 1
      %p102 = por %p100, %p101
      %p103 = scmp.ne.s32.totalorder %s95, %s98
      %p104 = scmp.eq.s32.totalorder %s17, 0
      %p105 = por %p103, %p104
      %p106 = scmp.ne.s32.totalorder %s95, %s98
      %p107 = scmp.eq.s32.totalorder %s22, 1
      %p108 = por %p106, %p107
      %p109 = scmp.ne.s32.totalorder %s98, %s99
      %p110 = scmp.eq.s32.totalorder %s22, 0
      %p111 = por %p109, %p110
      %p112 = scmp.ne.s32.totalorder %s98, %s99
      %p113 = scmp.eq.s32.totalorder %s23, 1
      %p114 = por %p112, %p113
      %p116 = scmp.ne.s32.totalorder %s99, %s115
      %p117 = scmp.eq.s32.totalorder %s23, 0
      %p118 = por %p116, %p117
      %p119 = scmp.le.s32.totalorder 1, %s17
      %p120 = scmp.lt.s32.totalorder %s17, 3
      %p121 = pnand %p119, %p120
      %p122 = pneg %p121
      // Predicated region
      $region9: #{tpu_custom_call.1} parent=5 // pred_check
        _
      $region10: #{tpu_custom_call.1} parent=5 // pred_check_branch
        %124 = sbr.rel (%p121) target = $region12
      $region11: #{tpu_custom_call.1} parent=5 // pred_region
        %s125 = ssub.s32 %s17, 1
        // Predicated region
        $region13: #{tpu_custom_call.1} parent=11 // pred_check
          %p126 = pneg %p64
        $region14: #{tpu_custom_call.1} parent=11 // pred_check_branch
          %128 = sbr.rel (%p126) target = $region16
        $region15: #{tpu_custom_call.1} parent=11 // pred_region
          %130 = vsyncadd [#allocation8], 0
          %s132 = sshll.u32 %s1, 4
          %s133 = int_to_ptr.vmem [resolvable:$true] %s132
          %135 = dma.vmem_to_smem %s133, 16, [#allocation9], [#allocation8]
        $region16: #{tpu_custom_call.1} parent=11 // pred_fallthru
          _
        // Predicated region
        $region17: #{tpu_custom_call.1} parent=11 // pred_check
          %p136 = pneg %p85
        $region18: #{tpu_custom_call.1} parent=11 // pred_check_branch
          %138 = sbr.rel (%p136) target = $region20
        $region19: #{tpu_custom_call.1} parent=11 // pred_region
          _
        $region20: #{tpu_custom_call.1} parent=11 // pred_fallthru
          _
      $region12: #{tpu_custom_call.1} parent=5 // pred_fallthru
        _
      %p139 = scmp.lt.s32.totalorder %s17, 2
      // Predicated region
      $region21: #{tpu_custom_call.1} parent=5 // pred_check
        %p140 = pneg %p139
      $region22: #{tpu_custom_call.1} parent=5 // pred_check_branch
        %142 = sbr.rel (%p140) target = $region24
      $region23: #{tpu_custom_call.1} parent=5 // pred_region
        // Predicated region
        $region25: #{tpu_custom_call.1} parent=23 // pred_check
          %p143 = pneg %p37
        $region26: #{tpu_custom_call.1} parent=23 // pred_check_branch
          %145 = sbr.rel (%p143) target = $region28
        $region27: #{tpu_custom_call.1} parent=23 // pred_region
          %s146 = sand.u32 %s27, 1
          %s147 = scalar_lea.sflag [#allocation6], %s146
          %s148 = sand.u32 %s27, 1
          %s149 = smul.addr %s148, 8
          %s150 = scalar_lea.vmem [#allocation5], %s149
          %152 = vsyncadd %s147, 0
          %s153 = smul.addr %s17, 2
          %s154 = smul.addr %s153, 4
          %s155 = scalar_lea.hbm %s0, %s154
          %s157 = sshll.u32 %s155, 4
          %s158 = int_to_ptr.hbm [resolvable:$true] %s157
          %s159 = sshll.u32 %s150, 4
          %s160 = int_to_ptr.vmem [resolvable:$true] %s159
          %162 = dma.hbm_to_vmem [thread:$0]  %s158, 128, %s160, %s147
        $region28: #{tpu_custom_call.1} parent=23 // pred_fallthru
          _
      $region24: #{tpu_custom_call.1} parent=5 // pred_fallthru
        _
      %p163 = scmp.le.s32.totalorder 1, %s17
      %p164 = scmp.lt.s32.totalorder %s17, 3
      %p165 = pnand %p163, %p164
      %p166 = pneg %p165
      // Predicated region
      $region29: #{tpu_custom_call.1} parent=5 // pred_check
        _
      $region30: #{tpu_custom_call.1} parent=5 // pred_check_branch
        %168 = sbr.rel (%p165) target = $region32
      $region31: #{tpu_custom_call.1} parent=5 // pred_region
        %s169 = ssub.s32 %s17, 1
        %s170 = sand.u32 %s30, 1
        %s171 = scalar_lea.sflag [#allocation6], %s170
        %s172 = sand.u32 %s30, 1
        %s173 = smul.addr %s172, 8
        %s174 = scalar_lea.vmem [#allocation5], %s173
        // Predicated region
        $region33: #{tpu_custom_call.1} parent=31 // pred_check
          %p175 = pneg %p43
        $region34: #{tpu_custom_call.1} parent=31 // pred_check_branch
          %177 = sbr.rel (%p175) target = $region36
        $region35: #{tpu_custom_call.1} parent=31 // pred_region
          %179 = dma.done %s171, 128
        $region36: #{tpu_custom_call.1} parent=31 // pred_fallthru
          _
        // Predicated region
        $region37: #{tpu_custom_call.1} parent=31 // pred_check
          %p180 = pneg %p64
        $region38: #{tpu_custom_call.1} parent=31 // pred_check_branch
          %182 = sbr.rel (%p180) target = $region40
        $region39: #{tpu_custom_call.1} parent=31 // pred_region
          %184 = dma.done [#allocation8], 16
        $region40: #{tpu_custom_call.1} parent=31 // pred_fallthru
          _
        %185 = sfence
        %s186 = sand.u32 %s30, 1
        %s187 = scalar_lea.sflag [#allocation6], %s186
        %s188 = sand.u32 %s30, 1
        %s189 = smul.addr %s188, 8
        %s190 = scalar_lea.vmem [#allocation5], %s189
        %p191 = pneg %p43
        %p192 = pneg %p40
        %p193 = pneg %p64
        %p194 = pneg %p61
        %p195 = pneg %p85
        %p196 = pneg %p82
        %p197 = pneg %p111
        %p198 = pneg %p108
        %s199 = sand.u32 %s98, 1
        %s200 = scalar_lea.sflag [#allocation7], %s199
        %s201 = sand.u32 %s98, 1
        %s202 = smul.addr %s201, 8
        %s203 = scalar_lea.vmem [#allocation10], %s202
        %v204 = vld [vmem:[%s174] sm:$0xff]
        %206 = vst [vmem:[#allocation1] ss:$2 sm:$0xff] %v204
        %v207 = vld.sshfl [vmem:[#allocation1] sm:$0xff pattern:$0x75316420]
        %v208 = vld.sshfl [vmem:[#allocation1 + $0x8] sm:$0xff pattern:$0x75316420]
        %vm211 = vcmask 1043456
        %v212 = vsel %vm211, %v207, -inf
        %v213 = vrot.slane %v212, 4
        %v214 = vmax.f32 %v212, %v213
        %v215 = vrot.slane %v214, 2
        %v216 = vmax.f32 %v214, %v215
        %v217 = vrot.slane %v216, 1
        %v218 = vmax.f32 %v216, %v217
        %v219 = vsel %vm211, %v208, -inf
        %v220 = vrot.slane %v219, 4
        %v221 = vmax.f32 %v219, %v220
        %v222 = vrot.slane %v221, 2
        %v223 = vmax.f32 %v221, %v222
        %v224 = vrot.slane %v223, 1
        %v225 = vmax.f32 %v223, %v224
        %226 = vst [vmem:[#allocation1] ss:$2 sm:$0xff] %v204
        %v227 = vld.sshfl [vmem:[#allocation1] sm:$0xff pattern:$0x75316420]
        %v228 = vld.sshfl [vmem:[#allocation1 + $0x8] sm:$0xff pattern:$0x75316420]
        %v231 = vsel %vm211, %v227, 0.0
        %v232 = vrot.slane %v231, 4
        %v233 = vadd.f32 %v231, %v232
        %v234 = vrot.slane %v233, 2
        %v235 = vadd.f32 %v233, %v234
        %v236 = vrot.slane %v235, 1
        %v237 = vadd.f32 %v235, %v236
        %v238 = vsel %vm211, %v228, 0.0
        %v239 = vrot.slane %v238, 4
        %v240 = vadd.f32 %v238, %v239
        %v241 = vrot.slane %v240, 2
        %v242 = vadd.f32 %v240, %v241
        %v243 = vrot.slane %v242, 1
        %v244 = vadd.f32 %v242, %v243
        %v245 = vrcp.pop 4.0
        %v246 = vmul.f32 4.0, %v245
        %v247 = vsub.f32 1.0, %v246
        %v248 = vmul.f32 %v245, %v247
        %v249 = vadd.f32 %v245, %v248
        %vm250 = vweird.f32 %v245
        %v251 = vsel %vm250, %v245, %v249
        %v252 = vmul.f32 %v237, %v251
        %v253 = vmul.f32 %v244, %v251
        %254 = vst [vmem:[#allocation2] sm:$0xff] 0.0
        %255 = vst [vmem:[#allocation2 + $0x8] sm:$0xff] 0.0
        %256 = vst [vmem:[#allocation2 + $0x10] sm:$0xff] 0.0
        %257 = vst [vmem:[#allocation2 + $0x18] sm:$0xff] 0.0
        %258 = vst [vmem:[#allocation2 + $0x20] sm:$0xff] 0.0
        %259 = vst [vmem:[#allocation2 + $0x28] sm:$0xff] 0.0
        %261 = vrot.lane.b32.xlu0 %v218, 3
        %v262 = vpop.permute.xlu0 %261
        %vm264 = vcmask 147480
        %265 = vst.msk [vmem:[#allocation2 + $0x3] sm:$0x1] %vm264, %v262
        %267 = vrot.lane.b32.xlu0 %v252, 3
        %v268 = vpop.permute.xlu0 %267
        %s270 = scalar_lea.vmem [#allocation2], 24
        %271 = vst.msk [vmem:[%s270 + $0x3] sm:$0x1] %vm264, %v268
        %272 = vrot.lane.b32.xlu0 %v218, 115
        %v273 = vpop.permute.xlu0 %272
        %275 = vst.msk [vmem:[#allocation2 + $0x4] sm:$0x1] %vm264, %v273
        %276 = vrot.lane.b32.xlu0 %v252, 115
        %v277 = vpop.permute.xlu0 %276
        %279 = vst.msk [vmem:[%s270 + $0x4] sm:$0x1] %vm264, %v277
        %280 = vrot.lane.b32.xlu0 %v218, 99
        %v281 = vpop.permute.xlu0 %280
        %283 = vst.msk [vmem:[#allocation2 + $0x5] sm:$0x1] %vm264, %v281
        %284 = vrot.lane.b32.xlu0 %v252, 99
        %v285 = vpop.permute.xlu0 %284
        %287 = vst.msk [vmem:[%s270 + $0x5] sm:$0x1] %vm264, %v285
        %288 = vrot.lane.b32.xlu0 %v218, 83
        %v289 = vpop.permute.xlu0 %288
        %291 = vst.msk [vmem:[#allocation2 + $0x6] sm:$0x1] %vm264, %v289
        %292 = vrot.lane.b32.xlu0 %v252, 83
        %v293 = vpop.permute.xlu0 %292
        %295 = vst.msk [vmem:[%s270 + $0x6] sm:$0x1] %vm264, %v293
        %296 = vrot.lane.b32.xlu0 %v218, 67
        %v297 = vpop.permute.xlu0 %296
        %299 = vst.msk [vmem:[#allocation2 + $0x7] sm:$0x1] %vm264, %v297
        %300 = vrot.lane.b32.xlu0 %v252, 67
        %v301 = vpop.permute.xlu0 %300
        %303 = vst.msk [vmem:[%s270 + $0x7] sm:$0x1] %vm264, %v301
        %304 = vrot.lane.b32.xlu0 %v218, 51
        %v305 = vpop.permute.xlu0 %304
        %307 = vst.msk [vmem:[#allocation2 + $0x8] sm:$0x1] %vm264, %v305
        %308 = vrot.lane.b32.xlu0 %v252, 51
        %v309 = vpop.permute.xlu0 %308
        %311 = vst.msk [vmem:[%s270 + $0x8] sm:$0x1] %vm264, %v309
        %312 = vrot.lane.b32.xlu0 %v218, 35
        %v313 = vpop.permute.xlu0 %312
        %315 = vst.msk [vmem:[#allocation2 + $0x9] sm:$0x1] %vm264, %v313
        %316 = vrot.lane.b32.xlu0 %v252, 35
        %v317 = vpop.permute.xlu0 %316
        %319 = vst.msk [vmem:[%s270 + $0x9] sm:$0x1] %vm264, %v317
        %320 = vrot.lane.b32.xlu0 %v218, 19
        %v321 = vpop.permute.xlu0 %320
        %323 = vst.msk [vmem:[#allocation2 + $0xa] sm:$0x1] %vm264, %v321
        %324 = vrot.lane.b32.xlu0 %v252, 19
        %v325 = vpop.permute.xlu0 %324
        %327 = vst.msk [vmem:[%s270 + $0xa] sm:$0x1] %vm264, %v325
        %329 = vrot.lane.b32.xlu0 %v225, 3
        %v330 = vpop.permute.xlu0 %329
        %332 = vst.msk [vmem:[#allocation2 + $0xb] sm:$0x1] %vm264, %v330
        %334 = vrot.lane.b32.xlu0 %v253, 3
        %v335 = vpop.permute.xlu0 %334
        %337 = vst.msk [vmem:[%s270 + $0xb] sm:$0x1] %vm264, %v335
        %338 = vrot.lane.b32.xlu0 %v225, 115
        %v339 = vpop.permute.xlu0 %338
        %341 = vst.msk [vmem:[#allocation2 + $0xc] sm:$0x1] %vm264, %v339
        %342 = vrot.lane.b32.xlu0 %v253, 115
        %v343 = vpop.permute.xlu0 %342
        %345 = vst.msk [vmem:[%s270 + $0xc] sm:$0x1] %vm264, %v343
        %346 = vrot.lane.b32.xlu0 %v225, 99
        %v347 = vpop.permute.xlu0 %346
        %349 = vst.msk [vmem:[#allocation2 + $0xd] sm:$0x1] %vm264, %v347
        %350 = vrot.lane.b32.xlu0 %v253, 99
        %v351 = vpop.permute.xlu0 %350
        %353 = vst.msk [vmem:[%s270 + $0xd] sm:$0x1] %vm264, %v351
        %354 = vrot.lane.b32.xlu0 %v225, 83
        %v355 = vpop.permute.xlu0 %354
        %357 = vst.msk [vmem:[#allocation2 + $0xe] sm:$0x1] %vm264, %v355
        %358 = vrot.lane.b32.xlu0 %v253, 83
        %v359 = vpop.permute.xlu0 %358
        %361 = vst.msk [vmem:[%s270 + $0xe] sm:$0x1] %vm264, %v359
        %362 = vrot.lane.b32.xlu0 %v225, 67
        %v363 = vpop.permute.xlu0 %362
        %365 = vst.msk [vmem:[#allocation2 + $0xf] sm:$0x1] %vm264, %v363
        %366 = vrot.lane.b32.xlu0 %v253, 67
        %v367 = vpop.permute.xlu0 %366
        %369 = vst.msk [vmem:[%s270 + $0xf] sm:$0x1] %vm264, %v367
        %370 = vrot.lane.b32.xlu0 %v225, 51
        %v371 = vpop.permute.xlu0 %370
        %373 = vst.msk [vmem:[#allocation2 + $0x10] sm:$0x1] %vm264, %v371
        %374 = vrot.lane.b32.xlu0 %v253, 51
        %v375 = vpop.permute.xlu0 %374
        %377 = vst.msk [vmem:[%s270 + $0x10] sm:$0x1] %vm264, %v375
        %378 = vrot.lane.b32.xlu0 %v225, 35
        %v379 = vpop.permute.xlu0 %378
        %381 = vst.msk [vmem:[#allocation2 + $0x11] sm:$0x1] %vm264, %v379
        %382 = vrot.lane.b32.xlu0 %v253, 35
        %v383 = vpop.permute.xlu0 %382
        %385 = vst.msk [vmem:[%s270 + $0x11] sm:$0x1] %vm264, %v383
        %386 = vrot.lane.b32.xlu0 %v225, 19
        %v387 = vpop.permute.xlu0 %386
        %389 = vst.msk [vmem:[#allocation2 + $0x12] sm:$0x1] %vm264, %v387
        %390 = vrot.lane.b32.xlu0 %v253, 19
        %v391 = vpop.permute.xlu0 %390
        %393 = vst.msk [vmem:[%s270 + $0x12] sm:$0x1] %vm264, %v391
        %v394 = vld [vmem:[#allocation2] sm:$0xff]
        %v395 = vld [vmem:[#allocation2 + $0x8] sm:$0xff]
        %v396 = vld [vmem:[#allocation2 + $0x10] sm:$0x3f]
        %s397 = sld [smem:[#allocation9]]
        %v398 = vstv %s397
        %v399 = vmul.f32 %v398, %v394
        %v400 = vmul.f32 %v398, %v395
        %v401 = vadd.f32 %v399, 0.0
        %v402 = vadd.f32 %v400, 0.0
        %s403 = sld [smem:[#allocation9 + $0x7]]
        %v404 = vstv %s403
        %v405 = vmul.f32 %v404, %v394
        %v406 = vmul.f32 %v404, %v395
        %v407 = vmul.f32 %v404, %v396
        %vm411 = vcmask 1046528
        %v412 = vrot.slane %v405, 1
        %v413 = vrot.slane %v406, 1
        %v414 = vsel %vm411, %v412, %v413
        %v415 = vrot.slane %v407, 1
        %v416 = vsel %vm411, %v413, %v415
        %v419 = vadd.f32 %v401, %v414
        %v420 = vadd.f32 %v402, %v416
        %s421 = sld [smem:[#allocation9 + $0xe]]
        %v422 = vstv %s421
        %v423 = vmul.f32 %v422, %v394
        %v424 = vmul.f32 %v422, %v395
        %v425 = vmul.f32 %v422, %v396
        %vm429 = vcmask 1045504
        %v430 = vrot.slane %v423, 2
        %v431 = vrot.slane %v424, 2
        %v432 = vsel %vm429, %v430, %v431
        %v433 = vrot.slane %v425, 2
        %v434 = vsel %vm429, %v431, %v433
        %v437 = vadd.f32 %v419, %v432
        %v438 = vadd.f32 %v420, %v434
        %s439 = sld [smem:[#allocation9 + $0x15]]
        %v440 = vstv %s439
        %v441 = vmul.f32 %v440, %v394
        %v442 = vmul.f32 %v440, %v395
        %v443 = vmul.f32 %v440, %v396
        %vm447 = vcmask 1044480
        %v448 = vrot.slane %v441, 3
        %v449 = vrot.slane %v442, 3
        %v450 = vsel %vm447, %v448, %v449
        %v451 = vrot.slane %v443, 3
        %v452 = vsel %vm447, %v449, %v451
        %v455 = vadd.f32 %v437, %v450
        %v456 = vadd.f32 %v438, %v452
        %s457 = sld [smem:[#allocation9 + $0x1c]]
        %v458 = vstv %s457
        %v459 = vmul.f32 %v458, %v394
        %v460 = vmul.f32 %v458, %v395
        %v461 = vmul.f32 %v458, %v396
        %v465 = vrot.slane %v459, 4
        %v466 = vrot.slane %v460, 4
        %v467 = vsel %vm211, %v465, %v466
        %v468 = vrot.slane %v461, 4
        %v469 = vsel %vm211, %v466, %v468
        %v472 = vadd.f32 %v455, %v467
        %v473 = vadd.f32 %v456, %v469
        %s474 = sld [smem:[#allocation9 + $0x23]]
        %v475 = vstv %s474
        %v476 = vmul.f32 %v475, %v394
        %v477 = vmul.f32 %v475, %v395
        %v478 = vmul.f32 %v475, %v396
        %vm482 = vcmask 1042432
        %v483 = vrot.slane %v476, 5
        %v484 = vrot.slane %v477, 5
        %v485 = vsel %vm482, %v483, %v484
        %v486 = vrot.slane %v478, 5
        %v487 = vsel %vm482, %v484, %v486
        %v490 = vadd.f32 %v472, %v485
        %v491 = vadd.f32 %v473, %v487
        %s492 = sld [smem:[#allocation9 + $0x2a]]
        %v493 = vstv %s492
        %v494 = vmul.f32 %v493, %v394
        %v495 = vmul.f32 %v493, %v395
        %v496 = vmul.f32 %v493, %v396
        %vm500 = vcmask 1041408
        %v501 = vrot.slane %v494, 6
        %v502 = vrot.slane %v495, 6
        %v503 = vsel %vm500, %v501, %v502
        %v504 = vrot.slane %v496, 6
        %v505 = vsel %vm500, %v502, %v504
        %v508 = vadd.f32 %v490, %v503
        %v509 = vadd.f32 %v491, %v505
        %s510 = sld [smem:[#allocation9 + $0x1]]
        %v511 = vstv %s510
        %v512 = vmul.f32 %v511, %v394
        %v513 = vmul.f32 %v511, %v395
        %516 = vrot.lane.b32.xlu0 %v512, 127
        %v517 = vpop.permute.xlu0 %516
        %518 = vrot.lane.b32.xlu0 %v513, 127
        %v519 = vpop.permute.xlu0 %518
        %v522 = vadd.f32 %v508, %v517
        %v523 = vadd.f32 %v509, %v519
        %s524 = sld [smem:[#allocation9 + $0x8]]
        %v525 = vstv %s524
        %v526 = vmul.f32 %v525, %v394
        %v527 = vmul.f32 %v525, %v395
        %v528 = vmul.f32 %v525, %v396
        %v532 = vrot.slane %v526, 1
        %v533 = vrot.slane %v527, 1
        %v534 = vsel %vm411, %v532, %v533
        %v535 = vrot.slane %v528, 1
        %v536 = vsel %vm411, %v533, %v535
        %537 = vrot.lane.b32.xlu0 %v534, 127
        %v538 = vpop.permute.xlu0 %537
        %539 = vrot.lane.b32.xlu0 %v536, 127
        %v540 = vpop.permute.xlu0 %539
        %v543 = vadd.f32 %v522, %v538
        %v544 = vadd.f32 %v523, %v540
        %s545 = sld [smem:[#allocation9 + $0xf]]
        %v546 = vstv %s545
        %v547 = vmul.f32 %v546, %v394
        %v548 = vmul.f32 %v546, %v395
        %v549 = vmul.f32 %v546, %v396
        %v553 = vrot.slane %v547, 2
        %v554 = vrot.slane %v548, 2
        %v555 = vsel %vm429, %v553, %v554
        %v556 = vrot.slane %v549, 2
        %v557 = vsel %vm429, %v554, %v556
        %558 = vrot.lane.b32.xlu0 %v555, 127
        %v559 = vpop.permute.xlu0 %558
        %560 = vrot.lane.b32.xlu0 %v557, 127
        %v561 = vpop.permute.xlu0 %560
        %v564 = vadd.f32 %v543, %v559
        %v565 = vadd.f32 %v544, %v561
        %s566 = sld [smem:[#allocation9 + $0x16]]
        %v567 = vstv %s566
        %v568 = vmul.f32 %v567, %v394
        %v569 = vmul.f32 %v567, %v395
        %v570 = vmul.f32 %v567, %v396
        %v574 = vrot.slane %v568, 3
        %v575 = vrot.slane %v569, 3
        %v576 = vsel %vm447, %v574, %v575
        %v577 = vrot.slane %v570, 3
        %v578 = vsel %vm447, %v575, %v577
        %579 = vrot.lane.b32.xlu0 %v576, 127
        %v580 = vpop.permute.xlu0 %579
        %581 = vrot.lane.b32.xlu0 %v578, 127
        %v582 = vpop.permute.xlu0 %581
        %v585 = vadd.f32 %v564, %v580
        %v586 = vadd.f32 %v565, %v582
        %s587 = sld [smem:[#allocation9 + $0x1d]]
        %v588 = vstv %s587
        %v589 = vmul.f32 %v588, %v394
        %v590 = vmul.f32 %v588, %v395
        %v591 = vmul.f32 %v588, %v396
        %v595 = vrot.slane %v589, 4
        %v596 = vrot.slane %v590, 4
        %v597 = vsel %vm211, %v595, %v596
        %v598 = vrot.slane %v591, 4
        %v599 = vsel %vm211, %v596, %v598
        %600 = vrot.lane.b32.xlu0 %v597, 127
        %v601 = vpop.permute.xlu0 %600
        %602 = vrot.lane.b32.xlu0 %v599, 127
        %v603 = vpop.permute.xlu0 %602
        %v606 = vadd.f32 %v585, %v601
        %v607 = vadd.f32 %v586, %v603
        %s608 = sld [smem:[#allocation9 + $0x24]]
        %v609 = vstv %s608
        %v610 = vmul.f32 %v609, %v394
        %v611 = vmul.f32 %v609, %v395
        %v612 = vmul.f32 %v609, %v396
        %v616 = vrot.slane %v610, 5
        %v617 = vrot.slane %v611, 5
        %v618 = vsel %vm482, %v616, %v617
        %v619 = vrot.slane %v612, 5
        %v620 = vsel %vm482, %v617, %v619
        %621 = vrot.lane.b32.xlu0 %v618, 127
        %v622 = vpop.permute.xlu0 %621
        %623 = vrot.lane.b32.xlu0 %v620, 127
        %v624 = vpop.permute.xlu0 %623
        %v627 = vadd.f32 %v606, %v622
        %v628 = vadd.f32 %v607, %v624
        %s629 = sld [smem:[#allocation9 + $0x2b]]
        %v630 = vstv %s629
        %v631 = vmul.f32 %v630, %v394
        %v632 = vmul.f32 %v630, %v395
        %v633 = vmul.f32 %v630, %v396
        %v637 = vrot.slane %v631, 6
        %v638 = vrot.slane %v632, 6
        %v639 = vsel %vm500, %v637, %v638
        %v640 = vrot.slane %v633, 6
        %v641 = vsel %vm500, %v638, %v640
        %642 = vrot.lane.b32.xlu0 %v639, 127
        %v643 = vpop.permute.xlu0 %642
        %644 = vrot.lane.b32.xlu0 %v641, 127
        %v645 = vpop.permute.xlu0 %644
        %v648 = vadd.f32 %v627, %v643
        %v649 = vadd.f32 %v628, %v645
        %s650 = sld [smem:[#allocation9 + $0x2]]
        %v651 = vstv %s650
        %v652 = vmul.f32 %v651, %v394
        %v653 = vmul.f32 %v651, %v395
        %656 = vrot.lane.b32.xlu0 %v652, 126
        %v657 = vpop.permute.xlu0 %656
        %658 = vrot.lane.b32.xlu0 %v653, 126
        %v659 = vpop.permute.xlu0 %658
        %v662 = vadd.f32 %v648, %v657
        %v663 = vadd.f32 %v649, %v659
        %s664 = sld [smem:[#allocation9 + $0x9]]
        %v665 = vstv %s664
        %v666 = vmul.f32 %v665, %v394
        %v667 = vmul.f32 %v665, %v395
        %v668 = vmul.f32 %v665, %v396
        %v672 = vrot.slane %v666, 1
        %v673 = vrot.slane %v667, 1
        %v674 = vsel %vm411, %v672, %v673
        %v675 = vrot.slane %v668, 1
        %v676 = vsel %vm411, %v673, %v675
        %677 = vrot.lane.b32.xlu0 %v674, 126
        %v678 = vpop.permute.xlu0 %677
        %679 = vrot.lane.b32.xlu0 %v676, 126
        %v680 = vpop.permute.xlu0 %679
        %v683 = vadd.f32 %v662, %v678
        %v684 = vadd.f32 %v663, %v680
        %s685 = sld [smem:[#allocation9 + $0x10]]
        %v686 = vstv %s685
        %v687 = vmul.f32 %v686, %v394
        %v688 = vmul.f32 %v686, %v395
        %v689 = vmul.f32 %v686, %v396
        %v693 = vrot.slane %v687, 2
        %v694 = vrot.slane %v688, 2
        %v695 = vsel %vm429, %v693, %v694
        %v696 = vrot.slane %v689, 2
        %v697 = vsel %vm429, %v694, %v696
        %698 = vrot.lane.b32.xlu0 %v695, 126
        %v699 = vpop.permute.xlu0 %698
        %700 = vrot.lane.b32.xlu0 %v697, 126
        %v701 = vpop.permute.xlu0 %700
        %v704 = vadd.f32 %v683, %v699
        %v705 = vadd.f32 %v684, %v701
        %s706 = sld [smem:[#allocation9 + $0x17]]
        %v707 = vstv %s706
        %v708 = vmul.f32 %v707, %v394
        %v709 = vmul.f32 %v707, %v395
        %v710 = vmul.f32 %v707, %v396
        %v714 = vrot.slane %v708, 3
        %v715 = vrot.slane %v709, 3
        %v716 = vsel %vm447, %v714, %v715
        %v717 = vrot.slane %v710, 3
        %v718 = vsel %vm447, %v715, %v717
        %719 = vrot.lane.b32.xlu0 %v716, 126
        %v720 = vpop.permute.xlu0 %719
        %721 = vrot.lane.b32.xlu0 %v718, 126
        %v722 = vpop.permute.xlu0 %721
        %v725 = vadd.f32 %v704, %v720
        %v726 = vadd.f32 %v705, %v722
        %s727 = sld [smem:[#allocation9 + $0x1e]]
        %v728 = vstv %s727
        %v729 = vmul.f32 %v728, %v394
        %v730 = vmul.f32 %v728, %v395
        %v731 = vmul.f32 %v728, %v396
        %v735 = vrot.slane %v729, 4
        %v736 = vrot.slane %v730, 4
        %v737 = vsel %vm211, %v735, %v736
        %v738 = vrot.slane %v731, 4
        %v739 = vsel %vm211, %v736, %v738
        %740 = vrot.lane.b32.xlu0 %v737, 126
        %v741 = vpop.permute.xlu0 %740
        %742 = vrot.lane.b32.xlu0 %v739, 126
        %v743 = vpop.permute.xlu0 %742
        %v746 = vadd.f32 %v725, %v741
        %v747 = vadd.f32 %v726, %v743
        %s748 = sld [smem:[#allocation9 + $0x25]]
        %v749 = vstv %s748
        %v750 = vmul.f32 %v749, %v394
        %v751 = vmul.f32 %v749, %v395
        %v752 = vmul.f32 %v749, %v396
        %v756 = vrot.slane %v750, 5
        %v757 = vrot.slane %v751, 5
        %v758 = vsel %vm482, %v756, %v757
        %v759 = vrot.slane %v752, 5
        %v760 = vsel %vm482, %v757, %v759
        %761 = vrot.lane.b32.xlu0 %v758, 126
        %v762 = vpop.permute.xlu0 %761
        %763 = vrot.lane.b32.xlu0 %v760, 126
        %v764 = vpop.permute.xlu0 %763
        %v767 = vadd.f32 %v746, %v762
        %v768 = vadd.f32 %v747, %v764
        %s769 = sld [smem:[#allocation9 + $0x2c]]
        %v770 = vstv %s769
        %v771 = vmul.f32 %v770, %v394
        %v772 = vmul.f32 %v770, %v395
        %v773 = vmul.f32 %v770, %v396
        %v777 = vrot.slane %v771, 6
        %v778 = vrot.slane %v772, 6
        %v779 = vsel %vm500, %v777, %v778
        %v780 = vrot.slane %v773, 6
        %v781 = vsel %vm500, %v778, %v780
        %782 = vrot.lane.b32.xlu0 %v779, 126
        %v783 = vpop.permute.xlu0 %782
        %784 = vrot.lane.b32.xlu0 %v781, 126
        %v785 = vpop.permute.xlu0 %784
        %v788 = vadd.f32 %v767, %v783
        %v789 = vadd.f32 %v768, %v785
        %s790 = sld [smem:[#allocation9 + $0x3]]
        %v791 = vstv %s790
        %v792 = vmul.f32 %v791, %v394
        %v793 = vmul.f32 %v791, %v395
        %796 = vrot.lane.b32.xlu0 %v792, 125
        %v797 = vpop.permute.xlu0 %796
        %798 = vrot.lane.b32.xlu0 %v793, 125
        %v799 = vpop.permute.xlu0 %798
        %v802 = vadd.f32 %v788, %v797
        %v803 = vadd.f32 %v789, %v799
        %s804 = sld [smem:[#allocation9 + $0xa]]
        %v805 = vstv %s804
        %v806 = vmul.f32 %v805, %v394
        %v807 = vmul.f32 %v805, %v395
        %v808 = vmul.f32 %v805, %v396
        %v812 = vrot.slane %v806, 1
        %v813 = vrot.slane %v807, 1
        %v814 = vsel %vm411, %v812, %v813
        %v815 = vrot.slane %v808, 1
        %v816 = vsel %vm411, %v813, %v815
        %817 = vrot.lane.b32.xlu0 %v814, 125
        %v818 = vpop.permute.xlu0 %817
        %819 = vrot.lane.b32.xlu0 %v816, 125
        %v820 = vpop.permute.xlu0 %819
        %v823 = vadd.f32 %v802, %v818
        %v824 = vadd.f32 %v803, %v820
        %s825 = sld [smem:[#allocation9 + $0x11]]
        %v826 = vstv %s825
        %v827 = vmul.f32 %v826, %v394
        %v828 = vmul.f32 %v826, %v395
        %v829 = vmul.f32 %v826, %v396
        %v833 = vrot.slane %v827, 2
        %v834 = vrot.slane %v828, 2
        %v835 = vsel %vm429, %v833, %v834
        %v836 = vrot.slane %v829, 2
        %v837 = vsel %vm429, %v834, %v836
        %838 = vrot.lane.b32.xlu0 %v835, 125
        %v839 = vpop.permute.xlu0 %838
        %840 = vrot.lane.b32.xlu0 %v837, 125
        %v841 = vpop.permute.xlu0 %840
        %v844 = vadd.f32 %v823, %v839
        %v845 = vadd.f32 %v824, %v841
        %s846 = sld [smem:[#allocation9 + $0x18]]
        %v847 = vstv %s846
        %v848 = vmul.f32 %v847, %v394
        %v849 = vmul.f32 %v847, %v395
        %v850 = vmul.f32 %v847, %v396
        %v854 = vrot.slane %v848, 3
        %v855 = vrot.slane %v849, 3
        %v856 = vsel %vm447, %v854, %v855
        %v857 = vrot.slane %v850, 3
        %v858 = vsel %vm447, %v855, %v857
        %859 = vrot.lane.b32.xlu0 %v856, 125
        %v860 = vpop.permute.xlu0 %859
        %861 = vrot.lane.b32.xlu0 %v858, 125
        %v862 = vpop.permute.xlu0 %861
        %v865 = vadd.f32 %v844, %v860
        %v866 = vadd.f32 %v845, %v862
        %s867 = sld [smem:[#allocation9 + $0x1f]]
        %v868 = vstv %s867
        %v869 = vmul.f32 %v868, %v394
        %v870 = vmul.f32 %v868, %v395
        %v871 = vmul.f32 %v868, %v396
        %v875 = vrot.slane %v869, 4
        %v876 = vrot.slane %v870, 4
        %v877 = vsel %vm211, %v875, %v876
        %v878 = vrot.slane %v871, 4
        %v879 = vsel %vm211, %v876, %v878
        %880 = vrot.lane.b32.xlu0 %v877, 125
        %v881 = vpop.permute.xlu0 %880
        %882 = vrot.lane.b32.xlu0 %v879, 125
        %v883 = vpop.permute.xlu0 %882
        %v886 = vadd.f32 %v865, %v881
        %v887 = vadd.f32 %v866, %v883
        %s888 = sld [smem:[#allocation9 + $0x26]]
        %v889 = vstv %s888
        %v890 = vmul.f32 %v889, %v394
        %v891 = vmul.f32 %v889, %v395
        %v892 = vmul.f32 %v889, %v396
        %v896 = vrot.slane %v890, 5
        %v897 = vrot.slane %v891, 5
        %v898 = vsel %vm482, %v896, %v897
        %v899 = vrot.slane %v892, 5
        %v900 = vsel %vm482, %v897, %v899
        %901 = vrot.lane.b32.xlu0 %v898, 125
        %v902 = vpop.permute.xlu0 %901
        %903 = vrot.lane.b32.xlu0 %v900, 125
        %v904 = vpop.permute.xlu0 %903
        %v907 = vadd.f32 %v886, %v902
        %v908 = vadd.f32 %v887, %v904
        %s909 = sld [smem:[#allocation9 + $0x2d]]
        %v910 = vstv %s909
        %v911 = vmul.f32 %v910, %v394
        %v912 = vmul.f32 %v910, %v395
        %v913 = vmul.f32 %v910, %v396
        %v917 = vrot.slane %v911, 6
        %v918 = vrot.slane %v912, 6
        %v919 = vsel %vm500, %v917, %v918
        %v920 = vrot.slane %v913, 6
        %v921 = vsel %vm500, %v918, %v920
        %922 = vrot.lane.b32.xlu0 %v919, 125
        %v923 = vpop.permute.xlu0 %922
        %924 = vrot.lane.b32.xlu0 %v921, 125
        %v925 = vpop.permute.xlu0 %924
        %v928 = vadd.f32 %v907, %v923
        %v929 = vadd.f32 %v908, %v925
        %s930 = sld [smem:[#allocation9 + $0x4]]
        %v931 = vstv %s930
        %v932 = vmul.f32 %v931, %v394
        %v933 = vmul.f32 %v931, %v395
        %936 = vrot.lane.b32.xlu0 %v932, 124
        %v937 = vpop.permute.xlu0 %936
        %938 = vrot.lane.b32.xlu0 %v933, 124
        %v939 = vpop.permute.xlu0 %938
        %v942 = vadd.f32 %v928, %v937
        %v943 = vadd.f32 %v929, %v939
        %s944 = sld [smem:[#allocation9 + $0xb]]
        %v945 = vstv %s944
        %v946 = vmul.f32 %v945, %v394
        %v947 = vmul.f32 %v945, %v395
        %v948 = vmul.f32 %v945, %v396
        %v952 = vrot.slane %v946, 1
        %v953 = vrot.slane %v947, 1
        %v954 = vsel %vm411, %v952, %v953
        %v955 = vrot.slane %v948, 1
        %v956 = vsel %vm411, %v953, %v955
        %957 = vrot.lane.b32.xlu0 %v954, 124
        %v958 = vpop.permute.xlu0 %957
        %959 = vrot.lane.b32.xlu0 %v956, 124
        %v960 = vpop.permute.xlu0 %959
        %v963 = vadd.f32 %v942, %v958
        %v964 = vadd.f32 %v943, %v960
        %s965 = sld [smem:[#allocation9 + $0x12]]
        %v966 = vstv %s965
        %v967 = vmul.f32 %v966, %v394
        %v968 = vmul.f32 %v966, %v395
        %v969 = vmul.f32 %v966, %v396
        %v973 = vrot.slane %v967, 2
        %v974 = vrot.slane %v968, 2
        %v975 = vsel %vm429, %v973, %v974
        %v976 = vrot.slane %v969, 2
        %v977 = vsel %vm429, %v974, %v976
        %978 = vrot.lane.b32.xlu0 %v975, 124
        %v979 = vpop.permute.xlu0 %978
        %980 = vrot.lane.b32.xlu0 %v977, 124
        %v981 = vpop.permute.xlu0 %980
        %v984 = vadd.f32 %v963, %v979
        %v985 = vadd.f32 %v964, %v981
        %s986 = sld [smem:[#allocation9 + $0x19]]
        %v987 = vstv %s986
        %v988 = vmul.f32 %v987, %v394
        %v989 = vmul.f32 %v987, %v395
        %v990 = vmul.f32 %v987, %v396
        %v994 = vrot.slane %v988, 3
        %v995 = vrot.slane %v989, 3
        %v996 = vsel %vm447, %v994, %v995
        %v997 = vrot.slane %v990, 3
        %v998 = vsel %vm447, %v995, %v997
        %999 = vrot.lane.b32.xlu0 %v996, 124
        %v1000 = vpop.permute.xlu0 %999
        %1001 = vrot.lane.b32.xlu0 %v998, 124
        %v1002 = vpop.permute.xlu0 %1001
        %v1005 = vadd.f32 %v984, %v1000
        %v1006 = vadd.f32 %v985, %v1002
        %s1007 = sld [smem:[#allocation9 + $0x20]]
        %v1008 = vstv %s1007
        %v1009 = vmul.f32 %v1008, %v394
        %v1010 = vmul.f32 %v1008, %v395
        %v1011 = vmul.f32 %v1008, %v396
        %v1015 = vrot.slane %v1009, 4
        %v1016 = vrot.slane %v1010, 4
        %v1017 = vsel %vm211, %v1015, %v1016
        %v1018 = vrot.slane %v1011, 4
        %v1019 = vsel %vm211, %v1016, %v1018
        %1020 = vrot.lane.b32.xlu0 %v1017, 124
        %v1021 = vpop.permute.xlu0 %1020
        %1022 = vrot.lane.b32.xlu0 %v1019, 124
        %v1023 = vpop.permute.xlu0 %1022
        %v1026 = vadd.f32 %v1005, %v1021
        %v1027 = vadd.f32 %v1006, %v1023
        %s1028 = sld [smem:[#allocation9 + $0x27]]
        %v1029 = vstv %s1028
        %v1030 = vmul.f32 %v1029, %v394
        %v1031 = vmul.f32 %v1029, %v395
        %v1032 = vmul.f32 %v1029, %v396
        %v1036 = vrot.slane %v1030, 5
        %v1037 = vrot.slane %v1031, 5
        %v1038 = vsel %vm482, %v1036, %v1037
        %v1039 = vrot.slane %v1032, 5
        %v1040 = vsel %vm482, %v1037, %v1039
        %1041 = vrot.lane.b32.xlu0 %v1038, 124
        %v1042 = vpop.permute.xlu0 %1041
        %1043 = vrot.lane.b32.xlu0 %v1040, 124
        %v1044 = vpop.permute.xlu0 %1043
        %v1047 = vadd.f32 %v1026, %v1042
        %v1048 = vadd.f32 %v1027, %v1044
        %s1049 = sld [smem:[#allocation9 + $0x2e]]
        %v1050 = vstv %s1049
        %v1051 = vmul.f32 %v1050, %v394
        %v1052 = vmul.f32 %v1050, %v395
        %v1053 = vmul.f32 %v1050, %v396
        %v1057 = vrot.slane %v1051, 6
        %v1058 = vrot.slane %v1052, 6
        %v1059 = vsel %vm500, %v1057, %v1058
        %v1060 = vrot.slane %v1053, 6
        %v1061 = vsel %vm500, %v1058, %v1060
        %1062 = vrot.lane.b32.xlu0 %v1059, 124
        %v1063 = vpop.permute.xlu0 %1062
        %1064 = vrot.lane.b32.xlu0 %v1061, 124
        %v1065 = vpop.permute.xlu0 %1064
        %v1068 = vadd.f32 %v1047, %v1063
        %v1069 = vadd.f32 %v1048, %v1065
        %s1070 = sld [smem:[#allocation9 + $0x5]]
        %v1071 = vstv %s1070
        %v1072 = vmul.f32 %v1071, %v394
        %v1073 = vmul.f32 %v1071, %v395
        %1076 = vrot.lane.b32.xlu0 %v1072, 123
        %v1077 = vpop.permute.xlu0 %1076
        %1078 = vrot.lane.b32.xlu0 %v1073, 123
        %v1079 = vpop.permute.xlu0 %1078
        %v1082 = vadd.f32 %v1068, %v1077
        %v1083 = vadd.f32 %v1069, %v1079
        %s1084 = sld [smem:[#allocation9 + $0xc]]
        %v1085 = vstv %s1084
        %v1086 = vmul.f32 %v1085, %v394
        %v1087 = vmul.f32 %v1085, %v395
        %v1088 = vmul.f32 %v1085, %v396
        %v1092 = vrot.slane %v1086, 1
        %v1093 = vrot.slane %v1087, 1
        %v1094 = vsel %vm411, %v1092, %v1093
        %v1095 = vrot.slane %v1088, 1
        %v1096 = vsel %vm411, %v1093, %v1095
        %1097 = vrot.lane.b32.xlu0 %v1094, 123
        %v1098 = vpop.permute.xlu0 %1097
        %1099 = vrot.lane.b32.xlu0 %v1096, 123
        %v1100 = vpop.permute.xlu0 %1099
        %v1103 = vadd.f32 %v1082, %v1098
        %v1104 = vadd.f32 %v1083, %v1100
        %s1105 = sld [smem:[#allocation9 + $0x13]]
        %v1106 = vstv %s1105
        %v1107 = vmul.f32 %v1106, %v394
        %v1108 = vmul.f32 %v1106, %v395
        %v1109 = vmul.f32 %v1106, %v396
        %v1113 = vrot.slane %v1107, 2
        %v1114 = vrot.slane %v1108, 2
        %v1115 = vsel %vm429, %v1113, %v1114
        %v1116 = vrot.slane %v1109, 2
        %v1117 = vsel %vm429, %v1114, %v1116
        %1118 = vrot.lane.b32.xlu0 %v1115, 123
        %v1119 = vpop.permute.xlu0 %1118
        %1120 = vrot.lane.b32.xlu0 %v1117, 123
        %v1121 = vpop.permute.xlu0 %1120
        %v1124 = vadd.f32 %v1103, %v1119
        %v1125 = vadd.f32 %v1104, %v1121
        %s1126 = sld [smem:[#allocation9 + $0x1a]]
        %v1127 = vstv %s1126
        %v1128 = vmul.f32 %v1127, %v394
        %v1129 = vmul.f32 %v1127, %v395
        %v1130 = vmul.f32 %v1127, %v396
        %v1134 = vrot.slane %v1128, 3
        %v1135 = vrot.slane %v1129, 3
        %v1136 = vsel %vm447, %v1134, %v1135
        %v1137 = vrot.slane %v1130, 3
        %v1138 = vsel %vm447, %v1135, %v1137
        %1139 = vrot.lane.b32.xlu0 %v1136, 123
        %v1140 = vpop.permute.xlu0 %1139
        %1141 = vrot.lane.b32.xlu0 %v1138, 123
        %v1142 = vpop.permute.xlu0 %1141
        %v1145 = vadd.f32 %v1124, %v1140
        %v1146 = vadd.f32 %v1125, %v1142
        %s1147 = sld [smem:[#allocation9 + $0x21]]
        %v1148 = vstv %s1147
        %v1149 = vmul.f32 %v1148, %v394
        %v1150 = vmul.f32 %v1148, %v395
        %v1151 = vmul.f32 %v1148, %v396
        %v1155 = vrot.slane %v1149, 4
        %v1156 = vrot.slane %v1150, 4
        %v1157 = vsel %vm211, %v1155, %v1156
        %v1158 = vrot.slane %v1151, 4
        %v1159 = vsel %vm211, %v1156, %v1158
        %1160 = vrot.lane.b32.xlu0 %v1157, 123
        %v1161 = vpop.permute.xlu0 %1160
        %1162 = vrot.lane.b32.xlu0 %v1159, 123
        %v1163 = vpop.permute.xlu0 %1162
        %v1166 = vadd.f32 %v1145, %v1161
        %v1167 = vadd.f32 %v1146, %v1163
        %s1168 = sld [smem:[#allocation9 + $0x28]]
        %v1169 = vstv %s1168
        %v1170 = vmul.f32 %v1169, %v394
        %v1171 = vmul.f32 %v1169, %v395
        %v1172 = vmul.f32 %v1169, %v396
        %v1176 = vrot.slane %v1170, 5
        %v1177 = vrot.slane %v1171, 5
        %v1178 = vsel %vm482, %v1176, %v1177
        %v1179 = vrot.slane %v1172, 5
        %v1180 = vsel %vm482, %v1177, %v1179
        %1181 = vrot.lane.b32.xlu0 %v1178, 123
        %v1182 = vpop.permute.xlu0 %1181
        %1183 = vrot.lane.b32.xlu0 %v1180, 123
        %v1184 = vpop.permute.xlu0 %1183
        %v1187 = vadd.f32 %v1166, %v1182
        %v1188 = vadd.f32 %v1167, %v1184
        %s1189 = sld [smem:[#allocation9 + $0x2f]]
        %v1190 = vstv %s1189
        %v1191 = vmul.f32 %v1190, %v394
        %v1192 = vmul.f32 %v1190, %v395
        %v1193 = vmul.f32 %v1190, %v396
        %v1197 = vrot.slane %v1191, 6
        %v1198 = vrot.slane %v1192, 6
        %v1199 = vsel %vm500, %v1197, %v1198
        %v1200 = vrot.slane %v1193, 6
        %v1201 = vsel %vm500, %v1198, %v1200
        %1202 = vrot.lane.b32.xlu0 %v1199, 123
        %v1203 = vpop.permute.xlu0 %1202
        %1204 = vrot.lane.b32.xlu0 %v1201, 123
        %v1205 = vpop.permute.xlu0 %1204
        %v1208 = vadd.f32 %v1187, %v1203
        %v1209 = vadd.f32 %v1188, %v1205
        %s1210 = sld [smem:[#allocation9 + $0x6]]
        %v1211 = vstv %s1210
        %v1212 = vmul.f32 %v1211, %v394
        %v1213 = vmul.f32 %v1211, %v395
        %1216 = vrot.lane.b32.xlu0 %v1212, 122
        %v1217 = vpop.permute.xlu0 %1216
        %1218 = vrot.lane.b32.xlu0 %v1213, 122
        %v1219 = vpop.permute.xlu0 %1218
        %v1222 = vadd.f32 %v1208, %v1217
        %v1223 = vadd.f32 %v1209, %v1219
        %s1224 = sld [smem:[#allocation9 + $0xd]]
        %v1225 = vstv %s1224
        %v1226 = vmul.f32 %v1225, %v394
        %v1227 = vmul.f32 %v1225, %v395
        %v1228 = vmul.f32 %v1225, %v396
        %v1232 = vrot.slane %v1226, 1
        %v1233 = vrot.slane %v1227, 1
        %v1234 = vsel %vm411, %v1232, %v1233
        %v1235 = vrot.slane %v1228, 1
        %v1236 = vsel %vm411, %v1233, %v1235
        %1237 = vrot.lane.b32.xlu0 %v1234, 122
        %v1238 = vpop.permute.xlu0 %1237
        %1239 = vrot.lane.b32.xlu0 %v1236, 122
        %v1240 = vpop.permute.xlu0 %1239
        %v1243 = vadd.f32 %v1222, %v1238
        %v1244 = vadd.f32 %v1223, %v1240
        %s1245 = sld [smem:[#allocation9 + $0x14]]
        %v1246 = vstv %s1245
        %v1247 = vmul.f32 %v1246, %v394
        %v1248 = vmul.f32 %v1246, %v395
        %v1249 = vmul.f32 %v1246, %v396
        %v1253 = vrot.slane %v1247, 2
        %v1254 = vrot.slane %v1248, 2
        %v1255 = vsel %vm429, %v1253, %v1254
        %v1256 = vrot.slane %v1249, 2
        %v1257 = vsel %vm429, %v1254, %v1256
        %1258 = vrot.lane.b32.xlu0 %v1255, 122
        %v1259 = vpop.permute.xlu0 %1258
        %1260 = vrot.lane.b32.xlu0 %v1257, 122
        %v1261 = vpop.permute.xlu0 %1260
        %v1264 = vadd.f32 %v1243, %v1259
        %v1265 = vadd.f32 %v1244, %v1261
        %s1266 = sld [smem:[#allocation9 + $0x1b]]
        %v1267 = vstv %s1266
        %v1268 = vmul.f32 %v1267, %v394
        %v1269 = vmul.f32 %v1267, %v395
        %v1270 = vmul.f32 %v1267, %v396
        %v1274 = vrot.slane %v1268, 3
        %v1275 = vrot.slane %v1269, 3
        %v1276 = vsel %vm447, %v1274, %v1275
        %v1277 = vrot.slane %v1270, 3
        %v1278 = vsel %vm447, %v1275, %v1277
        %1279 = vrot.lane.b32.xlu0 %v1276, 122
        %v1280 = vpop.permute.xlu0 %1279
        %1281 = vrot.lane.b32.xlu0 %v1278, 122
        %v1282 = vpop.permute.xlu0 %1281
        %v1285 = vadd.f32 %v1264, %v1280
        %v1286 = vadd.f32 %v1265, %v1282
        %s1287 = sld [smem:[#allocation9 + $0x22]]
        %v1288 = vstv %s1287
        %v1289 = vmul.f32 %v1288, %v394
        %v1290 = vmul.f32 %v1288, %v395
        %v1291 = vmul.f32 %v1288, %v396
        %v1295 = vrot.slane %v1289, 4
        %v1296 = vrot.slane %v1290, 4
        %v1297 = vsel %vm211, %v1295, %v1296
        %v1298 = vrot.slane %v1291, 4
        %v1299 = vsel %vm211, %v1296, %v1298
        %1300 = vrot.lane.b32.xlu0 %v1297, 122
        %v1301 = vpop.permute.xlu0 %1300
        %1302 = vrot.lane.b32.xlu0 %v1299, 122
        %v1303 = vpop.permute.xlu0 %1302
        %v1306 = vadd.f32 %v1285, %v1301
        %v1307 = vadd.f32 %v1286, %v1303
        %s1308 = sld [smem:[#allocation9 + $0x29]]
        %v1309 = vstv %s1308
        %v1310 = vmul.f32 %v1309, %v394
        %v1311 = vmul.f32 %v1309, %v395
        %v1312 = vmul.f32 %v1309, %v396
        %v1316 = vrot.slane %v1310, 5
        %v1317 = vrot.slane %v1311, 5
        %v1318 = vsel %vm482, %v1316, %v1317
        %v1319 = vrot.slane %v1312, 5
        %v1320 = vsel %vm482, %v1317, %v1319
        %1321 = vrot.lane.b32.xlu0 %v1318, 122
        %v1322 = vpop.permute.xlu0 %1321
        %1323 = vrot.lane.b32.xlu0 %v1320, 122
        %v1324 = vpop.permute.xlu0 %1323
        %v1327 = vadd.f32 %v1306, %v1322
        %v1328 = vadd.f32 %v1307, %v1324
        %s1329 = sld [smem:[#allocation9 + $0x30]]
        %v1330 = vstv %s1329
        %v1331 = vmul.f32 %v1330, %v394
        %v1332 = vmul.f32 %v1330, %v395
        %v1333 = vmul.f32 %v1330, %v396
        %v1337 = vrot.slane %v1331, 6
        %v1338 = vrot.slane %v1332, 6
        %v1339 = vsel %vm500, %v1337, %v1338
        %v1340 = vrot.slane %v1333, 6
        %v1341 = vsel %vm500, %v1338, %v1340
        %1342 = vrot.lane.b32.xlu0 %v1339, 122
        %v1343 = vpop.permute.xlu0 %1342
        %1344 = vrot.lane.b32.xlu0 %v1341, 122
        %v1345 = vpop.permute.xlu0 %1344
        %v1348 = vadd.f32 %v1327, %v1343
        %v1349 = vadd.f32 %v1328, %v1345
        %v1350 = vld [vmem:[%s270] sm:$0xff]
        %v1351 = vld [vmem:[%s270 + $0x8] sm:$0xff]
        %v1352 = vld [vmem:[%s270 + $0x10] sm:$0x3f]
        %s1353 = sld [smem:[#allocation9 + $0x31]]
        %v1354 = vstv %s1353
        %v1355 = vmul.f32 %v1354, %v1350
        %v1356 = vmul.f32 %v1354, %v1351
        %v1357 = vadd.f32 %v1348, %v1355
        %v1358 = vadd.f32 %v1349, %v1356
        %s1359 = sld [smem:[#allocation9 + $0x38]]
        %v1360 = vstv %s1359
        %v1361 = vmul.f32 %v1360, %v1350
        %v1362 = vmul.f32 %v1360, %v1351
        %v1363 = vmul.f32 %v1360, %v1352
        %v1367 = vrot.slane %v1361, 1
        %v1368 = vrot.slane %v1362, 1
        %v1369 = vsel %vm411, %v1367, %v1368
        %v1370 = vrot.slane %v1363, 1
        %v1371 = vsel %vm411, %v1368, %v1370
        %v1374 = vadd.f32 %v1357, %v1369
        %v1375 = vadd.f32 %v1358, %v1371
        %s1376 = sld [smem:[#allocation9 + $0x3f]]
        %v1377 = vstv %s1376
        %v1378 = vmul.f32 %v1377, %v1350
        %v1379 = vmul.f32 %v1377, %v1351
        %v1380 = vmul.f32 %v1377, %v1352
        %v1384 = vrot.slane %v1378, 2
        %v1385 = vrot.slane %v1379, 2
        %v1386 = vsel %vm429, %v1384, %v1385
        %v1387 = vrot.slane %v1380, 2
        %v1388 = vsel %vm429, %v1385, %v1387
        %v1391 = vadd.f32 %v1374, %v1386
        %v1392 = vadd.f32 %v1375, %v1388
        %s1393 = sld [smem:[#allocation9 + $0x46]]
        %v1394 = vstv %s1393
        %v1395 = vmul.f32 %v1394, %v1350
        %v1396 = vmul.f32 %v1394, %v1351
        %v1397 = vmul.f32 %v1394, %v1352
        %v1401 = vrot.slane %v1395, 3
        %v1402 = vrot.slane %v1396, 3
        %v1403 = vsel %vm447, %v1401, %v1402
        %v1404 = vrot.slane %v1397, 3
        %v1405 = vsel %vm447, %v1402, %v1404
        %v1408 = vadd.f32 %v1391, %v1403
        %v1409 = vadd.f32 %v1392, %v1405
        %s1410 = sld [smem:[#allocation9 + $0x4d]]
        %v1411 = vstv %s1410
        %v1412 = vmul.f32 %v1411, %v1350
        %v1413 = vmul.f32 %v1411, %v1351
        %v1414 = vmul.f32 %v1411, %v1352
        %v1418 = vrot.slane %v1412, 4
        %v1419 = vrot.slane %v1413, 4
        %v1420 = vsel %vm211, %v1418, %v1419
        %v1421 = vrot.slane %v1414, 4
        %v1422 = vsel %vm211, %v1419, %v1421
        %v1425 = vadd.f32 %v1408, %v1420
        %v1426 = vadd.f32 %v1409, %v1422
        %s1427 = sld [smem:[#allocation9 + $0x54]]
        %v1428 = vstv %s1427
        %v1429 = vmul.f32 %v1428, %v1350
        %v1430 = vmul.f32 %v1428, %v1351
        %v1431 = vmul.f32 %v1428, %v1352
        %v1435 = vrot.slane %v1429, 5
        %v1436 = vrot.slane %v1430, 5
        %v1437 = vsel %vm482, %v1435, %v1436
        %v1438 = vrot.slane %v1431, 5
        %v1439 = vsel %vm482, %v1436, %v1438
        %v1442 = vadd.f32 %v1425, %v1437
        %v1443 = vadd.f32 %v1426, %v1439
        %s1444 = sld [smem:[#allocation9 + $0x5b]]
        %v1445 = vstv %s1444
        %v1446 = vmul.f32 %v1445, %v1350
        %v1447 = vmul.f32 %v1445, %v1351
        %v1448 = vmul.f32 %v1445, %v1352
        %v1452 = vrot.slane %v1446, 6
        %v1453 = vrot.slane %v1447, 6
        %v1454 = vsel %vm500, %v1452, %v1453
        %v1455 = vrot.slane %v1448, 6
        %v1456 = vsel %vm500, %v1453, %v1455
        %v1459 = vadd.f32 %v1442, %v1454
        %v1460 = vadd.f32 %v1443, %v1456
        %s1461 = sld [smem:[#allocation9 + $0x32]]
        %v1462 = vstv %s1461
        %v1463 = vmul.f32 %v1462, %v1350
        %v1464 = vmul.f32 %v1462, %v1351
        %1467 = vrot.lane.b32.xlu0 %v1463, 127
        %v1468 = vpop.permute.xlu0 %1467
        %1469 = vrot.lane.b32.xlu0 %v1464, 127
        %v1470 = vpop.permute.xlu0 %1469
        %v1473 = vadd.f32 %v1459, %v1468
        %v1474 = vadd.f32 %v1460, %v1470
        %s1475 = sld [smem:[#allocation9 + $0x39]]
        %v1476 = vstv %s1475
        %v1477 = vmul.f32 %v1476, %v1350
        %v1478 = vmul.f32 %v1476, %v1351
        %v1479 = vmul.f32 %v1476, %v1352
        %v1483 = vrot.slane %v1477, 1
        %v1484 = vrot.slane %v1478, 1
        %v1485 = vsel %vm411, %v1483, %v1484
        %v1486 = vrot.slane %v1479, 1
        %v1487 = vsel %vm411, %v1484, %v1486
        %1488 = vrot.lane.b32.xlu0 %v1485, 127
        %v1489 = vpop.permute.xlu0 %1488
        %1490 = vrot.lane.b32.xlu0 %v1487, 127
        %v1491 = vpop.permute.xlu0 %1490
        %v1494 = vadd.f32 %v1473, %v1489
        %v1495 = vadd.f32 %v1474, %v1491
        %s1496 = sld [smem:[#allocation9 + $0x40]]
        %v1497 = vstv %s1496
        %v1498 = vmul.f32 %v1497, %v1350
        %v1499 = vmul.f32 %v1497, %v1351
        %v1500 = vmul.f32 %v1497, %v1352
        %v1504 = vrot.slane %v1498, 2
        %v1505 = vrot.slane %v1499, 2
        %v1506 = vsel %vm429, %v1504, %v1505
        %v1507 = vrot.slane %v1500, 2
        %v1508 = vsel %vm429, %v1505, %v1507
        %1509 = vrot.lane.b32.xlu0 %v1506, 127
        %v1510 = vpop.permute.xlu0 %1509
        %1511 = vrot.lane.b32.xlu0 %v1508, 127
        %v1512 = vpop.permute.xlu0 %1511
        %v1515 = vadd.f32 %v1494, %v1510
        %v1516 = vadd.f32 %v1495, %v1512
        %s1517 = sld [smem:[#allocation9 + $0x47]]
        %v1518 = vstv %s1517
        %v1519 = vmul.f32 %v1518, %v1350
        %v1520 = vmul.f32 %v1518, %v1351
        %v1521 = vmul.f32 %v1518, %v1352
        %v1525 = vrot.slane %v1519, 3
        %v1526 = vrot.slane %v1520, 3
        %v1527 = vsel %vm447, %v1525, %v1526
        %v1528 = vrot.slane %v1521, 3
        %v1529 = vsel %vm447, %v1526, %v1528
        %1530 = vrot.lane.b32.xlu0 %v1527, 127
        %v1531 = vpop.permute.xlu0 %1530
        %1532 = vrot.lane.b32.xlu0 %v1529, 127
        %v1533 = vpop.permute.xlu0 %1532
        %v1536 = vadd.f32 %v1515, %v1531
        %v1537 = vadd.f32 %v1516, %v1533
        %s1538 = sld [smem:[#allocation9 + $0x4e]]
        %v1539 = vstv %s1538
        %v1540 = vmul.f32 %v1539, %v1350
        %v1541 = vmul.f32 %v1539, %v1351
        %v1542 = vmul.f32 %v1539, %v1352
        %v1546 = vrot.slane %v1540, 4
        %v1547 = vrot.slane %v1541, 4
        %v1548 = vsel %vm211, %v1546, %v1547
        %v1549 = vrot.slane %v1542, 4
        %v1550 = vsel %vm211, %v1547, %v1549
        %1551 = vrot.lane.b32.xlu0 %v1548, 127
        %v1552 = vpop.permute.xlu0 %1551
        %1553 = vrot.lane.b32.xlu0 %v1550, 127
        %v1554 = vpop.permute.xlu0 %1553
        %v1557 = vadd.f32 %v1536, %v1552
        %v1558 = vadd.f32 %v1537, %v1554
        %s1559 = sld [smem:[#allocation9 + $0x55]]
        %v1560 = vstv %s1559
        %v1561 = vmul.f32 %v1560, %v1350
        %v1562 = vmul.f32 %v1560, %v1351
        %v1563 = vmul.f32 %v1560, %v1352
        %v1567 = vrot.slane %v1561, 5
        %v1568 = vrot.slane %v1562, 5
        %v1569 = vsel %vm482, %v1567, %v1568
        %v1570 = vrot.slane %v1563, 5
        %v1571 = vsel %vm482, %v1568, %v1570
        %1572 = vrot.lane.b32.xlu0 %v1569, 127
        %v1573 = vpop.permute.xlu0 %1572
        %1574 = vrot.lane.b32.xlu0 %v1571, 127
        %v1575 = vpop.permute.xlu0 %1574
        %v1578 = vadd.f32 %v1557, %v1573
        %v1579 = vadd.f32 %v1558, %v1575
        %s1580 = sld [smem:[#allocation9 + $0x5c]]
        %v1581 = vstv %s1580
        %v1582 = vmul.f32 %v1581, %v1350
        %v1583 = vmul.f32 %v1581, %v1351
        %v1584 = vmul.f32 %v1581, %v1352
        %v1588 = vrot.slane %v1582, 6
        %v1589 = vrot.slane %v1583, 6
        %v1590 = vsel %vm500, %v1588, %v1589
        %v1591 = vrot.slane %v1584, 6
        %v1592 = vsel %vm500, %v1589, %v1591
        %1593 = vrot.lane.b32.xlu0 %v1590, 127
        %v1594 = vpop.permute.xlu0 %1593
        %1595 = vrot.lane.b32.xlu0 %v1592, 127
        %v1596 = vpop.permute.xlu0 %1595
        %v1599 = vadd.f32 %v1578, %v1594
        %v1600 = vadd.f32 %v1579, %v1596
        %s1601 = sld [smem:[#allocation9 + $0x33]]
        %v1602 = vstv %s1601
        %v1603 = vmul.f32 %v1602, %v1350
        %v1604 = vmul.f32 %v1602, %v1351
        %1607 = vrot.lane.b32.xlu0 %v1603, 126
        %v1608 = vpop.permute.xlu0 %1607
        %1609 = vrot.lane.b32.xlu0 %v1604, 126
        %v1610 = vpop.permute.xlu0 %1609
        %v1613 = vadd.f32 %v1599, %v1608
        %v1614 = vadd.f32 %v1600, %v1610
        %s1615 = sld [smem:[#allocation9 + $0x3a]]
        %v1616 = vstv %s1615
        %v1617 = vmul.f32 %v1616, %v1350
        %v1618 = vmul.f32 %v1616, %v1351
        %v1619 = vmul.f32 %v1616, %v1352
        %v1623 = vrot.slane %v1617, 1
        %v1624 = vrot.slane %v1618, 1
        %v1625 = vsel %vm411, %v1623, %v1624
        %v1626 = vrot.slane %v1619, 1
        %v1627 = vsel %vm411, %v1624, %v1626
        %1628 = vrot.lane.b32.xlu0 %v1625, 126
        %v1629 = vpop.permute.xlu0 %1628
        %1630 = vrot.lane.b32.xlu0 %v1627, 126
        %v1631 = vpop.permute.xlu0 %1630
        %v1634 = vadd.f32 %v1613, %v1629
        %v1635 = vadd.f32 %v1614, %v1631
        %s1636 = sld [smem:[#allocation9 + $0x41]]
        %v1637 = vstv %s1636
        %v1638 = vmul.f32 %v1637, %v1350
        %v1639 = vmul.f32 %v1637, %v1351
        %v1640 = vmul.f32 %v1637, %v1352
        %v1644 = vrot.slane %v1638, 2
        %v1645 = vrot.slane %v1639, 2
        %v1646 = vsel %vm429, %v1644, %v1645
        %v1647 = vrot.slane %v1640, 2
        %v1648 = vsel %vm429, %v1645, %v1647
        %1649 = vrot.lane.b32.xlu0 %v1646, 126
        %v1650 = vpop.permute.xlu0 %1649
        %1651 = vrot.lane.b32.xlu0 %v1648, 126
        %v1652 = vpop.permute.xlu0 %1651
        %v1655 = vadd.f32 %v1634, %v1650
        %v1656 = vadd.f32 %v1635, %v1652
        %s1657 = sld [smem:[#allocation9 + $0x48]]
        %v1658 = vstv %s1657
        %v1659 = vmul.f32 %v1658, %v1350
        %v1660 = vmul.f32 %v1658, %v1351
        %v1661 = vmul.f32 %v1658, %v1352
        %v1665 = vrot.slane %v1659, 3
        %v1666 = vrot.slane %v1660, 3
        %v1667 = vsel %vm447, %v1665, %v1666
        %v1668 = vrot.slane %v1661, 3
        %v1669 = vsel %vm447, %v1666, %v1668
        %1670 = vrot.lane.b32.xlu0 %v1667, 126
        %v1671 = vpop.permute.xlu0 %1670
        %1672 = vrot.lane.b32.xlu0 %v1669, 126
        %v1673 = vpop.permute.xlu0 %1672
        %v1676 = vadd.f32 %v1655, %v1671
        %v1677 = vadd.f32 %v1656, %v1673
        %s1678 = sld [smem:[#allocation9 + $0x4f]]
        %v1679 = vstv %s1678
        %v1680 = vmul.f32 %v1679, %v1350
        %v1681 = vmul.f32 %v1679, %v1351
        %v1682 = vmul.f32 %v1679, %v1352
        %v1686 = vrot.slane %v1680, 4
        %v1687 = vrot.slane %v1681, 4
        %v1688 = vsel %vm211, %v1686, %v1687
        %v1689 = vrot.slane %v1682, 4
        %v1690 = vsel %vm211, %v1687, %v1689
        %1691 = vrot.lane.b32.xlu0 %v1688, 126
        %v1692 = vpop.permute.xlu0 %1691
        %1693 = vrot.lane.b32.xlu0 %v1690, 126
        %v1694 = vpop.permute.xlu0 %1693
        %v1697 = vadd.f32 %v1676, %v1692
        %v1698 = vadd.f32 %v1677, %v1694
        %s1699 = sld [smem:[#allocation9 + $0x56]]
        %v1700 = vstv %s1699
        %v1701 = vmul.f32 %v1700, %v1350
        %v1702 = vmul.f32 %v1700, %v1351
        %v1703 = vmul.f32 %v1700, %v1352
        %v1707 = vrot.slane %v1701, 5
        %v1708 = vrot.slane %v1702, 5
        %v1709 = vsel %vm482, %v1707, %v1708
        %v1710 = vrot.slane %v1703, 5
        %v1711 = vsel %vm482, %v1708, %v1710
        %1712 = vrot.lane.b32.xlu0 %v1709, 126
        %v1713 = vpop.permute.xlu0 %1712
        %1714 = vrot.lane.b32.xlu0 %v1711, 126
        %v1715 = vpop.permute.xlu0 %1714
        %v1718 = vadd.f32 %v1697, %v1713
        %v1719 = vadd.f32 %v1698, %v1715
        %s1720 = sld [smem:[#allocation9 + $0x5d]]
        %v1721 = vstv %s1720
        %v1722 = vmul.f32 %v1721, %v1350
        %v1723 = vmul.f32 %v1721, %v1351
        %v1724 = vmul.f32 %v1721, %v1352
        %v1728 = vrot.slane %v1722, 6
        %v1729 = vrot.slane %v1723, 6
        %v1730 = vsel %vm500, %v1728, %v1729
        %v1731 = vrot.slane %v1724, 6
        %v1732 = vsel %vm500, %v1729, %v1731
        %1733 = vrot.lane.b32.xlu0 %v1730, 126
        %v1734 = vpop.permute.xlu0 %1733
        %1735 = vrot.lane.b32.xlu0 %v1732, 126
        %v1736 = vpop.permute.xlu0 %1735
        %v1739 = vadd.f32 %v1718, %v1734
        %v1740 = vadd.f32 %v1719, %v1736
        %s1741 = sld [smem:[#allocation9 + $0x34]]
        %v1742 = vstv %s1741
        %v1743 = vmul.f32 %v1742, %v1350
        %v1744 = vmul.f32 %v1742, %v1351
        %1747 = vrot.lane.b32.xlu0 %v1743, 125
        %v1748 = vpop.permute.xlu0 %1747
        %1749 = vrot.lane.b32.xlu0 %v1744, 125
        %v1750 = vpop.permute.xlu0 %1749
        %v1753 = vadd.f32 %v1739, %v1748
        %v1754 = vadd.f32 %v1740, %v1750
        %s1755 = sld [smem:[#allocation9 + $0x3b]]
        %v1756 = vstv %s1755
        %v1757 = vmul.f32 %v1756, %v1350
        %v1758 = vmul.f32 %v1756, %v1351
        %v1759 = vmul.f32 %v1756, %v1352
        %v1763 = vrot.slane %v1757, 1
        %v1764 = vrot.slane %v1758, 1
        %v1765 = vsel %vm411, %v1763, %v1764
        %v1766 = vrot.slane %v1759, 1
        %v1767 = vsel %vm411, %v1764, %v1766
        %1768 = vrot.lane.b32.xlu0 %v1765, 125
        %v1769 = vpop.permute.xlu0 %1768
        %1770 = vrot.lane.b32.xlu0 %v1767, 125
        %v1771 = vpop.permute.xlu0 %1770
        %v1774 = vadd.f32 %v1753, %v1769
        %v1775 = vadd.f32 %v1754, %v1771
        %s1776 = sld [smem:[#allocation9 + $0x42]]
        %v1777 = vstv %s1776
        %v1778 = vmul.f32 %v1777, %v1350
        %v1779 = vmul.f32 %v1777, %v1351
        %v1780 = vmul.f32 %v1777, %v1352
        %v1784 = vrot.slane %v1778, 2
        %v1785 = vrot.slane %v1779, 2
        %v1786 = vsel %vm429, %v1784, %v1785
        %v1787 = vrot.slane %v1780, 2
        %v1788 = vsel %vm429, %v1785, %v1787
        %1789 = vrot.lane.b32.xlu0 %v1786, 125
        %v1790 = vpop.permute.xlu0 %1789
        %1791 = vrot.lane.b32.xlu0 %v1788, 125
        %v1792 = vpop.permute.xlu0 %1791
        %v1795 = vadd.f32 %v1774, %v1790
        %v1796 = vadd.f32 %v1775, %v1792
        %s1797 = sld [smem:[#allocation9 + $0x49]]
        %v1798 = vstv %s1797
        %v1799 = vmul.f32 %v1798, %v1350
        %v1800 = vmul.f32 %v1798, %v1351
        %v1801 = vmul.f32 %v1798, %v1352
        %v1805 = vrot.slane %v1799, 3
        %v1806 = vrot.slane %v1800, 3
        %v1807 = vsel %vm447, %v1805, %v1806
        %v1808 = vrot.slane %v1801, 3
        %v1809 = vsel %vm447, %v1806, %v1808
        %1810 = vrot.lane.b32.xlu0 %v1807, 125
        %v1811 = vpop.permute.xlu0 %1810
        %1812 = vrot.lane.b32.xlu0 %v1809, 125
        %v1813 = vpop.permute.xlu0 %1812
        %v1816 = vadd.f32 %v1795, %v1811
        %v1817 = vadd.f32 %v1796, %v1813
        %s1818 = sld [smem:[#allocation9 + $0x50]]
        %v1819 = vstv %s1818
        %v1820 = vmul.f32 %v1819, %v1350
        %v1821 = vmul.f32 %v1819, %v1351
        %v1822 = vmul.f32 %v1819, %v1352
        %v1826 = vrot.slane %v1820, 4
        %v1827 = vrot.slane %v1821, 4
        %v1828 = vsel %vm211, %v1826, %v1827
        %v1829 = vrot.slane %v1822, 4
        %v1830 = vsel %vm211, %v1827, %v1829
        %1831 = vrot.lane.b32.xlu0 %v1828, 125
        %v1832 = vpop.permute.xlu0 %1831
        %1833 = vrot.lane.b32.xlu0 %v1830, 125
        %v1834 = vpop.permute.xlu0 %1833
        %v1837 = vadd.f32 %v1816, %v1832
        %v1838 = vadd.f32 %v1817, %v1834
        %s1839 = sld [smem:[#allocation9 + $0x57]]
        %v1840 = vstv %s1839
        %v1841 = vmul.f32 %v1840, %v1350
        %v1842 = vmul.f32 %v1840, %v1351
        %v1843 = vmul.f32 %v1840, %v1352
        %v1847 = vrot.slane %v1841, 5
        %v1848 = vrot.slane %v1842, 5
        %v1849 = vsel %vm482, %v1847, %v1848
        %v1850 = vrot.slane %v1843, 5
        %v1851 = vsel %vm482, %v1848, %v1850
        %1852 = vrot.lane.b32.xlu0 %v1849, 125
        %v1853 = vpop.permute.xlu0 %1852
        %1854 = vrot.lane.b32.xlu0 %v1851, 125
        %v1855 = vpop.permute.xlu0 %1854
        %v1858 = vadd.f32 %v1837, %v1853
        %v1859 = vadd.f32 %v1838, %v1855
        %s1860 = sld [smem:[#allocation9 + $0x5e]]
        %v1861 = vstv %s1860
        %v1862 = vmul.f32 %v1861, %v1350
        %v1863 = vmul.f32 %v1861, %v1351
        %v1864 = vmul.f32 %v1861, %v1352
        %v1868 = vrot.slane %v1862, 6
        %v1869 = vrot.slane %v1863, 6
        %v1870 = vsel %vm500, %v1868, %v1869
        %v1871 = vrot.slane %v1864, 6
        %v1872 = vsel %vm500, %v1869, %v1871
        %1873 = vrot.lane.b32.xlu0 %v1870, 125
        %v1874 = vpop.permute.xlu0 %1873
        %1875 = vrot.lane.b32.xlu0 %v1872, 125
        %v1876 = vpop.permute.xlu0 %1875
        %v1879 = vadd.f32 %v1858, %v1874
        %v1880 = vadd.f32 %v1859, %v1876
        %s1881 = sld [smem:[#allocation9 + $0x35]]
        %v1882 = vstv %s1881
        %v1883 = vmul.f32 %v1882, %v1350
        %v1884 = vmul.f32 %v1882, %v1351
        %1887 = vrot.lane.b32.xlu0 %v1883, 124
        %v1888 = vpop.permute.xlu0 %1887
        %1889 = vrot.lane.b32.xlu0 %v1884, 124
        %v1890 = vpop.permute.xlu0 %1889
        %v1893 = vadd.f32 %v1879, %v1888
        %v1894 = vadd.f32 %v1880, %v1890
        %s1895 = sld [smem:[#allocation9 + $0x3c]]
        %v1896 = vstv %s1895
        %v1897 = vmul.f32 %v1896, %v1350
        %v1898 = vmul.f32 %v1896, %v1351
        %v1899 = vmul.f32 %v1896, %v1352
        %v1903 = vrot.slane %v1897, 1
        %v1904 = vrot.slane %v1898, 1
        %v1905 = vsel %vm411, %v1903, %v1904
        %v1906 = vrot.slane %v1899, 1
        %v1907 = vsel %vm411, %v1904, %v1906
        %1908 = vrot.lane.b32.xlu0 %v1905, 124
        %v1909 = vpop.permute.xlu0 %1908
        %1910 = vrot.lane.b32.xlu0 %v1907, 124
        %v1911 = vpop.permute.xlu0 %1910
        %v1914 = vadd.f32 %v1893, %v1909
        %v1915 = vadd.f32 %v1894, %v1911
        %s1916 = sld [smem:[#allocation9 + $0x43]]
        %v1917 = vstv %s1916
        %v1918 = vmul.f32 %v1917, %v1350
        %v1919 = vmul.f32 %v1917, %v1351
        %v1920 = vmul.f32 %v1917, %v1352
        %v1924 = vrot.slane %v1918, 2
        %v1925 = vrot.slane %v1919, 2
        %v1926 = vsel %vm429, %v1924, %v1925
        %v1927 = vrot.slane %v1920, 2
        %v1928 = vsel %vm429, %v1925, %v1927
        %1929 = vrot.lane.b32.xlu0 %v1926, 124
        %v1930 = vpop.permute.xlu0 %1929
        %1931 = vrot.lane.b32.xlu0 %v1928, 124
        %v1932 = vpop.permute.xlu0 %1931
        %v1935 = vadd.f32 %v1914, %v1930
        %v1936 = vadd.f32 %v1915, %v1932
        %s1937 = sld [smem:[#allocation9 + $0x4a]]
        %v1938 = vstv %s1937
        %v1939 = vmul.f32 %v1938, %v1350
        %v1940 = vmul.f32 %v1938, %v1351
        %v1941 = vmul.f32 %v1938, %v1352
        %v1945 = vrot.slane %v1939, 3
        %v1946 = vrot.slane %v1940, 3
        %v1947 = vsel %vm447, %v1945, %v1946
        %v1948 = vrot.slane %v1941, 3
        %v1949 = vsel %vm447, %v1946, %v1948
        %1950 = vrot.lane.b32.xlu0 %v1947, 124
        %v1951 = vpop.permute.xlu0 %1950
        %1952 = vrot.lane.b32.xlu0 %v1949, 124
        %v1953 = vpop.permute.xlu0 %1952
        %v1956 = vadd.f32 %v1935, %v1951
        %v1957 = vadd.f32 %v1936, %v1953
        %s1958 = sld [smem:[#allocation9 + $0x51]]
        %v1959 = vstv %s1958
        %v1960 = vmul.f32 %v1959, %v1350
        %v1961 = vmul.f32 %v1959, %v1351
        %v1962 = vmul.f32 %v1959, %v1352
        %v1966 = vrot.slane %v1960, 4
        %v1967 = vrot.slane %v1961, 4
        %v1968 = vsel %vm211, %v1966, %v1967
        %v1969 = vrot.slane %v1962, 4
        %v1970 = vsel %vm211, %v1967, %v1969
        %1971 = vrot.lane.b32.xlu0 %v1968, 124
        %v1972 = vpop.permute.xlu0 %1971
        %1973 = vrot.lane.b32.xlu0 %v1970, 124
        %v1974 = vpop.permute.xlu0 %1973
        %v1977 = vadd.f32 %v1956, %v1972
        %v1978 = vadd.f32 %v1957, %v1974
        %s1979 = sld [smem:[#allocation9 + $0x58]]
        %v1980 = vstv %s1979
        %v1981 = vmul.f32 %v1980, %v1350
        %v1982 = vmul.f32 %v1980, %v1351
        %v1983 = vmul.f32 %v1980, %v1352
        %v1987 = vrot.slane %v1981, 5
        %v1988 = vrot.slane %v1982, 5
        %v1989 = vsel %vm482, %v1987, %v1988
        %v1990 = vrot.slane %v1983, 5
        %v1991 = vsel %vm482, %v1988, %v1990
        %1992 = vrot.lane.b32.xlu0 %v1989, 124
        %v1993 = vpop.permute.xlu0 %1992
        %1994 = vrot.lane.b32.xlu0 %v1991, 124
        %v1995 = vpop.permute.xlu0 %1994
        %v1998 = vadd.f32 %v1977, %v1993
        %v1999 = vadd.f32 %v1978, %v1995
        %s2000 = sld [smem:[#allocation9 + $0x5f]]
        %v2001 = vstv %s2000
        %v2002 = vmul.f32 %v2001, %v1350
        %v2003 = vmul.f32 %v2001, %v1351
        %v2004 = vmul.f32 %v2001, %v1352
        %v2008 = vrot.slane %v2002, 6
        %v2009 = vrot.slane %v2003, 6
        %v2010 = vsel %vm500, %v2008, %v2009
        %v2011 = vrot.slane %v2004, 6
        %v2012 = vsel %vm500, %v2009, %v2011
        %2013 = vrot.lane.b32.xlu0 %v2010, 124
        %v2014 = vpop.permute.xlu0 %2013
        %2015 = vrot.lane.b32.xlu0 %v2012, 124
        %v2016 = vpop.permute.xlu0 %2015
        %v2019 = vadd.f32 %v1998, %v2014
        %v2020 = vadd.f32 %v1999, %v2016
        %s2021 = sld [smem:[#allocation9 + $0x36]]
        %v2022 = vstv %s2021
        %v2023 = vmul.f32 %v2022, %v1350
        %v2024 = vmul.f32 %v2022, %v1351
        %2027 = vrot.lane.b32.xlu0 %v2023, 123
        %v2028 = vpop.permute.xlu0 %2027
        %2029 = vrot.lane.b32.xlu0 %v2024, 123
        %v2030 = vpop.permute.xlu0 %2029
        %v2033 = vadd.f32 %v2019, %v2028
        %v2034 = vadd.f32 %v2020, %v2030
        %s2035 = sld [smem:[#allocation9 + $0x3d]]
        %v2036 = vstv %s2035
        %v2037 = vmul.f32 %v2036, %v1350
        %v2038 = vmul.f32 %v2036, %v1351
        %v2039 = vmul.f32 %v2036, %v1352
        %v2043 = vrot.slane %v2037, 1
        %v2044 = vrot.slane %v2038, 1
        %v2045 = vsel %vm411, %v2043, %v2044
        %v2046 = vrot.slane %v2039, 1
        %v2047 = vsel %vm411, %v2044, %v2046
        %2048 = vrot.lane.b32.xlu0 %v2045, 123
        %v2049 = vpop.permute.xlu0 %2048
        %2050 = vrot.lane.b32.xlu0 %v2047, 123
        %v2051 = vpop.permute.xlu0 %2050
        %v2054 = vadd.f32 %v2033, %v2049
        %v2055 = vadd.f32 %v2034, %v2051
        %s2056 = sld [smem:[#allocation9 + $0x44]]
        %v2057 = vstv %s2056
        %v2058 = vmul.f32 %v2057, %v1350
        %v2059 = vmul.f32 %v2057, %v1351
        %v2060 = vmul.f32 %v2057, %v1352
        %v2064 = vrot.slane %v2058, 2
        %v2065 = vrot.slane %v2059, 2
        %v2066 = vsel %vm429, %v2064, %v2065
        %v2067 = vrot.slane %v2060, 2
        %v2068 = vsel %vm429, %v2065, %v2067
        %2069 = vrot.lane.b32.xlu0 %v2066, 123
        %v2070 = vpop.permute.xlu0 %2069
        %2071 = vrot.lane.b32.xlu0 %v2068, 123
        %v2072 = vpop.permute.xlu0 %2071
        %v2075 = vadd.f32 %v2054, %v2070
        %v2076 = vadd.f32 %v2055, %v2072
        %s2077 = sld [smem:[#allocation9 + $0x4b]]
        %v2078 = vstv %s2077
        %v2079 = vmul.f32 %v2078, %v1350
        %v2080 = vmul.f32 %v2078, %v1351
        %v2081 = vmul.f32 %v2078, %v1352
        %v2085 = vrot.slane %v2079, 3
        %v2086 = vrot.slane %v2080, 3
        %v2087 = vsel %vm447, %v2085, %v2086
        %v2088 = vrot.slane %v2081, 3
        %v2089 = vsel %vm447, %v2086, %v2088
        %2090 = vrot.lane.b32.xlu0 %v2087, 123
        %v2091 = vpop.permute.xlu0 %2090
        %2092 = vrot.lane.b32.xlu0 %v2089, 123
        %v2093 = vpop.permute.xlu0 %2092
        %v2096 = vadd.f32 %v2075, %v2091
        %v2097 = vadd.f32 %v2076, %v2093
        %s2098 = sld [smem:[#allocation9 + $0x52]]
        %v2099 = vstv %s2098
        %v2100 = vmul.f32 %v2099, %v1350
        %v2101 = vmul.f32 %v2099, %v1351
        %v2102 = vmul.f32 %v2099, %v1352
        %v2106 = vrot.slane %v2100, 4
        %v2107 = vrot.slane %v2101, 4
        %v2108 = vsel %vm211, %v2106, %v2107
        %v2109 = vrot.slane %v2102, 4
        %v2110 = vsel %vm211, %v2107, %v2109
        %2111 = vrot.lane.b32.xlu0 %v2108, 123
        %v2112 = vpop.permute.xlu0 %2111
        %2113 = vrot.lane.b32.xlu0 %v2110, 123
        %v2114 = vpop.permute.xlu0 %2113
        %v2117 = vadd.f32 %v2096, %v2112
        %v2118 = vadd.f32 %v2097, %v2114
        %s2119 = sld [smem:[#allocation9 + $0x59]]
        %v2120 = vstv %s2119
        %v2121 = vmul.f32 %v2120, %v1350
        %v2122 = vmul.f32 %v2120, %v1351
        %v2123 = vmul.f32 %v2120, %v1352
        %v2127 = vrot.slane %v2121, 5
        %v2128 = vrot.slane %v2122, 5
        %v2129 = vsel %vm482, %v2127, %v2128
        %v2130 = vrot.slane %v2123, 5
        %v2131 = vsel %vm482, %v2128, %v2130
        %2132 = vrot.lane.b32.xlu0 %v2129, 123
        %v2133 = vpop.permute.xlu0 %2132
        %2134 = vrot.lane.b32.xlu0 %v2131, 123
        %v2135 = vpop.permute.xlu0 %2134
        %v2138 = vadd.f32 %v2117, %v2133
        %v2139 = vadd.f32 %v2118, %v2135
        %s2140 = sld [smem:[#allocation9 + $0x60]]
        %v2141 = vstv %s2140
        %v2142 = vmul.f32 %v2141, %v1350
        %v2143 = vmul.f32 %v2141, %v1351
        %v2144 = vmul.f32 %v2141, %v1352
        %v2148 = vrot.slane %v2142, 6
        %v2149 = vrot.slane %v2143, 6
        %v2150 = vsel %vm500, %v2148, %v2149
        %v2151 = vrot.slane %v2144, 6
        %v2152 = vsel %vm500, %v2149, %v2151
        %2153 = vrot.lane.b32.xlu0 %v2150, 123
        %v2154 = vpop.permute.xlu0 %2153
        %2155 = vrot.lane.b32.xlu0 %v2152, 123
        %v2156 = vpop.permute.xlu0 %2155
        %v2159 = vadd.f32 %v2138, %v2154
        %v2160 = vadd.f32 %v2139, %v2156
        %s2161 = sld [smem:[#allocation9 + $0x37]]
        %v2162 = vstv %s2161
        %v2163 = vmul.f32 %v2162, %v1350
        %v2164 = vmul.f32 %v2162, %v1351
        %2167 = vrot.lane.b32.xlu0 %v2163, 122
        %v2168 = vpop.permute.xlu0 %2167
        %2169 = vrot.lane.b32.xlu0 %v2164, 122
        %v2170 = vpop.permute.xlu0 %2169
        %v2173 = vadd.f32 %v2159, %v2168
        %v2174 = vadd.f32 %v2160, %v2170
        %s2175 = sld [smem:[#allocation9 + $0x3e]]
        %v2176 = vstv %s2175
        %v2177 = vmul.f32 %v2176, %v1350
        %v2178 = vmul.f32 %v2176, %v1351
        %v2179 = vmul.f32 %v2176, %v1352
        %v2183 = vrot.slane %v2177, 1
        %v2184 = vrot.slane %v2178, 1
        %v2185 = vsel %vm411, %v2183, %v2184
        %v2186 = vrot.slane %v2179, 1
        %v2187 = vsel %vm411, %v2184, %v2186
        %2188 = vrot.lane.b32.xlu0 %v2185, 122
        %v2189 = vpop.permute.xlu0 %2188
        %2190 = vrot.lane.b32.xlu0 %v2187, 122
        %v2191 = vpop.permute.xlu0 %2190
        %v2194 = vadd.f32 %v2173, %v2189
        %v2195 = vadd.f32 %v2174, %v2191
        %s2196 = sld [smem:[#allocation9 + $0x45]]
        %v2197 = vstv %s2196
        %v2198 = vmul.f32 %v2197, %v1350
        %v2199 = vmul.f32 %v2197, %v1351
        %v2200 = vmul.f32 %v2197, %v1352
        %v2204 = vrot.slane %v2198, 2
        %v2205 = vrot.slane %v2199, 2
        %v2206 = vsel %vm429, %v2204, %v2205
        %v2207 = vrot.slane %v2200, 2
        %v2208 = vsel %vm429, %v2205, %v2207
        %2209 = vrot.lane.b32.xlu0 %v2206, 122
        %v2210 = vpop.permute.xlu0 %2209
        %2211 = vrot.lane.b32.xlu0 %v2208, 122
        %v2212 = vpop.permute.xlu0 %2211
        %v2215 = vadd.f32 %v2194, %v2210
        %v2216 = vadd.f32 %v2195, %v2212
        %s2217 = sld [smem:[#allocation9 + $0x4c]]
        %v2218 = vstv %s2217
        %v2219 = vmul.f32 %v2218, %v1350
        %v2220 = vmul.f32 %v2218, %v1351
        %v2221 = vmul.f32 %v2218, %v1352
        %v2225 = vrot.slane %v2219, 3
        %v2226 = vrot.slane %v2220, 3
        %v2227 = vsel %vm447, %v2225, %v2226
        %v2228 = vrot.slane %v2221, 3
        %v2229 = vsel %vm447, %v2226, %v2228
        %2230 = vrot.lane.b32.xlu0 %v2227, 122
        %v2231 = vpop.permute.xlu0 %2230
        %2232 = vrot.lane.b32.xlu0 %v2229, 122
        %v2233 = vpop.permute.xlu0 %2232
        %v2236 = vadd.f32 %v2215, %v2231
        %v2237 = vadd.f32 %v2216, %v2233
        %s2238 = sld [smem:[#allocation9 + $0x53]]
        %v2239 = vstv %s2238
        %v2240 = vmul.f32 %v2239, %v1350
        %v2241 = vmul.f32 %v2239, %v1351
        %v2242 = vmul.f32 %v2239, %v1352
        %v2246 = vrot.slane %v2240, 4
        %v2247 = vrot.slane %v2241, 4
        %v2248 = vsel %vm211, %v2246, %v2247
        %v2249 = vrot.slane %v2242, 4
        %v2250 = vsel %vm211, %v2247, %v2249
        %2251 = vrot.lane.b32.xlu0 %v2248, 122
        %v2252 = vpop.permute.xlu0 %2251
        %2253 = vrot.lane.b32.xlu0 %v2250, 122
        %v2254 = vpop.permute.xlu0 %2253
        %v2257 = vadd.f32 %v2236, %v2252
        %v2258 = vadd.f32 %v2237, %v2254
        %s2259 = sld [smem:[#allocation9 + $0x5a]]
        %v2260 = vstv %s2259
        %v2261 = vmul.f32 %v2260, %v1350
        %v2262 = vmul.f32 %v2260, %v1351
        %v2263 = vmul.f32 %v2260, %v1352
        %v2267 = vrot.slane %v2261, 5
        %v2268 = vrot.slane %v2262, 5
        %v2269 = vsel %vm482, %v2267, %v2268
        %v2270 = vrot.slane %v2263, 5
        %v2271 = vsel %vm482, %v2268, %v2270
        %2272 = vrot.lane.b32.xlu0 %v2269, 122
        %v2273 = vpop.permute.xlu0 %2272
        %2274 = vrot.lane.b32.xlu0 %v2271, 122
        %v2275 = vpop.permute.xlu0 %2274
        %v2278 = vadd.f32 %v2257, %v2273
        %v2279 = vadd.f32 %v2258, %v2275
        %s2280 = sld [smem:[#allocation9 + $0x61]]
        %v2281 = vstv %s2280
        %v2282 = vmul.f32 %v2281, %v1350
        %v2283 = vmul.f32 %v2281, %v1351
        %v2284 = vmul.f32 %v2281, %v1352
        %v2288 = vrot.slane %v2282, 6
        %v2289 = vrot.slane %v2283, 6
        %v2290 = vsel %vm500, %v2288, %v2289
        %v2291 = vrot.slane %v2284, 6
        %v2292 = vsel %vm500, %v2289, %v2291
        %2293 = vrot.lane.b32.xlu0 %v2290, 122
        %v2294 = vpop.permute.xlu0 %2293
        %2295 = vrot.lane.b32.xlu0 %v2292, 122
        %v2296 = vpop.permute.xlu0 %2295
        %v2299 = vadd.f32 %v2278, %v2294
        %v2300 = vadd.f32 %v2279, %v2296
        %s2301 = sld [smem:[#allocation4]]
        %v2302 = vstv %s2301
        %v2303 = vadd.f32 %v2299, %v2302
        %v2304 = vadd.f32 %v2300, %v2302
        %v2305 = vmul.f32 %v2303, 0.5
        %v2306 = vmul.f32 %v2304, 0.5
        %v2307 = vtanh.pop %v2305
        %v2308 = vtanh.pop %v2306
        %v2309 = vadd.f32 %v2307, 1.0
        %v2310 = vadd.f32 %v2308, 1.0
        %v2311 = vmul.f32 %v2309, 0.5
        %v2312 = vmul.f32 %v2310, 0.5
        %v2313 = vlaneseq
        %vm2314 = vcmp.ge.s32.totalorder %v2313, 0
        %vm2315 = vcmp.lt.s32.totalorder %v2313, 16
        %vm2316 = vmand %vm2314, %vm2315
        %2317 = vst.msk [vmem:[#allocation3] sm:$0x1] %vm2316, %v2311
        %2319 = vst [vmem:[#allocation1] sm:$0xff] %v2311
        %s2320 = scalar_lea.vmem [#allocation1], 1
        %v2321 = vld [vmem:[%s2320] ss:$9 sm:$0xff]
        %2322 = vrot.lane.b32.xlu0 %v2321, 16
        %v2323 = vpop.permute.xlu0 %2322
        %vm2325 = vcmp.ge.s32.totalorder %v2313, 16
        %vm2326 = vcmp.lt.s32.totalorder %v2313, 32
        %vm2327 = vmand %vm2325, %vm2326
        %2328 = vst.msk [vmem:[#allocation3] sm:$0x1] %vm2327, %v2323
        %2329 = vst [vmem:[#allocation1] sm:$0xff] %v2311
        %s2330 = scalar_lea.vmem [#allocation1], 2
        %v2331 = vld [vmem:[%s2330] ss:$9 sm:$0xff]
        %2332 = vrot.lane.b32.xlu0 %v2331, 32
        %v2333 = vpop.permute.xlu0 %2332
        %vm2335 = vcmp.ge.s32.totalorder %v2313, 32
        %vm2336 = vcmp.lt.s32.totalorder %v2313, 48
        %vm2337 = vmand %vm2335, %vm2336
        %2338 = vst.msk [vmem:[#allocation3] sm:$0x1] %vm2337, %v2333
        %2339 = vst [vmem:[#allocation1] sm:$0xff] %v2311
        %s2340 = scalar_lea.vmem [#allocation1], 3
        %v2341 = vld [vmem:[%s2340] ss:$9 sm:$0xff]
        %2342 = vrot.lane.b32.xlu0 %v2341, 48
        %v2343 = vpop.permute.xlu0 %2342
        %vm2345 = vcmp.ge.s32.totalorder %v2313, 48
        %vm2346 = vcmp.lt.s32.totalorder %v2313, 64
        %vm2347 = vmand %vm2345, %vm2346
        %2348 = vst.msk [vmem:[#allocation3] sm:$0x1] %vm2347, %v2343
        %2349 = vst [vmem:[#allocation1] sm:$0xff] %v2311
        %s2350 = scalar_lea.vmem [#allocation1], 4
        %v2351 = vld [vmem:[%s2350] ss:$9 sm:$0xff]
        %2352 = vrot.lane.b32.xlu0 %v2351, 64
        %v2353 = vpop.permute.xlu0 %2352
        %vm2355 = vcmp.ge.s32.totalorder %v2313, 64
        %vm2356 = vcmp.lt.s32.totalorder %v2313, 80
        %vm2357 = vmand %vm2355, %vm2356
        %2358 = vst.msk [vmem:[#allocation3] sm:$0x1] %vm2357, %v2353
        %2359 = vst [vmem:[#allocation1] sm:$0xff] %v2311
        %s2360 = scalar_lea.vmem [#allocation1], 5
        %v2361 = vld [vmem:[%s2360] ss:$9 sm:$0xff]
        %2362 = vrot.lane.b32.xlu0 %v2361, 80
        %v2363 = vpop.permute.xlu0 %2362
        %vm2365 = vcmp.ge.s32.totalorder %v2313, 80
        %vm2366 = vcmp.lt.s32.totalorder %v2313, 96
        %vm2367 = vmand %vm2365, %vm2366
        %2368 = vst.msk [vmem:[#allocation3] sm:$0x1] %vm2367, %v2363
        %2369 = vst [vmem:[#allocation1] sm:$0xff] %v2311
        %s2370 = scalar_lea.vmem [#allocation1], 6
        %v2371 = vld [vmem:[%s2370] ss:$9 sm:$0xff]
        %2372 = vrot.lane.b32.xlu0 %v2371, 96
        %v2373 = vpop.permute.xlu0 %2372
        %vm2375 = vcmp.ge.s32.totalorder %v2313, 96
        %vm2376 = vcmp.lt.s32.totalorder %v2313, 112
        %vm2377 = vmand %vm2375, %vm2376
        %2378 = vst.msk [vmem:[#allocation3] sm:$0x1] %vm2377, %v2373
        %2379 = vst [vmem:[#allocation1] sm:$0xff] %v2311
        %s2380 = scalar_lea.vmem [#allocation1], 7
        %v2381 = vld [vmem:[%s2380] ss:$9 sm:$0xff]
        %2382 = vrot.lane.b32.xlu0 %v2381, 112
        %v2383 = vpop.permute.xlu0 %2382
        %vm2385 = vcmp.ge.s32.totalorder %v2313, 112
        %vm2386 = vcmp.lt.s32.totalorder %v2313, 128
        %vm2387 = vmand %vm2385, %vm2386
        %2388 = vst.msk [vmem:[#allocation3] sm:$0x1] %vm2387, %v2383
        %2389 = vst.msk [vmem:[#allocation3 + $0x1] sm:$0x1] %vm2316, %v2312
        %2391 = vst [vmem:[#allocation1] sm:$0xff] %v2312
        %s2392 = scalar_lea.vmem [#allocation1], 1
        %v2393 = vld [vmem:[%s2392] ss:$9 sm:$0xff]
        %2394 = vrot.lane.b32.xlu0 %v2393, 16
        %v2395 = vpop.permute.xlu0 %2394
        %2397 = vst.msk [vmem:[#allocation3 + $0x1] sm:$0x1] %vm2327, %v2395
        %2398 = vst [vmem:[#allocation1] sm:$0xff] %v2312
        %s2399 = scalar_lea.vmem [#allocation1], 2
        %v2400 = vld [vmem:[%s2399] ss:$9 sm:$0xff]
        %2401 = vrot.lane.b32.xlu0 %v2400, 32
        %v2402 = vpop.permute.xlu0 %2401
        %2404 = vst.msk [vmem:[#allocation3 + $0x1] sm:$0x1] %vm2337, %v2402
        %2405 = vst [vmem:[#allocation1] sm:$0xff] %v2312
        %s2406 = scalar_lea.vmem [#allocation1], 3
        %v2407 = vld [vmem:[%s2406] ss:$9 sm:$0xff]
        %2408 = vrot.lane.b32.xlu0 %v2407, 48
        %v2409 = vpop.permute.xlu0 %2408
        %2411 = vst.msk [vmem:[#allocation3 + $0x1] sm:$0x1] %vm2347, %v2409
        %2412 = vst [vmem:[#allocation1] sm:$0xff] %v2312
        %s2413 = scalar_lea.vmem [#allocation1], 4
        %v2414 = vld [vmem:[%s2413] ss:$9 sm:$0xff]
        %2415 = vrot.lane.b32.xlu0 %v2414, 64
        %v2416 = vpop.permute.xlu0 %2415
        %2418 = vst.msk [vmem:[#allocation3 + $0x1] sm:$0x1] %vm2357, %v2416
        %2419 = vst [vmem:[#allocation1] sm:$0xff] %v2312
        %s2420 = scalar_lea.vmem [#allocation1], 5
        %v2421 = vld [vmem:[%s2420] ss:$9 sm:$0xff]
        %2422 = vrot.lane.b32.xlu0 %v2421, 80
        %v2423 = vpop.permute.xlu0 %2422
        %2425 = vst.msk [vmem:[#allocation3 + $0x1] sm:$0x1] %vm2367, %v2423
        %2426 = vst [vmem:[#allocation1] sm:$0xff] %v2312
        %s2427 = scalar_lea.vmem [#allocation1], 6
        %v2428 = vld [vmem:[%s2427] ss:$9 sm:$0xff]
        %2429 = vrot.lane.b32.xlu0 %v2428, 96
        %v2430 = vpop.permute.xlu0 %2429
        %2432 = vst.msk [vmem:[#allocation3 + $0x1] sm:$0x1] %vm2377, %v2430
        %2433 = vst [vmem:[#allocation1] sm:$0xff] %v2312
        %s2434 = scalar_lea.vmem [#allocation1], 7
        %v2435 = vld [vmem:[%s2434] ss:$9 sm:$0xff]
        %2436 = vrot.lane.b32.xlu0 %v2435, 112
        %v2437 = vpop.permute.xlu0 %2436
        %2439 = vst.msk [vmem:[#allocation3 + $0x1] sm:$0x1] %vm2387, %v2437
        %v2440 = vld [vmem:[#allocation3] sm:$0x3]
        %v2442 = vperm.slane %v2440, 0
        %v2443 = vperm.slane %v2440, 1
        %v2444 = vrot.slane %v2443, 4
        %v2445 = vsel %vm211, %v2442, %v2444
        %v2447 = vmul.f32 %v204, %v2445
        %2448 = vst [vmem:[%s203] sm:$0xff] %v2447
        %s2449 = sand.u32 %s98, 1
        %s2450 = scalar_lea.sflag [#allocation7], %s2449
        %s2451 = sand.u32 %s98, 1
        %s2452 = smul.addr %s2451, 8
        %s2453 = scalar_lea.vmem [#allocation10], %s2452
        // Predicated region
        $region41: #{tpu_custom_call.1} parent=31 // pred_check
          %p2454 = pneg %p108
        $region42: #{tpu_custom_call.1} parent=31 // pred_check_branch
          %2456 = sbr.rel (%p2454) target = $region44
        $region43: #{tpu_custom_call.1} parent=31 // pred_region
          %2458 = vsyncadd %s2450, 0
          %s2459 = smul.addr %s22, 2
          %s2460 = smul.addr %s2459, 4
          %s2461 = scalar_lea.hbm %s3, %s2460
          %s2463 = sshll.u32 %s2453, 4
          %s2464 = int_to_ptr.vmem [resolvable:$true] %s2463
          %s2465 = sshll.u32 %s2461, 4
          %s2466 = int_to_ptr.hbm [resolvable:$true] %s2465
          %2468 = dma.vmem_to_hbm [thread:$0]  %s2464, 128, %s2466, %s2450
        $region44: #{tpu_custom_call.1} parent=31 // pred_fallthru
          _
      $region32: #{tpu_custom_call.1} parent=5 // pred_fallthru
        _
      %p2469 = scmp.le.s32.totalorder 2, %s17
      // Predicated region
      $region45: #{tpu_custom_call.1} parent=5 // pred_check
        %p2470 = pneg %p2469
      $region46: #{tpu_custom_call.1} parent=5 // pred_check_branch
        %2472 = sbr.rel (%p2470) target = $region48
      $region47: #{tpu_custom_call.1} parent=5 // pred_region
        %s2473 = ssub.s32 %s17, 2
        // Predicated region
        $region49: #{tpu_custom_call.1} parent=47 // pred_check
          %p2474 = pneg %p114
        $region50: #{tpu_custom_call.1} parent=47 // pred_check_branch
          %2476 = sbr.rel (%p2474) target = $region52
        $region51: #{tpu_custom_call.1} parent=47 // pred_region
          %s2477 = sand.u32 %s99, 1
          %s2478 = scalar_lea.sflag [#allocation7], %s2477
          %s2479 = sand.u32 %s99, 1
          %s2480 = smul.addr %s2479, 8
          %s2481 = scalar_lea.vmem [#allocation10], %s2480
          %2483 = dma.done %s2478, 128
        $region52: #{tpu_custom_call.1} parent=47 // pred_fallthru
          _
      $region48: #{tpu_custom_call.1} parent=5 // pred_fallthru
        _
    $region6: #{tpu_custom_call.1} parent=1 // loop_footer
      %s21 = sadd.s32 1, %s17
    $region7: #{tpu_custom_call.1} parent=1 // loop_footer_branch
      %16 = sbr.rel target = $region3
    $region8: #{tpu_custom_call.1} parent=1 // loop_exit
      _
    %2484 = vsyncpa [#allocation6], 1
    %s2485 = scalar_lea.sflag [#allocation6], 1
    %2486 = vsyncpa %s2485, 1
    %2487 = vsyncpa [#allocation7], 1
    %s2488 = scalar_lea.sflag [#allocation7], 1
    %2489 = vsyncpa %s2488, 1
    %2490 = vsyncpa [#allocation8], 1
    %s2491 = scalar_lea.sflag [#allocation8], 1
    %2492 = vsyncpa %s2491, 1

</llo_original>
